<compile_context>
chip_gen: v7x
topology: tpu7x:2x2x1
jax: 0.10.0
libtpu: 0.0.40
codegen_flags: <defaults>
</compile_context>

<pallas_src>
import functools

import jax
import jax.numpy as jnp
from jax import lax
from jax.experimental import pallas as pl
from jax.experimental.pallas import tpu as pltpu


def _round_up(x, m):
    return ((x + m - 1) // m) * m


# ----------------------------------------------------------------------------
# Pallas kernel: in-kernel token gather + streamed LSTM recurrence + fused head.
# ----------------------------------------------------------------------------
def _detector_kernel(
    t_total,      # python int: real (unpadded) sequence length
    tok_ref,      # [TC, BB, 1] int32 token chunk (time-major)
    embp_ref,     # [Vpad, 1024] bf16  emb @ W_ih^T (gate order i,f,g,o), zero-padded rows
    whh_ref,      # [256, 1024]  bf16  LSTM W_hh^T
    bg_ref,       # [1, 1024]    f32   b_ih + b_hh
    fc1w_ref,     # [256, 1024]  bf16  fc1 weight with eval-BN folded in
    fc1b_ref,     # [1, 1024]    f32   fc1 bias with eval-BN folded in
    fc2w_ref,     # [1024, 512]  bf16
    fc2b_ref,     # [1, 512]     f32
    fc3w_ref,     # [512, 128]   bf16  (zero-padded from 2 cols)
    fc3b_ref,     # [1, 128]     f32   (zero-padded from 2 cols)
    out_ref,      # [BB, 128]    f32
    h_ref,        # [BB, 256]    f32 scratch (persists across the T grid axis)
    c_ref,        # [BB, 256]    f32 scratch
    pre_ref,      # [TC, BB, 1024] f32 scratch: hoisted per-chunk input projection
):
    TC, BB, _ = tok_ref.shape
    V = embp_ref.shape[0]
    H = whh_ref.shape[0]          # 256
    G = 4 * H                     # 1024
    t = pl.program_id(1)
    nt = pl.num_programs(1)

    @pl.when(t == 0)
    def _():
        h_ref[...] = jnp.zeros_like(h_ref)
        c_ref[...] = jnp.zeros_like(c_ref)

    # ---- In-kernel embedding gather fused with the LSTM input projection. ----
    # one_hot(tokens) @ (emb @ W_ih): one big MXU matmul per chunk, hoisted out of
    # the serial recurrence.  Only 4 B/token of HBM traffic for the activations.
    toks3 = tok_ref[...]                                             # [TC, BB, 1] i32
    iota_v = lax.broadcasted_iota(jnp.int32, (TC, BB, V), 2)
    onehot = jnp.where(toks3 == iota_v, 1.0, 0.0).astype(jnp.bfloat16)   # [TC, BB, V]
    pre = jnp.dot(onehot.reshape(TC * BB, V), embp_ref[...],
                  preferred_element_type=jnp.float32) + bg_ref[...]      # [TC*BB, 4H]
    pre_ref[...] = pre.reshape(TC, BB, G)

    # ---- Serial LSTM recurrence over the valid steps of this chunk. ----
    whh = whh_ref[...]

    def step(i, carry):
        h = h_ref[...]
        c = c_ref[...]
        gates = pre_ref[i] + jnp.dot(h.astype(jnp.bfloat16), whh,
                                     preferred_element_type=jnp.float32)  # [BB, 4H]
        # sigmoid(x) = 0.5 * tanh(0.5 x) + 0.5  -> single EUP push per gate.
        i_g = 0.5 * jnp.tanh(0.5 * gates[:, 0:H]) + 0.5
        f_g = 0.5 * jnp.tanh(0.5 * gates[:, H:2 * H]) + 0.5
        g_g = jnp.tanh(gates[:, 2 * H:3 * H])
        o_g = 0.5 * jnp.tanh(0.5 * gates[:, 3 * H:4 * H]) + 0.5
        c_new = f_g * c + i_g * g_g
        c_ref[...] = c_new
        h_ref[...] = o_g * jnp.tanh(c_new)
        return carry

    if t_total % TC == 0:
        # Every chunk is full: static trip count, modest partial unroll.
        lax.fori_loop(0, TC, step, 0, unroll=2)
    else:
        # Skip padded timesteps entirely (exactly equivalent to freezing h/c).
        n_steps = jnp.minimum(TC, t_total - t * TC)
        lax.fori_loop(0, n_steps, step, 0)

    # ---- Fused FC head only on the final time chunk of this batch block. ----
    @pl.when(t == nt - 1)
    def _():
        hb = h_ref[...].astype(jnp.bfloat16)
        # fc1 (with eval-mode BatchNorm folded in) -> ReLU
        y = jnp.dot(hb, fc1w_ref[...],
                    preferred_element_type=jnp.float32) + fc1b_ref[...]
        y = jnp.maximum(y, 0.0)
        # TODO(synk): dropout(p=0.4) is identity in eval mode; training-mode RNG
        # masking (and training-mode BatchNorm) are not implemented here.
        y = jnp.dot(y.astype(jnp.bfloat16), fc2w_ref[...],
                    preferred_element_type=jnp.float32) + fc2b_ref[...]
        y = jnp.maximum(y, 0.0)
        y = jnp.dot(y.astype(jnp.bfloat16), fc3w_ref[...],
                    preferred_element_type=jnp.float32) + fc3b_ref[...]
        out_ref[...] = y.astype(out_ref.dtype)


# ----------------------------------------------------------------------------
# Weight preparation shared by the kernel wrapper and the pure-JAX reference.
# ----------------------------------------------------------------------------
def _prepare_weights(params):
    H = 256
    G = 4 * H
    V = params["emb"].shape[0]
    V_pad = _round_up(V, 128)

    # Fuse the frozen embedding lookup with the LSTM input projection:
    #   emb(x) @ W_ih^T  ==  (emb @ W_ih^T)[x]   -> one [Vpad, 4H] bf16 table.
    emb_proj = jnp.dot(params["emb"], params["w_ih_t"])
    emb_proj = jnp.zeros((V_pad, G), jnp.float32).at[:V].set(emb_proj)
    emb_proj = emb_proj.astype(jnp.bfloat16)

    # Fold eval-mode BatchNorm1d into fc1: y = (h@W + b - mean)*s + beta,
    # s = gamma * rsqrt(var + eps)  =>  W' = W*s, b' = b*s + beta - mean*s.
    bn_s = params["bn_gamma"] * lax.rsqrt(params["bn_var"] + 1e-5)
    fc1_w = (params["fc1_w_t"] * bn_s).astype(jnp.bfloat16)
    fc1_b = params["fc1_b"] * bn_s + params["bn_beta"] - params["bn_mean"] * bn_s

    # Pad fc3 from 2 -> 128 output columns for a lane-dense final store.
    fc3_w = (jnp.zeros((512, 128), jnp.float32)
             .at[:, :2].set(params["fc3_w_t"]).astype(jnp.bfloat16))
    fc3_b = jnp.zeros((1, 128), jnp.float32).at[:, :2].set(params["fc3_b"])

    return {
        "emb_proj": emb_proj,
        "w_hh": params["w_hh_t"].astype(jnp.bfloat16),
        "b_gates": params["b_gates"],
        "fc1_w": fc1_w, "fc1_b": fc1_b,
        "fc2_w": params["fc2_w_t"].astype(jnp.bfloat16), "fc2_b": params["fc2_b"],
        "fc3_w": fc3_w, "fc3_b": fc3_b,
    }


# ----------------------------------------------------------------------------
# Wrapper: padding, weight prep, pallas_call.
# ----------------------------------------------------------------------------
def depression_detector_forward(tokens, params, *, t_chunk=16, batch_block=128):
    """tokens: int32 [B, T].  Returns logits [B, 2] (f32)."""
    B, T = tokens.shape
    H = 256
    G = 4 * H

    w = _prepare_weights(params)
    V_pad = w["emb_proj"].shape[0]

    # bf16 operands need 16-row sublane alignment -> pad batch to multiples of 16.
    # v7x note: pick batch_block <= B_pad/2 when the real batch is large so the
    # "parallel" batch axis splits across both TensorCores.
    BB = min(batch_block, _round_up(B, 16))
    B_pad = _round_up(B, BB)
    TC = t_chunk
    T_pad = _round_up(T, TC)

    # Time-major token IDs, padded, with a trailing singleton so the kernel can
    # lane-broadcast them against the vocab iota without any in-kernel relayout.
    tokens_tm = (jnp.zeros((T_pad, B_pad, 1), jnp.int32)
                 .at[:T, :B, 0].set(tokens.astype(jnp.int32).T))

    grid = (B_pad // BB, T_pad // TC)

    def const(shape):
        return pl.BlockSpec(shape, lambda b, t: (0, 0))

    out = pl.pallas_call(
        functools.partial(_detector_kernel, T),
        out_shape=jax.ShapeDtypeStruct((B_pad, 128), jnp.float32),
        grid=grid,
        in_specs=[
            pl.BlockSpec((TC, BB, 1), lambda b, t: (t, b, 0)),   # token IDs
            const((V_pad, G)),     # emb @ W_ih (fused, resident)
            const((H, G)),         # W_hh
            const((1, G)),         # b_ih + b_hh
            const((H, 1024)),      # fc1 (BN folded)
            const((1, 1024)),      # fc1 bias (BN folded)
            const((1024, 512)),    # fc2
            const((1, 512)),       # fc2 bias
            const((512, 128)),     # fc3 (padded)
            const((1, 128)),       # fc3 bias (padded)
        ],
        out_specs=pl.BlockSpec((BB, 128), lambda b, t: (b, 0)),
        scratch_shapes=[
            pltpu.VMEM((BB, H), jnp.float32),        # h state
            pltpu.VMEM((BB, H), jnp.float32),        # c state
            pltpu.VMEM((TC, BB, G), jnp.float32),    # hoisted input projection
        ],
        compiler_params=pltpu.CompilerParams(
            dimension_semantics=("parallel", "arbitrary"),
            # Budgeted for BB=128, TC=16 (weights + pre scratch + temps ~< 30 MiB);
            # raised mainly for v5e's 16 MiB scoped default, safe on all chips.
            vmem_limit_bytes=48 * 1024 * 1024,
        ),
    )(tokens_tm, w["emb_proj"], w["w_hh"], w["b_gates"],
      w["fc1_w"], w["fc1_b"], w["fc2_w"], w["fc2_b"], w["fc3_w"], w["fc3_b"])

    return out[:B, :2]


# ----------------------------------------------------------------------------
# Pure-JAX reference (mirrors the kernel's bf16 operand rounding).
# ----------------------------------------------------------------------------
def reference_forward(tokens, params):
    w = _prepare_weights(params)
    f32 = lambda a: a.astype(jnp.float32)
    B, T = tokens.shape
    H = 256

    pre = f32(w["emb_proj"])[tokens] + w["b_gates"]          # [B, T, 4H]
    whh = f32(w["w_hh"])
    h = jnp.zeros((B, H), jnp.float32)
    c = jnp.zeros((B, H), jnp.float32)
    for t in range(T):
        gates = pre[:, t, :] + jnp.dot(f32(h.astype(jnp.bfloat16)), whh)
        i_g = jax.nn.sigmoid(gates[:, :H])
        f_g = jax.nn.sigmoid(gates[:, H:2 * H])
        g_g = jnp.tanh(gates[:, 2 * H:3 * H])
        o_g = jax.nn.sigmoid(gates[:, 3 * H:])
        c = f_g * c + i_g * g_g
        h = o_g * jnp.tanh(c)

    y = jnp.dot(f32(h.astype(jnp.bfloat16)), f32(w["fc1_w"])) + w["fc1_b"]
    y = jnp.maximum(y, 0.0)
    y = jnp.dot(f32(y.astype(jnp.bfloat16)), f32(w["fc2_w"])) + w["fc2_b"]
    y = jnp.maximum(y, 0.0)
    y = jnp.dot(f32(y.astype(jnp.bfloat16)), f32(w["fc3_w"])) + w["fc3_b"]
    return y[:, :2]


# ----------------------------------------------------------------------------
# Deterministic parameter construction (synthetic, shapes from the module).
# ----------------------------------------------------------------------------
def make_params(key, vocab=100, embed_dim=300, hidden=256):
    ks = jax.random.split(key, 10)
    scale = 0.05
    p = {}
    p["emb"] = scale * jax.random.normal(ks[0], (vocab, embed_dim), jnp.float32)

    # LSTM(300 -> 256): PyTorch weights are [4H, in]; store transposed, gates i,f,g,o.
    p["w_ih_t"] = scale * jax.random.normal(ks[1], (embed_dim, 4 * hidden), jnp.float32)
    p["w_hh_t"] = scale * jax.random.normal(ks[2], (hidden, 4 * hidden), jnp.float32)
    b_ih = scale * jax.random.normal(ks[3], (1, 4 * hidden), jnp.float32)
    b_hh = scale * jax.random.normal(ks[4], (1, 4 * hidden), jnp.float32)
    p["b_gates"] = b_ih + b_hh

    # fc1: LazyLinear(256 -> 1024)
    p["fc1_w_t"] = scale * jax.random.normal(ks[5], (hidden, 1024), jnp.float32)
    p["fc1_b"] = scale * jax.random.normal(ks[6], (1, 1024), jnp.float32)

    # LazyBatchNorm1d(1024): default gamma=1, beta=0, running mean=0, var=1.
    p["bn_gamma"] = jnp.ones((1, 1024), jnp.float32)
    p["bn_beta"] = jnp.zeros((1, 1024), jnp.float32)
    p["bn_mean"] = jnp.zeros((1, 1024), jnp.float32)
    p["bn_var"] = jnp.ones((1, 1024), jnp.float32)

    # fc2: LazyLinear(1024 -> 512)
    p["fc2_w_t"] = scale * jax.random.normal(ks[7], (1024, 512), jnp.float32)
    p["fc2_b"] = scale * jax.random.normal(ks[8], (1, 512), jnp.float32)

    # fc3: LazyLinear(512 -> 2)
    p["fc3_w_t"] = scale * jax.random.normal(ks[9], (512, 2), jnp.float32)
    p["fc3_b"] = jnp.zeros((1, 2), jnp.float32)
    return p


if __name__ == "__main__":
    key = jax.random.PRNGKey(0)
    k_params, k_tokens = jax.random.split(key)

    # Small shapes; T=20 with t_chunk=16 exercises one full time chunk, one
    # partially valid (tail-skipped) chunk, and state carry between chunks.
    B, T, VOCAB = 2, 20, 100
    params = make_params(k_params, vocab=VOCAB)
    tokens = jax.random.randint(k_tokens, (B, T), 0, VOCAB, dtype=jnp.int32)

    logits = depression_detector_forward(tokens, params)
    logits = jax.block_until_ready(logits)

    ref = reference_forward(tokens, params)

    assert logits.shape == (B, 2), logits.shape
    assert bool(jnp.all(jnp.isfinite(logits)))
    assert bool(jnp.allclose(logits, ref, atol=1e-2, rtol=1e-2)), (logits, ref)
    print("KERNEL_OK")
</pallas_src>

<mosaic_0001>
module attributes {stable_mosaic.version = 11 : i64} {
  func.func @_detector_kernel(%arg0: i32, %arg1: i32, %arg2: memref<16x16x1xi32, #tpu.memory_space<vmem>>, %arg3: memref<128x1024xbf16, #tpu.memory_space<vmem>>, %arg4: memref<256x1024xbf16, #tpu.memory_space<vmem>>, %arg5: memref<1x1024xf32, #tpu.memory_space<vmem>>, %arg6: memref<256x1024xbf16, #tpu.memory_space<vmem>>, %arg7: memref<1x1024xf32, #tpu.memory_space<vmem>>, %arg8: memref<1024x512xbf16, #tpu.memory_space<vmem>>, %arg9: memref<1x512xf32, #tpu.memory_space<vmem>>, %arg10: memref<512x128xbf16, #tpu.memory_space<vmem>>, %arg11: memref<1x128xf32, #tpu.memory_space<vmem>>, %arg12: memref<16x128xf32, #tpu.memory_space<vmem>>, %arg13: memref<16x256xf32, #tpu.memory_space<vmem>>, %arg14: memref<16x256xf32, #tpu.memory_space<vmem>>, %arg15: memref<16x16x1024xf32, #tpu.memory_space<vmem>>) attributes {dimension_semantics = [#tpu.dimension_semantics<parallel>, #tpu.dimension_semantics<arbitrary>], iteration_bounds = array<i64: 1, 2>, scalar_prefetch = 0 : i64, scratch_operands = 3 : i64, tpu.core_type = #tpu.core_type<tc>, window_params = [{transform_indices = @transform_0, window_bounds = array<i64: 16, 16, 1>}, {pipeline_mode = #tpu.pipeline_mode<synchronous>, transform_indices = @transform_1, window_bounds = array<i64: 128, 1024>}, {pipeline_mode = #tpu.pipeline_mode<synchronous>, transform_indices = @transform_2, window_bounds = array<i64: 256, 1024>}, {pipeline_mode = #tpu.pipeline_mode<synchronous>, transform_indices = @transform_3, window_bounds = array<i64: 1, 1024>}, {pipeline_mode = #tpu.pipeline_mode<synchronous>, transform_indices = @transform_4, window_bounds = array<i64: 256, 1024>}, {pipeline_mode = #tpu.pipeline_mode<synchronous>, transform_indices = @transform_5, window_bounds = array<i64: 1, 1024>}, {pipeline_mode = #tpu.pipeline_mode<synchronous>, transform_indices = @transform_6, window_bounds = array<i64: 1024, 512>}, {pipeline_mode = #tpu.pipeline_mode<synchronous>, transform_indices = @transform_7, window_bounds = array<i64: 1, 512>}, {pipeline_mode = #tpu.pipeline_mode<synchronous>, transform_indices = @transform_8, window_bounds = array<i64: 512, 128>}, {pipeline_mode = #tpu.pipeline_mode<synchronous>, transform_indices = @transform_9, window_bounds = array<i64: 1, 128>}, {transform_indices = @transform_10, window_bounds = array<i64: 16, 128>}]} {
    %c0_i32 = arith.constant 0 : i32
    %0 = arith.cmpi eq, %arg1, %c0_i32 : i32
    %1 = arith.extui %0 : i1 to i32
    %c0_i32_0 = arith.constant 0 : i32
    %2 = arith.cmpi ne, %1, %c0_i32_0 : i32
    scf.if %2 {
      %cst_19 = arith.constant 0.000000e+00 : f32
      %28 = vector.broadcast %cst_19 : f32 to vector<16x256xf32>
      %c0_20 = arith.constant 0 : index
      %c0_21 = arith.constant 0 : index
      %29 = vector.load %arg13[%c0_20, %c0_21] : memref<16x256xf32, #tpu.memory_space<vmem>>, vector<16x256xf32>
      tpu.vector_store %arg13[%c0_20, %c0_21], %28 {strides = array<i32>} : memref<16x256xf32, #tpu.memory_space<vmem>>, vector<16x256xf32>,
      %cst_22 = arith.constant 0.000000e+00 : f32
      %30 = vector.broadcast %cst_22 : f32 to vector<16x256xf32>
      %c0_23 = arith.constant 0 : index
      %c0_24 = arith.constant 0 : index
      %31 = vector.load %arg14[%c0_23, %c0_24] : memref<16x256xf32, #tpu.memory_space<vmem>>, vector<16x256xf32>
      tpu.vector_store %arg14[%c0_23, %c0_24], %30 {strides = array<i32>} : memref<16x256xf32, #tpu.memory_space<vmem>>, vector<16x256xf32>,
    } else {
    }
    %c0 = arith.constant 0 : index
    %c0_1 = arith.constant 0 : index
    %c0_2 = arith.constant 0 : index
    %3 = vector.load %arg2[%c0, %c0_1, %c0_2] : memref<16x16x1xi32, #tpu.memory_space<vmem>>, vector<16x16x1xi32>
    %4 = tpu.iota {dimensions = array<i32: 2>} : vector<16x16x128xi32>
    %5 = vector.broadcast %3 : vector<16x16x1xi32> to vector<16x16x128xi32>
    %6 = arith.cmpi eq, %5, %4 : vector<16x16x128xi32>
    %cst = arith.constant 1.000000e+00 : f32
    %cst_3 = arith.constant 0.000000e+00 : f32
    %7 = vector.broadcast %cst : f32 to vector<16x16x128xf32>
    %8 = vector.broadcast %cst_3 : f32 to vector<16x16x128xf32>
    %9 = arith.select %6, %7, %8 : vector<16x16x128xi1>, vector<16x16x128xf32>
    %10 = arith.truncf %9 : vector<16x16x128xf32> to vector<16x16x128xbf16>
    %11 = vector.shape_cast %10 : vector<16x16x128xbf16> to vector<256x128xbf16>
    %c0_4 = arith.constant 0 : index
    %c0_5 = arith.constant 0 : index
    %12 = vector.load %arg3[%c0_4, %c0_5] : memref<128x1024xbf16, #tpu.memory_space<vmem>>, vector<128x1024xbf16>
    %cst_6 = arith.constant dense<0.000000e+00> : vector<256x1024xf32>
    %13 = tpu.matmul %11, %12, %cst_6 {dimension_numbers = #tpu.dot_dimension_numbers<[1], [0], [0], [1], [0, 0, 1, 1], [], []>} : vector<256x128xbf16>, vector<128x1024xbf16>, vector<256x1024xf32> -> vector<256x1024xf32>
    %c0_7 = arith.constant 0 : index
    %c0_8 = arith.constant 0 : index
    %14 = vector.load %arg5[%c0_7, %c0_8] : memref<1x1024xf32, #tpu.memory_space<vmem>>, vector<1x1024xf32>
    %15 = vector.broadcast %14 : vector<1x1024xf32> to vector<256x1024xf32>
    %16 = arith.addf %13, %15 : vector<256x1024xf32>
    %17 = vector.shape_cast %16 : vector<256x1024xf32> to vector<16x16x1024xf32>
    %c0_9 = arith.constant 0 : index
    %c0_10 = arith.constant 0 : index
    %c0_11 = arith.constant 0 : index
    %18 = vector.load %arg15[%c0_9, %c0_10, %c0_11] : memref<16x16x1024xf32, #tpu.memory_space<vmem>>, vector<16x16x1024xf32>
    tpu.vector_store %arg15[%c0_9, %c0_10, %c0_11], %17 {strides = array<i32>} : memref<16x16x1024xf32, #tpu.memory_space<vmem>>, vector<16x16x1024xf32>,
    %c0_12 = arith.constant 0 : index
    %c0_13 = arith.constant 0 : index
    %19 = vector.load %arg4[%c0_12, %c0_13] : memref<256x1024xbf16, #tpu.memory_space<vmem>>, vector<256x1024xbf16>
    %c16_i32 = arith.constant 16 : i32
    %20 = arith.muli %arg1, %c16_i32 : i32
    %c20_i32 = arith.constant 20 : i32
    %21 = arith.subi %c20_i32, %20 : i32
    %c16_i32_14 = arith.constant 16 : i32
    %22 = arith.minsi %c16_i32_14, %21 : i32
    %c0_i32_15 = arith.constant 0 : i32
    %c0_i32_16 = arith.constant 0 : i32
    %23 = arith.subi %22, %c0_i32_16 : i32
    %24 = arith.addi %c0_i32_16, %23 : i32
    %c1_i32 = arith.constant 1 : i32
    scf.for %arg16 = %c0_i32_16 to %24 step %c1_i32  : i32 {
      %c0_19 = arith.constant 0 : index
      %c0_20 = arith.constant 0 : index
      %28 = vector.load %arg13[%c0_19, %c0_20] : memref<16x256xf32, #tpu.memory_space<vmem>>, vector<16x256xf32>
      %c0_21 = arith.constant 0 : index
      %c0_22 = arith.constant 0 : index
      %29 = vector.load %arg14[%c0_21, %c0_22] : memref<16x256xf32, #tpu.memory_space<vmem>>, vector<16x256xf32>
      %30 = arith.index_cast %arg16 : i32 to index
      %c0_23 = arith.constant 0 : index
      %c0_24 = arith.constant 0 : index
      %31 = vector.load %arg15[%30, %c0_23, %c0_24] : memref<16x16x1024xf32, #tpu.memory_space<vmem>>, vector<1x16x1024xf32>
      %32 = vector.shape_cast %31 : vector<1x16x1024xf32> to vector<16x1024xf32>
      %33 = arith.truncf %28 : vector<16x256xf32> to vector<16x256xbf16>
      %cst_25 = arith.constant dense<0.000000e+00> : vector<16x1024xf32>
      %34 = tpu.matmul %33, %19, %cst_25 {dimension_numbers = #tpu.dot_dimension_numbers<[1], [0], [0], [1], [0, 0, 1, 1], [], []>} : vector<16x256xbf16>, vector<256x1024xbf16>, vector<16x1024xf32> -> vector<16x1024xf32>
      %35 = arith.addf %32, %34 : vector<16x1024xf32>
      %36 = vector.extract_strided_slice %35 {offsets = [0, 0], sizes = [16, 256], strides = [1, 1]} : vector<16x1024xf32> to vector<16x256xf32>
      %cst_26 = arith.constant 5.000000e-01 : f32
      %37 = vector.broadcast %cst_26 : f32 to vector<16x256xf32>
      %38 = arith.mulf %37, %36 : vector<16x256xf32>
      %39 = math.tanh %38 : vector<16x256xf32>
      %cst_27 = arith.constant 5.000000e-01 : f32
      %40 = vector.broadcast %cst_27 : f32 to vector<16x256xf32>
      %41 = arith.mulf %40, %39 : vector<16x256xf32>
      %cst_28 = arith.constant 5.000000e-01 : f32
      %42 = vector.broadcast %cst_28 : f32 to vector<16x256xf32>
      %43 = arith.addf %41, %42 : vector<16x256xf32>
      %44 = vector.extract_strided_slice %35 {offsets = [0, 256], sizes = [16, 256], strides = [1, 1]} : vector<16x1024xf32> to vector<16x256xf32>
      %cst_29 = arith.constant 5.000000e-01 : f32
      %45 = vector.broadcast %cst_29 : f32 to vector<16x256xf32>
      %46 = arith.mulf %45, %44 : vector<16x256xf32>
      %47 = math.tanh %46 : vector<16x256xf32>
      %cst_30 = arith.constant 5.000000e-01 : f32
      %48 = vector.broadcast %cst_30 : f32 to vector<16x256xf32>
      %49 = arith.mulf %48, %47 : vector<16x256xf32>
      %cst_31 = arith.constant 5.000000e-01 : f32
      %50 = vector.broadcast %cst_31 : f32 to vector<16x256xf32>
      %51 = arith.addf %49, %50 : vector<16x256xf32>
      %52 = vector.extract_strided_slice %35 {offsets = [0, 512], sizes = [16, 256], strides = [1, 1]} : vector<16x1024xf32> to vector<16x256xf32>
      %53 = math.tanh %52 : vector<16x256xf32>
      %54 = vector.extract_strided_slice %35 {offsets = [0, 768], sizes = [16, 256], strides = [1, 1]} : vector<16x1024xf32> to vector<16x256xf32>
      %cst_32 = arith.constant 5.000000e-01 : f32
      %55 = vector.broadcast %cst_32 : f32 to vector<16x256xf32>
      %56 = arith.mulf %55, %54 : vector<16x256xf32>
      %57 = math.tanh %56 : vector<16x256xf32>
      %cst_33 = arith.constant 5.000000e-01 : f32
      %58 = vector.broadcast %cst_33 : f32 to vector<16x256xf32>
      %59 = arith.mulf %58, %57 : vector<16x256xf32>
      %cst_34 = arith.constant 5.000000e-01 : f32
      %60 = vector.broadcast %cst_34 : f32 to vector<16x256xf32>
      %61 = arith.addf %59, %60 : vector<16x256xf32>
      %62 = arith.mulf %51, %29 : vector<16x256xf32>
      %63 = arith.mulf %43, %53 : vector<16x256xf32>
      %64 = arith.addf %62, %63 : vector<16x256xf32>
      %c0_35 = arith.constant 0 : index
      %c0_36 = arith.constant 0 : index
      %65 = vector.load %arg14[%c0_35, %c0_36] : memref<16x256xf32, #tpu.memory_space<vmem>>, vector<16x256xf32>
      tpu.vector_store %arg14[%c0_35, %c0_36], %64 {strides = array<i32>} : memref<16x256xf32, #tpu.memory_space<vmem>>, vector<16x256xf32>,
      %66 = math.tanh %64 : vector<16x256xf32>
      %67 = arith.mulf %61, %66 : vector<16x256xf32>
      %c0_37 = arith.constant 0 : index
      %c0_38 = arith.constant 0 : index
      %68 = vector.load %arg13[%c0_37, %c0_38] : memref<16x256xf32, #tpu.memory_space<vmem>>, vector<16x256xf32>
      tpu.vector_store %arg13[%c0_37, %c0_38], %67 {strides = array<i32>} : memref<16x256xf32, #tpu.memory_space<vmem>>, vector<16x256xf32>,
    }
    %c1_i32_17 = arith.constant 1 : i32
    %25 = arith.cmpi eq, %arg1, %c1_i32_17 : i32
    %26 = arith.extui %25 : i1 to i32
    %c0_i32_18 = arith.constant 0 : i32
    %27 = arith.cmpi ne, %26, %c0_i32_18 : i32
    scf.if %27 {
      %c0_19 = arith.constant 0 : index
      %c0_20 = arith.constant 0 : index
      %28 = vector.load %arg13[%c0_19, %c0_20] : memref<16x256xf32, #tpu.memory_space<vmem>>, vector<16x256xf32>
      %29 = arith.truncf %28 : vector<16x256xf32> to vector<16x256xbf16>
      %c0_21 = arith.constant 0 : index
      %c0_22 = arith.constant 0 : index
      %30 = vector.load %arg6[%c0_21, %c0_22] : memref<256x1024xbf16, #tpu.memory_space<vmem>>, vector<256x1024xbf16>
      %cst_23 = arith.constant dense<0.000000e+00> : vector<16x1024xf32>
      %31 = tpu.matmul %29, %30, %cst_23 {dimension_numbers = #tpu.dot_dimension_numbers<[1], [0], [0], [1], [0, 0, 1, 1], [], []>} : vector<16x256xbf16>, vector<256x1024xbf16>, vector<16x1024xf32> -> vector<16x1024xf32>
      %c0_24 = arith.constant 0 : index
      %c0_25 = arith.constant 0 : index
      %32 = vector.load %arg7[%c0_24, %c0_25] : memref<1x1024xf32, #tpu.memory_space<vmem>>, vector<1x1024xf32>
      %33 = vector.broadcast %32 : vector<1x1024xf32> to vector<16x1024xf32>
      %34 = arith.addf %31, %33 : vector<16x1024xf32>
      %cst_26 = arith.constant 0.000000e+00 : f32
      %35 = vector.broadcast %cst_26 : f32 to vector<16x1024xf32>
      %36 = arith.maximumf %34, %35 : vector<16x1024xf32>
      %37 = arith.truncf %36 : vector<16x1024xf32> to vector<16x1024xbf16>
      %c0_27 = arith.constant 0 : index
      %c0_28 = arith.constant 0 : index
      %38 = vector.load %arg8[%c0_27, %c0_28] : memref<1024x512xbf16, #tpu.memory_space<vmem>>, vector<1024x512xbf16>
      %cst_29 = arith.constant dense<0.000000e+00> : vector<16x512xf32>
      %39 = tpu.matmul %37, %38, %cst_29 {dimension_numbers = #tpu.dot_dimension_numbers<[1], [0], [0], [1], [0, 0, 1, 1], [], []>} : vector<16x1024xbf16>, vector<1024x512xbf16>, vector<16x512xf32> -> vector<16x512xf32>
      %c0_30 = arith.constant 0 : index
      %c0_31 = arith.constant 0 : index
      %40 = vector.load %arg9[%c0_30, %c0_31] : memref<1x512xf32, #tpu.memory_space<vmem>>, vector<1x512xf32>
      %41 = vector.broadcast %40 : vector<1x512xf32> to vector<16x512xf32>
      %42 = arith.addf %39, %41 : vector<16x512xf32>
      %cst_32 = arith.constant 0.000000e+00 : f32
      %43 = vector.broadcast %cst_32 : f32 to vector<16x512xf32>
      %44 = arith.maximumf %42, %43 : vector<16x512xf32>
      %45 = arith.truncf %44 : vector<16x512xf32> to vector<16x512xbf16>
      %c0_33 = arith.constant 0 : index
      %c0_34 = arith.constant 0 : index
      %46 = vector.load %arg10[%c0_33, %c0_34] : memref<512x128xbf16, #tpu.memory_space<vmem>>, vector<512x128xbf16>
      %cst_35 = arith.constant dense<0.000000e+00> : vector<16x128xf32>
      %47 = tpu.matmul %45, %46, %cst_35 {dimension_numbers = #tpu.dot_dimension_numbers<[1], [0], [0], [1], [0, 0, 1, 1], [], []>} : vector<16x512xbf16>, vector<512x128xbf16>, vector<16x128xf32> -> vector<16x128xf32>
      %c0_36 = arith.constant 0 : index
      %c0_37 = arith.constant 0 : index
      %48 = vector.load %arg11[%c0_36, %c0_37] : memref<1x128xf32, #tpu.memory_space<vmem>>, vector<1x128xf32>
      %49 = vector.broadcast %48 : vector<1x128xf32> to vector<16x128xf32>
      %50 = arith.addf %47, %49 : vector<16x128xf32>
      %c0_38 = arith.constant 0 : index
      %c0_39 = arith.constant 0 : index
      %51 = vector.load %arg12[%c0_38, %c0_39] : memref<16x128xf32, #tpu.memory_space<vmem>>, vector<16x128xf32>
      tpu.vector_store %arg12[%c0_38, %c0_39], %50 {strides = array<i32>} : memref<16x128xf32, #tpu.memory_space<vmem>>, vector<16x128xf32>,
    } else {
    }
    return
  }
  func.func @transform_0(%arg0: i32, %arg1: i32) -> (i32, i32, i32) {
    %c0_i32 = arith.constant 0 : i32
    %c0_i32_0 = arith.constant 0 : i32
    return %arg1, %arg0, %c0_i32 : i32, i32, i32
  }
  func.func @transform_1(%arg0: i32, %arg1: i32) -> (i32, i32) {
    %c0_i32 = arith.constant 0 : i32
    %c0_i32_0 = arith.constant 0 : i32
    %c0_i32_1 = arith.constant 0 : i32
    return %c0_i32, %c0_i32_0 : i32, i32
  }
  func.func @transform_2(%arg0: i32, %arg1: i32) -> (i32, i32) {
    %c0_i32 = arith.constant 0 : i32
    %c0_i32_0 = arith.constant 0 : i32
    %c0_i32_1 = arith.constant 0 : i32
    return %c0_i32, %c0_i32_0 : i32, i32
  }
  func.func @transform_3(%arg0: i32, %arg1: i32) -> (i32, i32) {
    %c0_i32 = arith.constant 0 : i32
    %c0_i32_0 = arith.constant 0 : i32
    %c0_i32_1 = arith.constant 0 : i32
    return %c0_i32, %c0_i32_0 : i32, i32
  }
  func.func @transform_4(%arg0: i32, %arg1: i32) -> (i32, i32) {
    %c0_i32 = arith.constant 0 : i32
    %c0_i32_0 = arith.constant 0 : i32
    %c0_i32_1 = arith.constant 0 : i32
    return %c0_i32, %c0_i32_0 : i32, i32
  }
  func.func @transform_5(%arg0: i32, %arg1: i32) -> (i32, i32) {
    %c0_i32 = arith.constant 0 : i32
    %c0_i32_0 = arith.constant 0 : i32
    %c0_i32_1 = arith.constant 0 : i32
    return %c0_i32, %c0_i32_0 : i32, i32
  }
  func.func @transform_6(%arg0: i32, %arg1: i32) -> (i32, i32) {
    %c0_i32 = arith.constant 0 : i32
    %c0_i32_0 = arith.constant 0 : i32
    %c0_i32_1 = arith.constant 0 : i32
    return %c0_i32, %c0_i32_0 : i32, i32
  }
  func.func @transform_7(%arg0: i32, %arg1: i32) -> (i32, i32) {
    %c0_i32 = arith.constant 0 : i32
    %c0_i32_0 = arith.constant 0 : i32
    %c0_i32_1 = arith.constant 0 : i32
    return %c0_i32, %c0_i32_0 : i32, i32
  }
  func.func @transform_8(%arg0: i32, %arg1: i32) -> (i32, i32) {
    %c0_i32 = arith.constant 0 : i32
    %c0_i32_0 = arith.constant 0 : i32
    %c0_i32_1 = arith.constant 0 : i32
    return %c0_i32, %c0_i32_0 : i32, i32
  }
  func.func @transform_9(%arg0: i32, %arg1: i32) -> (i32, i32) {
    %c0_i32 = arith.constant 0 : i32
    %c0_i32_0 = arith.constant 0 : i32
    %c0_i32_1 = arith.constant 0 : i32
    return %c0_i32, %c0_i32_0 : i32, i32
  }
  func.func @transform_10(%arg0: i32, %arg1: i32) -> (i32, i32) {
    %c0_i32 = arith.constant 0 : i32
    %c0_i32_0 = arith.constant 0 : i32
    return %arg0, %c0_i32 : i32, i32
  }
}

</mosaic_0001>

<llo_original>
// kernel: tpu_custom_call.1
$region0: #{tpu_custom_call.1}
  #allocation0 [shape = 'u32[]', space=smem, size = 0x4, offset = 0x4, fixed_abs, tag = 'smem constant byte address 0x4 - core index']
  #allocation1 [shape = 'u32[144,128]{1,0:T(1,128)}', space=vmem, size = 0x12000, scoped, tag = 'internal scratch']
  #allocation2 [shape = 'f32[16,256]{1,0:T(8,128)}', space=vmem, size = 0x4000, scoped, tag = 'scratch operand']
  #allocation3 [shape = 'f32[16,256]{1,0:T(8,128)}', space=vmem, size = 0x4000, scoped, tag = 'scratch operand']
  #allocation4 [shape = 'f32[16,16,1024]{2,1,0:T(8,128)}', space=vmem, size = 0x100000, scoped, tag = 'scratch operand']
  %s0 = inlined_call_operand.vmem [shape: s32[32,16,1], index: 0, kind: input, shape index: {}]
  %s1 = inlined_call_operand.vmem [shape: bf16[128,1024], index: 1, kind: input, shape index: {}]
  %s2 = inlined_call_operand.hbm [shape: bf16[256,1024], index: 2, kind: input, shape index: {}]
  %s3 = inlined_call_operand.vmem [shape: f32[1,1024], index: 3, kind: input, shape index: {}]
  %s4 = inlined_call_operand.hbm [shape: bf16[256,1024], index: 4, kind: input, shape index: {}]
  %s5 = inlined_call_operand.vmem [shape: f32[1,1024], index: 5, kind: input, shape index: {}]
  %s6 = inlined_call_operand.hbm [shape: bf16[1024,512], index: 6, kind: input, shape index: {}]
  %s7 = inlined_call_operand.vmem [shape: f32[1,512], index: 7, kind: input, shape index: {}]
  %s8 = inlined_call_operand.hbm [shape: bf16[512,128], index: 8, kind: input, shape index: {}]
  %s9 = inlined_call_operand.vmem [shape: f32[1,128], index: 9, kind: input, shape index: {}]
  %s10 = inlined_call_operand.hbm [shape: f32[16,128], index: 10, kind: output, shape index: {}]
  %s11 = sld [smem:[#allocation0]]
  $region104: #{tpu_custom_call.1} parent=0
    _
  %s13 = ssub.s32 1, %s11
  %s14 = scalar_select 0, %s13, %s11
  $region1: #{tpu_custom_call.1} parent=0
    #allocation5 [shape = 'u8[524288]{0}', space=vmem, size = 0x80000, scoped, tag = 'input window, operand 2, single buffered']
    #allocation6 [shape = 's32[2]{0}', space=sflag, size = 0x8, scoped, tag = 'scoped memory for tpu_custom_call.1']
    #allocation7 [shape = 's32[2]{0}', space=sflag, size = 0x8, scoped, tag = 'scoped memory for tpu_custom_call.1']
    #allocation8 [shape = 'u8[524288]{0}', space=vmem, size = 0x80000, scoped, tag = 'input window, operand 4, single buffered']
    #allocation9 [shape = 's32[1]{0}', space=sflag, size = 0x4, scoped, tag = 'scoped memory for tpu_custom_call.1']
    #allocation10 [shape = 'u8[1048576]{0}', space=vmem, size = 0x100000, scoped, tag = 'input window, operand 6, single buffered']
    #allocation11 [shape = 'u8[131072]{0}', space=vmem, size = 0x20000, scoped, tag = 'input window, operand 8, single buffered']
    #allocation12 [shape = 's32[1]{0}', space=sflag, size = 0x4, scoped, tag = 'scoped memory for tpu_custom_call.1']
    #allocation13 [shape = 'u8[8192]{0}', space=vmem, size = 0x2000, scoped, tag = 'output window, operand 0, single buffered']
    %15 = vsyncpa [#allocation6], 0
    %16 = vsyncpa [#allocation9], 0
    %17 = vsyncpa [#allocation12], 0
    %18 = vsyncpa [#allocation7], 0
    loop: start=0, step=1, limit=4
    $region2: #{tpu_custom_call.1} parent=1 // loop_pre_header
      _
    $region3: #{tpu_custom_call.1} parent=1 // loop_header
      %s20 = sphi 0, %s24
      %p21 = scmp.ge.s32.totalorder %s20, 4
      %s27 = sphi 0, %s39
      %s28 = sphi 0, %s35
      %s29 = sphi 0, %s27
      %s30 = sphi 0, %s28
      %s31 = sphi 0, %s29
      %s32 = sphi 0, %s30
      %s44 = sphi 0, %s46
      %s47 = sphi 0, %s44
      %s48 = sphi 0, %s47
      %s64 = sphi 0, %s48
      %s68 = sphi 0, %s68
      %s70 = sphi 0, %s68
      %s71 = sphi 0, %s70
      %s85 = sphi 0, %s71
      %s89 = sphi 0, %s89
      %s91 = sphi 0, %s89
      %s92 = sphi 0, %s91
      %s106 = sphi 0, %s92
      %s110 = sphi 0, %s110
      %s112 = sphi 0, %s110
      %s113 = sphi 0, %s112
      %s127 = sphi 0, %s113
      %s131 = sphi 0, %s131
      %s133 = sphi 0, %s131
      %s134 = sphi 0, %s133
      %s148 = sphi 0, %s134
      %s152 = sphi 0, %s152
      %s154 = sphi 0, %s152
      %s155 = sphi 0, %s154
      %s169 = sphi 0, %s155
      %s173 = sphi 0, %s173
      %s175 = sphi 0, %s173
      %s176 = sphi 0, %s175
      %s190 = sphi 0, %s176
      %s194 = sphi 0, %s194
      %s196 = sphi 0, %s194
      %s197 = sphi 0, %s196
      %s211 = sphi 0, %s197
      %s215 = sphi 0, %s215
      %s217 = sphi 0, %s215
      %s218 = sphi 0, %s217
      %s232 = sphi 0, %s218
      %s236 = sphi 0, %s236
      %s238 = sphi 0, %s236
      %s239 = sphi 0, %s238
      %s253 = sphi 0, %s239
      %s259 = sphi 0, %s261
      %s262 = sphi 0, %s259
      %s263 = sphi 0, %s262
      %s279 = sphi 0, %s263
    $region4: #{tpu_custom_call.1} parent=1 // loop_header_branch
      %23 = sbr.rel (%p21) target = $region8
    $region5: #{tpu_custom_call.1} parent=1 // loop_body
      %s25 = ssub.s32 %s20, 1
      %s26 = ssub.s32 %s20, 2
      %s33 = sadd.s32 1, %s28
      %p34 = scmp.ge.s32.totalorder %s33, 2
      %s35 = scalar_select %p34, 0, %s33
      %s36 = sadd.s32 1, %s27
      %s37 = scalar_select %p34, %s36, %s27
      %p38 = scmp.ge.s32.totalorder %s37, 1
      %s39 = scalar_select %p38, 0, %s37
      %s40 = ssub.s32 %s28, %s35
      %s41 = ssub.s32 %s27, %s39
      %s42 = sor.u32 %s40, %s41
      %p43 = scmp.eq.s32.totalorder %s42, 0
      %s45 = sadd.s32 %s44, 1
      %s46 = scalar_select %p43, %s44, %s45
      %p49 = pneg %p43
      %p50 = scmp.eq.s32.totalorder %s20, 1
      %p51 = por %p49, %p50
      %p52 = scmp.ne.s32.totalorder %s44, %s47
      %p53 = scmp.eq.s32.totalorder %s20, 0
      %p54 = por %p52, %p53
      %p55 = scmp.ne.s32.totalorder %s44, %s47
      %p56 = scmp.eq.s32.totalorder %s25, 1
      %p57 = por %p55, %p56
      %p58 = scmp.ne.s32.totalorder %s47, %s48
      %p59 = scmp.eq.s32.totalorder %s25, 0
      %p60 = por %p58, %p59
      %p61 = scmp.ne.s32.totalorder %s47, %s48
      %p62 = scmp.eq.s32.totalorder %s26, 1
      %p63 = por %p61, %p62
      %p65 = scmp.ne.s32.totalorder %s48, %s64
      %p66 = scmp.eq.s32.totalorder %s26, 0
      %p67 = por %p65, %p66
      %s69 = sadd.s32 %s68, 1
      %p72 = scmp.eq.s32.totalorder %s20, 1
      %p73 = scmp.ne.s32.totalorder %s68, %s70
      %p74 = scmp.eq.s32.totalorder %s20, 0
      %p75 = por %p73, %p74
      %p76 = scmp.ne.s32.totalorder %s68, %s70
      %p77 = scmp.eq.s32.totalorder %s25, 1
      %p78 = por %p76, %p77
      %p79 = scmp.ne.s32.totalorder %s70, %s71
      %p80 = scmp.eq.s32.totalorder %s25, 0
      %p81 = por %p79, %p80
      %p82 = scmp.ne.s32.totalorder %s70, %s71
      %p83 = scmp.eq.s32.totalorder %s26, 1
      %p84 = por %p82, %p83
      %p86 = scmp.ne.s32.totalorder %s71, %s85
      %p87 = scmp.eq.s32.totalorder %s26, 0
      %p88 = por %p86, %p87
      %s90 = sadd.s32 %s89, 1
      %p93 = scmp.eq.s32.totalorder %s20, 1
      %p94 = scmp.ne.s32.totalorder %s89, %s91
      %p95 = scmp.eq.s32.totalorder %s20, 0
      %p96 = por %p94, %p95
      %p97 = scmp.ne.s32.totalorder %s89, %s91
      %p98 = scmp.eq.s32.totalorder %s25, 1
      %p99 = por %p97, %p98
      %p100 = scmp.ne.s32.totalorder %s91, %s92
      %p101 = scmp.eq.s32.totalorder %s25, 0
      %p102 = por %p100, %p101
      %p103 = scmp.ne.s32.totalorder %s91, %s92
      %p104 = scmp.eq.s32.totalorder %s26, 1
      %p105 = por %p103, %p104
      %p107 = scmp.ne.s32.totalorder %s92, %s106
      %p108 = scmp.eq.s32.totalorder %s26, 0
      %p109 = por %p107, %p108
      %s111 = sadd.s32 %s110, 1
      %p114 = scmp.eq.s32.totalorder %s20, 1
      %p115 = scmp.ne.s32.totalorder %s110, %s112
      %p116 = scmp.eq.s32.totalorder %s20, 0
      %p117 = por %p115, %p116
      %p118 = scmp.ne.s32.totalorder %s110, %s112
      %p119 = scmp.eq.s32.totalorder %s25, 1
      %p120 = por %p118, %p119
      %p121 = scmp.ne.s32.totalorder %s112, %s113
      %p122 = scmp.eq.s32.totalorder %s25, 0
      %p123 = por %p121, %p122
      %p124 = scmp.ne.s32.totalorder %s112, %s113
      %p125 = scmp.eq.s32.totalorder %s26, 1
      %p126 = por %p124, %p125
      %p128 = scmp.ne.s32.totalorder %s113, %s127
      %p129 = scmp.eq.s32.totalorder %s26, 0
      %p130 = por %p128, %p129
      %s132 = sadd.s32 %s131, 1
      %p135 = scmp.eq.s32.totalorder %s20, 1
      %p136 = scmp.ne.s32.totalorder %s131, %s133
      %p137 = scmp.eq.s32.totalorder %s20, 0
      %p138 = por %p136, %p137
      %p139 = scmp.ne.s32.totalorder %s131, %s133
      %p140 = scmp.eq.s32.totalorder %s25, 1
      %p141 = por %p139, %p140
      %p142 = scmp.ne.s32.totalorder %s133, %s134
      %p143 = scmp.eq.s32.totalorder %s25, 0
      %p144 = por %p142, %p143
      %p145 = scmp.ne.s32.totalorder %s133, %s134
      %p146 = scmp.eq.s32.totalorder %s26, 1
      %p147 = por %p145, %p146
      %p149 = scmp.ne.s32.totalorder %s134, %s148
      %p150 = scmp.eq.s32.totalorder %s26, 0
      %p151 = por %p149, %p150
      %s153 = sadd.s32 %s152, 1
      %p156 = scmp.eq.s32.totalorder %s20, 1
      %p157 = scmp.ne.s32.totalorder %s152, %s154
      %p158 = scmp.eq.s32.totalorder %s20, 0
      %p159 = por %p157, %p158
      %p160 = scmp.ne.s32.totalorder %s152, %s154
      %p161 = scmp.eq.s32.totalorder %s25, 1
      %p162 = por %p160, %p161
      %p163 = scmp.ne.s32.totalorder %s154, %s155
      %p164 = scmp.eq.s32.totalorder %s25, 0
      %p165 = por %p163, %p164
      %p166 = scmp.ne.s32.totalorder %s154, %s155
      %p167 = scmp.eq.s32.totalorder %s26, 1
      %p168 = por %p166, %p167
      %p170 = scmp.ne.s32.totalorder %s155, %s169
      %p171 = scmp.eq.s32.totalorder %s26, 0
      %p172 = por %p170, %p171
      %s174 = sadd.s32 %s173, 1
      %p177 = scmp.eq.s32.totalorder %s20, 1
      %p178 = scmp.ne.s32.totalorder %s173, %s175
      %p179 = scmp.eq.s32.totalorder %s20, 0
      %p180 = por %p178, %p179
      %p181 = scmp.ne.s32.totalorder %s173, %s175
      %p182 = scmp.eq.s32.totalorder %s25, 1
      %p183 = por %p181, %p182
      %p184 = scmp.ne.s32.totalorder %s175, %s176
      %p185 = scmp.eq.s32.totalorder %s25, 0
      %p186 = por %p184, %p185
      %p187 = scmp.ne.s32.totalorder %s175, %s176
      %p188 = scmp.eq.s32.totalorder %s26, 1
      %p189 = por %p187, %p188
      %p191 = scmp.ne.s32.totalorder %s176, %s190
      %p192 = scmp.eq.s32.totalorder %s26, 0
      %p193 = por %p191, %p192
      %s195 = sadd.s32 %s194, 1
      %p198 = scmp.eq.s32.totalorder %s20, 1
      %p199 = scmp.ne.s32.totalorder %s194, %s196
      %p200 = scmp.eq.s32.totalorder %s20, 0
      %p201 = por %p199, %p200
      %p202 = scmp.ne.s32.totalorder %s194, %s196
      %p203 = scmp.eq.s32.totalorder %s25, 1
      %p204 = por %p202, %p203
      %p205 = scmp.ne.s32.totalorder %s196, %s197
      %p206 = scmp.eq.s32.totalorder %s25, 0
      %p207 = por %p205, %p206
      %p208 = scmp.ne.s32.totalorder %s196, %s197
      %p209 = scmp.eq.s32.totalorder %s26, 1
      %p210 = por %p208, %p209
      %p212 = scmp.ne.s32.totalorder %s197, %s211
      %p213 = scmp.eq.s32.totalorder %s26, 0
      %p214 = por %p212, %p213
      %s216 = sadd.s32 %s215, 1
      %p219 = scmp.eq.s32.totalorder %s20, 1
      %p220 = scmp.ne.s32.totalorder %s215, %s217
      %p221 = scmp.eq.s32.totalorder %s20, 0
      %p222 = por %p220, %p221
      %p223 = scmp.ne.s32.totalorder %s215, %s217
      %p224 = scmp.eq.s32.totalorder %s25, 1
      %p225 = por %p223, %p224
      %p226 = scmp.ne.s32.totalorder %s217, %s218
      %p227 = scmp.eq.s32.totalorder %s25, 0
      %p228 = por %p226, %p227
      %p229 = scmp.ne.s32.totalorder %s217, %s218
      %p230 = scmp.eq.s32.totalorder %s26, 1
      %p231 = por %p229, %p230
      %p233 = scmp.ne.s32.totalorder %s218, %s232
      %p234 = scmp.eq.s32.totalorder %s26, 0
      %p235 = por %p233, %p234
      %s237 = sadd.s32 %s236, 1
      %p240 = scmp.eq.s32.totalorder %s20, 1
      %p241 = scmp.ne.s32.totalorder %s236, %s238
      %p242 = scmp.eq.s32.totalorder %s20, 0
      %p243 = por %p241, %p242
      %p244 = scmp.ne.s32.totalorder %s236, %s238
      %p245 = scmp.eq.s32.totalorder %s25, 1
      %p246 = por %p244, %p245
      %p247 = scmp.ne.s32.totalorder %s238, %s239
      %p248 = scmp.eq.s32.totalorder %s25, 0
      %p249 = por %p247, %p248
      %p250 = scmp.ne.s32.totalorder %s238, %s239
      %p251 = scmp.eq.s32.totalorder %s26, 1
      %p252 = por %p250, %p251
      %p254 = scmp.ne.s32.totalorder %s239, %s253
      %p255 = scmp.eq.s32.totalorder %s26, 0
      %p256 = por %p254, %p255
      %s257 = ssub.s32 %s27, %s39
      %p258 = scmp.eq.s32.totalorder %s257, 0
      %s260 = sadd.s32 %s259, 1
      %s261 = scalar_select %p258, %s259, %s260
      %p264 = pneg %p258
      %p265 = scmp.eq.s32.totalorder %s20, 1
      %p266 = por %p264, %p265
      %p267 = scmp.ne.s32.totalorder %s259, %s262
      %p268 = scmp.eq.s32.totalorder %s20, 0
      %p269 = por %p267, %p268
      %p270 = scmp.ne.s32.totalorder %s259, %s262
      %p271 = scmp.eq.s32.totalorder %s25, 1
      %p272 = por %p270, %p271
      %p273 = scmp.ne.s32.totalorder %s262, %s263
      %p274 = scmp.eq.s32.totalorder %s25, 0
      %p275 = por %p273, %p274
      %p276 = scmp.ne.s32.totalorder %s262, %s263
      %p277 = scmp.eq.s32.totalorder %s26, 1
      %p278 = por %p276, %p277
      %p280 = scmp.ne.s32.totalorder %s263, %s279
      %p281 = scmp.eq.s32.totalorder %s26, 0
      %p282 = por %p280, %p281
      %p283 = scmp.le.s32.totalorder 1, %s20
      %p284 = scmp.lt.s32.totalorder %s20, 3
      %p285 = pnand %p283, %p284
      %p286 = pneg %p285
      // Predicated region
      $region9: #{tpu_custom_call.1} parent=5 // pred_check
        _
      $region10: #{tpu_custom_call.1} parent=5 // pred_check_branch
        %288 = sbr.rel (%p285) target = $region12
      $region11: #{tpu_custom_call.1} parent=5 // pred_region
        %s289 = ssub.s32 %s20, 1
        // Predicated region
        $region13: #{tpu_custom_call.1} parent=11 // pred_check
          %p290 = pneg %p81
        $region14: #{tpu_custom_call.1} parent=11 // pred_check_branch
          %292 = sbr.rel (%p290) target = $region16
        $region15: #{tpu_custom_call.1} parent=11 // pred_region
          _
        $region16: #{tpu_custom_call.1} parent=11 // pred_fallthru
          _
        // Predicated region
        $region17: #{tpu_custom_call.1} parent=11 // pred_check
          %p293 = pneg %p102
        $region18: #{tpu_custom_call.1} parent=11 // pred_check_branch
          %295 = sbr.rel (%p293) target = $region20
        $region19: #{tpu_custom_call.1} parent=11 // pred_region
          %s297 = ssub.s32 16384, 16384
          %298 = vsyncadd [#allocation6], %s297
          %s299 = sshll.u32 [#allocation5], 4
          %s300 = int_to_ptr.vmem [resolvable:$true] %s299
          %305 = dma.hbm_to_vmem [thread:$0]  %s2, 16384, %s300, [#allocation6], 512, 512, 32
        $region20: #{tpu_custom_call.1} parent=11 // pred_fallthru
          _
        // Predicated region
        $region21: #{tpu_custom_call.1} parent=11 // pred_check
          %p306 = pneg %p123
        $region22: #{tpu_custom_call.1} parent=11 // pred_check_branch
          %308 = sbr.rel (%p306) target = $region24
        $region23: #{tpu_custom_call.1} parent=11 // pred_region
          _
        $region24: #{tpu_custom_call.1} parent=11 // pred_fallthru
          _
        // Predicated region
        $region25: #{tpu_custom_call.1} parent=11 // pred_check
          %p309 = pneg %p144
        $region26: #{tpu_custom_call.1} parent=11 // pred_check_branch
          %311 = sbr.rel (%p309) target = $region28
        $region27: #{tpu_custom_call.1} parent=11 // pred_region
          %s313 = ssub.s32 16384, 16384
          %314 = vsyncadd [#allocation9], %s313
          %s315 = sshll.u32 [#allocation8], 4
          %s316 = int_to_ptr.vmem [resolvable:$true] %s315
          %321 = dma.hbm_to_vmem [thread:$0]  %s4, 16384, %s316, [#allocation9], 512, 512, 32
        $region28: #{tpu_custom_call.1} parent=11 // pred_fallthru
          _
        // Predicated region
        $region29: #{tpu_custom_call.1} parent=11 // pred_check
          %p322 = pneg %p165
        $region30: #{tpu_custom_call.1} parent=11 // pred_check_branch
          %324 = sbr.rel (%p322) target = $region32
        $region31: #{tpu_custom_call.1} parent=11 // pred_region
          _
        $region32: #{tpu_custom_call.1} parent=11 // pred_fallthru
          _
        // Predicated region
        $region33: #{tpu_custom_call.1} parent=11 // pred_check
          %p325 = pneg %p186
        $region34: #{tpu_custom_call.1} parent=11 // pred_check_branch
          %327 = sbr.rel (%p325) target = $region36
        $region35: #{tpu_custom_call.1} parent=11 // pred_region
          %s329 = ssub.s32 32768, 32768
          %330 = vsyncadd [#allocation9], %s329
          %s331 = sshll.u32 [#allocation10], 4
          %s332 = int_to_ptr.vmem [resolvable:$true] %s331
          %337 = dma.hbm_to_vmem [thread:$0]  %s6, 32768, %s332, [#allocation9], 256, 256, 16
        $region36: #{tpu_custom_call.1} parent=11 // pred_fallthru
          _
        // Predicated region
        $region37: #{tpu_custom_call.1} parent=11 // pred_check
          %p338 = pneg %p207
        $region38: #{tpu_custom_call.1} parent=11 // pred_check_branch
          %340 = sbr.rel (%p338) target = $region40
        $region39: #{tpu_custom_call.1} parent=11 // pred_region
          _
        $region40: #{tpu_custom_call.1} parent=11 // pred_fallthru
          _
        // Predicated region
        $region41: #{tpu_custom_call.1} parent=11 // pred_check
          %p341 = pneg %p228
        $region42: #{tpu_custom_call.1} parent=11 // pred_check_branch
          %343 = sbr.rel (%p341) target = $region44
        $region43: #{tpu_custom_call.1} parent=11 // pred_region
          %s345 = ssub.s32 4096, 4096
          %346 = vsyncadd [#allocation12], %s345
          %s347 = sshll.u32 [#allocation11], 4
          %s348 = int_to_ptr.vmem [resolvable:$true] %s347
          %353 = dma.hbm_to_vmem [thread:$0]  %s8, 4096, %s348, [#allocation12], 64, 64, 4
        $region44: #{tpu_custom_call.1} parent=11 // pred_fallthru
          _
        // Predicated region
        $region45: #{tpu_custom_call.1} parent=11 // pred_check
          %p354 = pneg %p249
        $region46: #{tpu_custom_call.1} parent=11 // pred_check_branch
          %356 = sbr.rel (%p354) target = $region48
        $region47: #{tpu_custom_call.1} parent=11 // pred_region
          _
        $region48: #{tpu_custom_call.1} parent=11 // pred_fallthru
          _
      $region12: #{tpu_custom_call.1} parent=5 // pred_fallthru
        _
      %p357 = scmp.lt.s32.totalorder %s20, 2
      // Predicated region
      $region49: #{tpu_custom_call.1} parent=5 // pred_check
        %p358 = pneg %p357
      $region50: #{tpu_custom_call.1} parent=5 // pred_check_branch
        %360 = sbr.rel (%p358) target = $region52
      $region51: #{tpu_custom_call.1} parent=5 // pred_region
        // Predicated region
        $region53: #{tpu_custom_call.1} parent=51 // pred_check
          %p361 = pneg %p54
        $region54: #{tpu_custom_call.1} parent=51 // pred_check_branch
          %363 = sbr.rel (%p361) target = $region56
        $region55: #{tpu_custom_call.1} parent=51 // pred_region
          %s364 = smul.u32 16, %s28
          %s365 = smul.u32 2, %s27
          %p366 = scmp.lt.s32.totalorder %s364, 31
          %s367 = scalar_select %p366, %s364, 31
          %p368 = scmp.lt.s32.totalorder %s365, 1
          %s369 = scalar_select %p368, %s365, 1
          %s370 = smul.addr %s367, 2
          %s371 = sadd.s32 %s369, %s370
          %s372 = smul.addr %s371, 8
          %s373 = scalar_lea.vmem %s0, %s372
          %s374 = smul.u32 16, %s28
          %s375 = smul.u32 2, %s27
        $region56: #{tpu_custom_call.1} parent=51 // pred_fallthru
          _
      $region52: #{tpu_custom_call.1} parent=5 // pred_fallthru
        _
      %p376 = scmp.le.s32.totalorder 1, %s20
      %p377 = scmp.lt.s32.totalorder %s20, 3
      %p378 = pnand %p376, %p377
      %p379 = pneg %p378
      // Predicated region
      $region57: #{tpu_custom_call.1} parent=5 // pred_check
        _
      $region58: #{tpu_custom_call.1} parent=5 // pred_check_branch
        %381 = sbr.rel (%p378) target = $region60
      $region59: #{tpu_custom_call.1} parent=5 // pred_region
        %s382 = ssub.s32 %s20, 1
        // Predicated region
        $region61: #{tpu_custom_call.1} parent=59 // pred_check
          %p383 = pneg %p102
        $region62: #{tpu_custom_call.1} parent=59 // pred_check_branch
          %385 = sbr.rel (%p383) target = $region64
        $region63: #{tpu_custom_call.1} parent=59 // pred_region
          %386 = dma.done [#allocation6], 16384
        $region64: #{tpu_custom_call.1} parent=59 // pred_fallthru
          _
        // Predicated region
        $region65: #{tpu_custom_call.1} parent=59 // pred_check
          %p387 = pneg %p144
        $region66: #{tpu_custom_call.1} parent=59 // pred_check_branch
          %389 = sbr.rel (%p387) target = $region68
        $region67: #{tpu_custom_call.1} parent=59 // pred_region
          %390 = dma.done [#allocation9], 16384
        $region68: #{tpu_custom_call.1} parent=59 // pred_fallthru
          _
        // Predicated region
        $region69: #{tpu_custom_call.1} parent=59 // pred_check
          %p391 = pneg %p186
        $region70: #{tpu_custom_call.1} parent=59 // pred_check_branch
          %393 = sbr.rel (%p391) target = $region72
        $region71: #{tpu_custom_call.1} parent=59 // pred_region
          %394 = dma.done [#allocation9], 32768
        $region72: #{tpu_custom_call.1} parent=59 // pred_fallthru
          _
        // Predicated region
        $region73: #{tpu_custom_call.1} parent=59 // pred_check
          %p395 = pneg %p228
        $region74: #{tpu_custom_call.1} parent=59 // pred_check_branch
          %397 = sbr.rel (%p395) target = $region76
        $region75: #{tpu_custom_call.1} parent=59 // pred_region
          %398 = dma.done [#allocation12], 4096
        $region76: #{tpu_custom_call.1} parent=59 // pred_fallthru
          _
        %s399 = smul.u32 16, %s30
        %s400 = smul.u32 2, %s29
        %p401 = scmp.lt.s32.totalorder %s399, 31
        %s402 = scalar_select %p401, %s399, 31
        %p403 = scmp.lt.s32.totalorder %s400, 1
        %s404 = scalar_select %p403, %s400, 1
        %s405 = smul.addr %s402, 2
        %s406 = sadd.s32 %s404, %s405
        %s407 = smul.addr %s406, 8
        %s408 = scalar_lea.vmem %s0, %s407
        %p409 = pneg %p60
        %p410 = pneg %p57
        %p411 = pneg %p81
        %p412 = pneg %p78
        %p413 = pneg %p102
        %p414 = pneg %p99
        %p415 = pneg %p123
        %p416 = pneg %p120
        %p417 = pneg %p144
        %p418 = pneg %p141
        %p419 = pneg %p165
        %p420 = pneg %p162
        %p421 = pneg %p186
        %p422 = pneg %p183
        %p423 = pneg %p207
        %p424 = pneg %p204
        %p425 = pneg %p228
        %p426 = pneg %p225
        %p427 = pneg %p249
        %p428 = pneg %p246
        %p429 = pneg %p275
        %p430 = pneg %p272
        %s431 = smul.u32 16, %s30
        %s432 = smul.u32 2, %s29
        %p433 = scmp.lt.s32.totalorder %s431, 31
        %s434 = scalar_select %p433, %s431, 31
        %p435 = scmp.lt.s32.totalorder %s432, 1
        %s436 = scalar_select %p435, %s432, 1
        %s437 = smul.addr %s434, 2
        %s438 = sadd.s32 %s436, %s437
        %s439 = smul.addr %s438, 8
        %s440 = scalar_lea.vmem %s0, %s439
        %s441 = smul.u32 16, %s30
        %s442 = smul.u32 2, %s29
        %s443 = smul.u32 2, %s29
        %p445 = scmp.eq.s32.totalorder %s30, 0
        // Predicated region
        $region77: #{tpu_custom_call.1} parent=59 // pred_check
          %p446 = pneg %p445
        $region78: #{tpu_custom_call.1} parent=59 // pred_check_branch
          %448 = sbr.rel (%p446) target = $region80
        $region79: #{tpu_custom_call.1} parent=59 // pred_region
          %449 = vst [vmem:[#allocation2] sm:$0xff] 0.0
          %450 = vst [vmem:[#allocation2 + $0x8] sm:$0xff] 0.0
          %451 = vst [vmem:[#allocation2 + $0x10] sm:$0xff] 0.0
          %452 = vst [vmem:[#allocation2 + $0x18] sm:$0xff] 0.0
          %453 = vst [vmem:[#allocation3] sm:$0xff] 0.0
          %454 = vst [vmem:[#allocation3 + $0x8] sm:$0xff] 0.0
          %455 = vst [vmem:[#allocation3 + $0x10] sm:$0xff] 0.0
          %456 = vst [vmem:[#allocation3 + $0x18] sm:$0xff] 0.0
        $region80: #{tpu_custom_call.1} parent=59 // pred_fallthru
          _
        %v457 = vld [vmem:[%s440] sm:$0xff]
        %v458 = vld [vmem:[%s440 + $0x8] sm:$0xff]
        %v459 = vld [vmem:[%s440 + $0x10] sm:$0xff]
        %v460 = vld [vmem:[%s440 + $0x18] sm:$0xff]
        %v461 = vld [vmem:[%s440 + $0x20] sm:$0xff]
        %v462 = vld [vmem:[%s440 + $0x28] sm:$0xff]
        %v463 = vld [vmem:[%s440 + $0x30] sm:$0xff]
        %v464 = vld [vmem:[%s440 + $0x38] sm:$0xff]
        %v465 = vld [vmem:[%s440 + $0x40] sm:$0xff]
        %v466 = vld [vmem:[%s440 + $0x48] sm:$0xff]
        %v467 = vld [vmem:[%s440 + $0x50] sm:$0xff]
        %v468 = vld [vmem:[%s440 + $0x58] sm:$0xff]
        %v469 = vld [vmem:[%s440 + $0x60] sm:$0xff]
        %v470 = vld [vmem:[%s440 + $0x68] sm:$0xff]
        %v471 = vld [vmem:[%s440 + $0x70] sm:$0xff]
        %v472 = vld [vmem:[%s440 + $0x78] sm:$0xff]
        %v473 = vld [vmem:[%s440 + $0x80] sm:$0xff]
        %v474 = vld [vmem:[%s440 + $0x88] sm:$0xff]
        %v475 = vld [vmem:[%s440 + $0x90] sm:$0xff]
        %v476 = vld [vmem:[%s440 + $0x98] sm:$0xff]
        %v477 = vld [vmem:[%s440 + $0xa0] sm:$0xff]
        %v478 = vld [vmem:[%s440 + $0xa8] sm:$0xff]
        %v479 = vld [vmem:[%s440 + $0xb0] sm:$0xff]
        %v480 = vld [vmem:[%s440 + $0xb8] sm:$0xff]
        %v481 = vld [vmem:[%s440 + $0xc0] sm:$0xff]
        %v482 = vld [vmem:[%s440 + $0xc8] sm:$0xff]
        %v483 = vld [vmem:[%s440 + $0xd0] sm:$0xff]
        %v484 = vld [vmem:[%s440 + $0xd8] sm:$0xff]
        %v485 = vld [vmem:[%s440 + $0xe0] sm:$0xff]
        %v486 = vld [vmem:[%s440 + $0xe8] sm:$0xff]
        %v487 = vld [vmem:[%s440 + $0xf0] sm:$0xff]
        %v488 = vld [vmem:[%s440 + $0xf8] sm:$0xff]
        %v489 = vlaneseq
        %v490 = vand.u32 %v489, 127
        %491 = vset.pattern.permute.xlu0 0
        %492 = vperm.xlu0 %491, %v457
        %v493 = vpop.permute.xlu0 %492
        %494 = vset.pattern.permute.xlu0 0
        %495 = vperm.xlu0 %494, %v458
        %v496 = vpop.permute.xlu0 %495
        %497 = vset.pattern.permute.xlu0 0
        %498 = vperm.xlu0 %497, %v459
        %v499 = vpop.permute.xlu0 %498
        %500 = vset.pattern.permute.xlu0 0
        %501 = vperm.xlu0 %500, %v460
        %v502 = vpop.permute.xlu0 %501
        %503 = vset.pattern.permute.xlu0 0
        %504 = vperm.xlu0 %503, %v461
        %v505 = vpop.permute.xlu0 %504
        %506 = vset.pattern.permute.xlu0 0
        %507 = vperm.xlu0 %506, %v462
        %v508 = vpop.permute.xlu0 %507
        %509 = vset.pattern.permute.xlu0 0
        %510 = vperm.xlu0 %509, %v463
        %v511 = vpop.permute.xlu0 %510
        %512 = vset.pattern.permute.xlu0 0
        %513 = vperm.xlu0 %512, %v464
        %v514 = vpop.permute.xlu0 %513
        %515 = vset.pattern.permute.xlu0 0
        %516 = vperm.xlu0 %515, %v465
        %v517 = vpop.permute.xlu0 %516
        %518 = vset.pattern.permute.xlu0 0
        %519 = vperm.xlu0 %518, %v466
        %v520 = vpop.permute.xlu0 %519
        %521 = vset.pattern.permute.xlu0 0
        %522 = vperm.xlu0 %521, %v467
        %v523 = vpop.permute.xlu0 %522
        %524 = vset.pattern.permute.xlu0 0
        %525 = vperm.xlu0 %524, %v468
        %v526 = vpop.permute.xlu0 %525
        %527 = vset.pattern.permute.xlu0 0
        %528 = vperm.xlu0 %527, %v469
        %v529 = vpop.permute.xlu0 %528
        %530 = vset.pattern.permute.xlu0 0
        %531 = vperm.xlu0 %530, %v470
        %v532 = vpop.permute.xlu0 %531
        %533 = vset.pattern.permute.xlu0 0
        %534 = vperm.xlu0 %533, %v471
        %v535 = vpop.permute.xlu0 %534
        %536 = vset.pattern.permute.xlu0 0
        %537 = vperm.xlu0 %536, %v472
        %v538 = vpop.permute.xlu0 %537
        %539 = vset.pattern.permute.xlu0 0
        %540 = vperm.xlu0 %539, %v473
        %v541 = vpop.permute.xlu0 %540
        %542 = vset.pattern.permute.xlu0 0
        %543 = vperm.xlu0 %542, %v474
        %v544 = vpop.permute.xlu0 %543
        %545 = vset.pattern.permute.xlu0 0
        %546 = vperm.xlu0 %545, %v475
        %v547 = vpop.permute.xlu0 %546
        %548 = vset.pattern.permute.xlu0 0
        %549 = vperm.xlu0 %548, %v476
        %v550 = vpop.permute.xlu0 %549
        %551 = vset.pattern.permute.xlu0 0
        %552 = vperm.xlu0 %551, %v477
        %v553 = vpop.permute.xlu0 %552
        %554 = vset.pattern.permute.xlu0 0
        %555 = vperm.xlu0 %554, %v478
        %v556 = vpop.permute.xlu0 %555
        %557 = vset.pattern.permute.xlu0 0
        %558 = vperm.xlu0 %557, %v479
        %v559 = vpop.permute.xlu0 %558
        %560 = vset.pattern.permute.xlu0 0
        %561 = vperm.xlu0 %560, %v480
        %v562 = vpop.permute.xlu0 %561
        %563 = vset.pattern.permute.xlu0 0
        %564 = vperm.xlu0 %563, %v481
        %v565 = vpop.permute.xlu0 %564
        %566 = vset.pattern.permute.xlu0 0
        %567 = vperm.xlu0 %566, %v482
        %v568 = vpop.permute.xlu0 %567
        %569 = vset.pattern.permute.xlu0 0
        %570 = vperm.xlu0 %569, %v483
        %v571 = vpop.permute.xlu0 %570
        %572 = vset.pattern.permute.xlu0 0
        %573 = vperm.xlu0 %572, %v484
        %v574 = vpop.permute.xlu0 %573
        %575 = vset.pattern.permute.xlu0 0
        %576 = vperm.xlu0 %575, %v485
        %v577 = vpop.permute.xlu0 %576
        %578 = vset.pattern.permute.xlu0 0
        %579 = vperm.xlu0 %578, %v486
        %v580 = vpop.permute.xlu0 %579
        %581 = vset.pattern.permute.xlu0 0
        %582 = vperm.xlu0 %581, %v487
        %v583 = vpop.permute.xlu0 %582
        %584 = vset.pattern.permute.xlu0 0
        %585 = vperm.xlu0 %584, %v488
        %v586 = vpop.permute.xlu0 %585
        %vm587 = vcmp.eq.s32.totalorder %v493, %v490
        %vm588 = vcmp.eq.s32.totalorder %v496, %v490
        %vm589 = vcmp.eq.s32.totalorder %v499, %v490
        %vm590 = vcmp.eq.s32.totalorder %v502, %v490
        %vm591 = vcmp.eq.s32.totalorder %v505, %v490
        %vm592 = vcmp.eq.s32.totalorder %v508, %v490
        %vm593 = vcmp.eq.s32.totalorder %v511, %v490
        %vm594 = vcmp.eq.s32.totalorder %v514, %v490
        %vm595 = vcmp.eq.s32.totalorder %v517, %v490
        %vm596 = vcmp.eq.s32.totalorder %v520, %v490
        %vm597 = vcmp.eq.s32.totalorder %v523, %v490
        %vm598 = vcmp.eq.s32.totalorder %v526, %v490
        %vm599 = vcmp.eq.s32.totalorder %v529, %v490
        %vm600 = vcmp.eq.s32.totalorder %v532, %v490
        %vm601 = vcmp.eq.s32.totalorder %v535, %v490
        %vm602 = vcmp.eq.s32.totalorder %v538, %v490
        %vm603 = vcmp.eq.s32.totalorder %v541, %v490
        %vm604 = vcmp.eq.s32.totalorder %v544, %v490
        %vm605 = vcmp.eq.s32.totalorder %v547, %v490
        %vm606 = vcmp.eq.s32.totalorder %v550, %v490
        %vm607 = vcmp.eq.s32.totalorder %v553, %v490
        %vm608 = vcmp.eq.s32.totalorder %v556, %v490
        %vm609 = vcmp.eq.s32.totalorder %v559, %v490
        %vm610 = vcmp.eq.s32.totalorder %v562, %v490
        %vm611 = vcmp.eq.s32.totalorder %v565, %v490
        %vm612 = vcmp.eq.s32.totalorder %v568, %v490
        %vm613 = vcmp.eq.s32.totalorder %v571, %v490
        %vm614 = vcmp.eq.s32.totalorder %v574, %v490
        %vm615 = vcmp.eq.s32.totalorder %v577, %v490
        %vm616 = vcmp.eq.s32.totalorder %v580, %v490
        %vm617 = vcmp.eq.s32.totalorder %v583, %v490
        %vm618 = vcmp.eq.s32.totalorder %v586, %v490
        %v619 = vsel %vm587, 1.0, 0.0
        %v620 = vsel %vm588, 1.0, 0.0
        %v621 = vsel %vm589, 1.0, 0.0
        %v622 = vsel %vm590, 1.0, 0.0
        %v623 = vsel %vm591, 1.0, 0.0
        %v624 = vsel %vm592, 1.0, 0.0
        %v625 = vsel %vm593, 1.0, 0.0
        %v626 = vsel %vm594, 1.0, 0.0
        %v627 = vsel %vm595, 1.0, 0.0
        %v628 = vsel %vm596, 1.0, 0.0
        %v629 = vsel %vm597, 1.0, 0.0
        %v630 = vsel %vm598, 1.0, 0.0
        %v631 = vsel %vm599, 1.0, 0.0
        %v632 = vsel %vm600, 1.0, 0.0
        %v633 = vsel %vm601, 1.0, 0.0
        %v634 = vsel %vm602, 1.0, 0.0
        %v635 = vsel %vm603, 1.0, 0.0
        %v636 = vsel %vm604, 1.0, 0.0
        %v637 = vsel %vm605, 1.0, 0.0
        %v638 = vsel %vm606, 1.0, 0.0
        %v639 = vsel %vm607, 1.0, 0.0
        %v640 = vsel %vm608, 1.0, 0.0
        %v641 = vsel %vm609, 1.0, 0.0
        %v642 = vsel %vm610, 1.0, 0.0
        %v643 = vsel %vm611, 1.0, 0.0
        %v644 = vsel %vm612, 1.0, 0.0
        %v645 = vsel %vm613, 1.0, 0.0
        %v646 = vsel %vm614, 1.0, 0.0
        %v647 = vsel %vm615, 1.0, 0.0
        %v648 = vsel %vm616, 1.0, 0.0
        %v649 = vsel %vm617, 1.0, 0.0
        %v650 = vsel %vm618, 1.0, 0.0
        %v651 = vpack.c.bf16 %v620, %v619
        %v652 = vpack.c.bf16 %v622, %v621
        %v653 = vpack.c.bf16 %v624, %v623
        %v654 = vpack.c.bf16 %v626, %v625
        %v655 = vpack.c.bf16 %v628, %v627
        %v656 = vpack.c.bf16 %v630, %v629
        %v657 = vpack.c.bf16 %v632, %v631
        %v658 = vpack.c.bf16 %v634, %v633
        %v659 = vpack.c.bf16 %v636, %v635
        %v660 = vpack.c.bf16 %v638, %v637
        %v661 = vpack.c.bf16 %v640, %v639
        %v662 = vpack.c.bf16 %v642, %v641
        %v663 = vpack.c.bf16 %v644, %v643
        %v664 = vpack.c.bf16 %v646, %v645
        %v665 = vpack.c.bf16 %v648, %v647
        %v666 = vpack.c.bf16 %v650, %v649
        %v667 = vld [vmem:[%s1] sm:$0xff]
        %v668 = vld [vmem:[%s1 + $0x8] sm:$0xff]
        %v669 = vld [vmem:[%s1 + $0x10] sm:$0xff]
        %v670 = vld [vmem:[%s1 + $0x18] sm:$0xff]
        %v671 = vld [vmem:[%s1 + $0x20] sm:$0xff]
        %v672 = vld [vmem:[%s1 + $0x28] sm:$0xff]
        %v673 = vld [vmem:[%s1 + $0x30] sm:$0xff]
        %v674 = vld [vmem:[%s1 + $0x38] sm:$0xff]
        %v675 = vld [vmem:[%s1 + $0x40] sm:$0xff]
        %v676 = vld [vmem:[%s1 + $0x48] sm:$0xff]
        %v677 = vld [vmem:[%s1 + $0x50] sm:$0xff]
        %v678 = vld [vmem:[%s1 + $0x58] sm:$0xff]
        %v679 = vld [vmem:[%s1 + $0x60] sm:$0xff]
        %v680 = vld [vmem:[%s1 + $0x68] sm:$0xff]
        %v681 = vld [vmem:[%s1 + $0x70] sm:$0xff]
        %v682 = vld [vmem:[%s1 + $0x78] sm:$0xff]
        %v683 = vld [vmem:[%s1 + $0x80] sm:$0xff]
        %v684 = vld [vmem:[%s1 + $0x88] sm:$0xff]
        %v685 = vld [vmem:[%s1 + $0x90] sm:$0xff]
        %v686 = vld [vmem:[%s1 + $0x98] sm:$0xff]
        %v687 = vld [vmem:[%s1 + $0xa0] sm:$0xff]
        %v688 = vld [vmem:[%s1 + $0xa8] sm:$0xff]
        %v689 = vld [vmem:[%s1 + $0xb0] sm:$0xff]
        %v690 = vld [vmem:[%s1 + $0xb8] sm:$0xff]
        %v691 = vld [vmem:[%s1 + $0xc0] sm:$0xff]
        %v692 = vld [vmem:[%s1 + $0xc8] sm:$0xff]
        %v693 = vld [vmem:[%s1 + $0xd0] sm:$0xff]
        %v694 = vld [vmem:[%s1 + $0xd8] sm:$0xff]
        %v695 = vld [vmem:[%s1 + $0xe0] sm:$0xff]
        %v696 = vld [vmem:[%s1 + $0xe8] sm:$0xff]
        %v697 = vld [vmem:[%s1 + $0xf0] sm:$0xff]
        %v698 = vld [vmem:[%s1 + $0xf8] sm:$0xff]
        %v699 = vld [vmem:[%s1 + $0x100] sm:$0xff]
        %v700 = vld [vmem:[%s1 + $0x108] sm:$0xff]
        %v701 = vld [vmem:[%s1 + $0x110] sm:$0xff]
        %v702 = vld [vmem:[%s1 + $0x118] sm:$0xff]
        %v703 = vld [vmem:[%s1 + $0x120] sm:$0xff]
        %v704 = vld [vmem:[%s1 + $0x128] sm:$0xff]
        %v705 = vld [vmem:[%s1 + $0x130] sm:$0xff]
        %v706 = vld [vmem:[%s1 + $0x138] sm:$0xff]
        %v707 = vld [vmem:[%s1 + $0x140] sm:$0xff]
        %v708 = vld [vmem:[%s1 + $0x148] sm:$0xff]
        %v709 = vld [vmem:[%s1 + $0x150] sm:$0xff]
        %v710 = vld [vmem:[%s1 + $0x158] sm:$0xff]
        %v711 = vld [vmem:[%s1 + $0x160] sm:$0xff]
        %v712 = vld [vmem:[%s1 + $0x168] sm:$0xff]
        %v713 = vld [vmem:[%s1 + $0x170] sm:$0xff]
        %v714 = vld [vmem:[%s1 + $0x178] sm:$0xff]
        %v715 = vld [vmem:[%s1 + $0x180] sm:$0xff]
        %v716 = vld [vmem:[%s1 + $0x188] sm:$0xff]
        %v717 = vld [vmem:[%s1 + $0x190] sm:$0xff]
        %v718 = vld [vmem:[%s1 + $0x198] sm:$0xff]
        %v719 = vld [vmem:[%s1 + $0x1a0] sm:$0xff]
        %v720 = vld [vmem:[%s1 + $0x1a8] sm:$0xff]
        %v721 = vld [vmem:[%s1 + $0x1b0] sm:$0xff]
        %v722 = vld [vmem:[%s1 + $0x1b8] sm:$0xff]
        %v723 = vld [vmem:[%s1 + $0x1c0] sm:$0xff]
        %v724 = vld [vmem:[%s1 + $0x1c8] sm:$0xff]
        %v725 = vld [vmem:[%s1 + $0x1d0] sm:$0xff]
        %v726 = vld [vmem:[%s1 + $0x1d8] sm:$0xff]
        %v727 = vld [vmem:[%s1 + $0x1e0] sm:$0xff]
        %v728 = vld [vmem:[%s1 + $0x1e8] sm:$0xff]
        %v729 = vld [vmem:[%s1 + $0x1f0] sm:$0xff]
        %v730 = vld [vmem:[%s1 + $0x1f8] sm:$0xff]
        %v731 = vld [vmem:[%s3] sm:$0xff]
        %v733 = vlaneseq
        %v734 = vshrl.u32 %v733, 7
        %v735 = vsub.s32 0, %v734
        %v736 = vrot.slane %v731, %v735
        %v737 = vlaneseq
        %v738 = vshrl.u32 %v737, 7
        %v739 = vsub.s32 1, %v738
        %v740 = vrot.slane %v731, %v739
        %v741 = vlaneseq
        %v742 = vshrl.u32 %v741, 7
        %v743 = vsub.s32 2, %v742
        %v744 = vrot.slane %v731, %v743
        %v745 = vlaneseq
        %v746 = vshrl.u32 %v745, 7
        %v747 = vsub.s32 3, %v746
        %v748 = vrot.slane %v731, %v747
        %v749 = vlaneseq
        %v750 = vshrl.u32 %v749, 7
        %v751 = vsub.s32 4, %v750
        %v752 = vrot.slane %v731, %v751
        %v753 = vlaneseq
        %v754 = vshrl.u32 %v753, 7
        %v755 = vsub.s32 5, %v754
        %v756 = vrot.slane %v731, %v755
        %v757 = vlaneseq
        %v758 = vshrl.u32 %v757, 7
        %v759 = vsub.s32 6, %v758
        %v760 = vrot.slane %v731, %v759
        %v761 = vlaneseq
        %v762 = vshrl.u32 %v761, 7
        %v763 = vsub.s32 7, %v762
        %v764 = vrot.slane %v731, %v763
        %v837 = vunpack.c.l.b16 %v667
        %v838 = vunpack.c.h.b16 %v667
        %v839 = vunpack.c.l.b16 %v668
        %v840 = vunpack.c.h.b16 %v668
        %v841 = vunpack.c.l.b16 %v669
        %v842 = vunpack.c.h.b16 %v669
        %v843 = vunpack.c.l.b16 %v670
        %v844 = vunpack.c.h.b16 %v670
        %v845 = vunpack.c.l.b16 %v671
        %v846 = vunpack.c.h.b16 %v671
        %v847 = vunpack.c.l.b16 %v672
        %v848 = vunpack.c.h.b16 %v672
        %v849 = vunpack.c.l.b16 %v673
        %v850 = vunpack.c.h.b16 %v673
        %v851 = vunpack.c.l.b16 %v674
        %v852 = vunpack.c.h.b16 %v674
        %v853 = vunpack.c.l.b16 %v675
        %v854 = vunpack.c.h.b16 %v675
        %v855 = vunpack.c.l.b16 %v676
        %v856 = vunpack.c.h.b16 %v676
        %v857 = vunpack.c.l.b16 %v677
        %v858 = vunpack.c.h.b16 %v677
        %v859 = vunpack.c.l.b16 %v678
        %v860 = vunpack.c.h.b16 %v678
        %v861 = vunpack.c.l.b16 %v679
        %v862 = vunpack.c.h.b16 %v679
        %v863 = vunpack.c.l.b16 %v680
        %v864 = vunpack.c.h.b16 %v680
        %v865 = vunpack.c.l.b16 %v681
        %v866 = vunpack.c.h.b16 %v681
        %v867 = vunpack.c.l.b16 %v682
        %v868 = vunpack.c.h.b16 %v682
        %v869 = vunpack.c.l.b16 %v683
        %v870 = vunpack.c.h.b16 %v683
        %v871 = vunpack.c.l.b16 %v684
        %v872 = vunpack.c.h.b16 %v684
        %v873 = vunpack.c.l.b16 %v685
        %v874 = vunpack.c.h.b16 %v685
        %v875 = vunpack.c.l.b16 %v686
        %v876 = vunpack.c.h.b16 %v686
        %v877 = vunpack.c.l.b16 %v687
        %v878 = vunpack.c.h.b16 %v687
        %v879 = vunpack.c.l.b16 %v688
        %v880 = vunpack.c.h.b16 %v688
        %v881 = vunpack.c.l.b16 %v689
        %v882 = vunpack.c.h.b16 %v689
        %v883 = vunpack.c.l.b16 %v690
        %v884 = vunpack.c.h.b16 %v690
        %v885 = vunpack.c.l.b16 %v691
        %v886 = vunpack.c.h.b16 %v691
        %v887 = vunpack.c.l.b16 %v692
        %v888 = vunpack.c.h.b16 %v692
        %v889 = vunpack.c.l.b16 %v693
        %v890 = vunpack.c.h.b16 %v693
        %v891 = vunpack.c.l.b16 %v694
        %v892 = vunpack.c.h.b16 %v694
        %v893 = vunpack.c.l.b16 %v695
        %v894 = vunpack.c.h.b16 %v695
        %v895 = vunpack.c.l.b16 %v696
        %v896 = vunpack.c.h.b16 %v696
        %v897 = vunpack.c.l.b16 %v697
        %v898 = vunpack.c.h.b16 %v697
        %v899 = vunpack.c.l.b16 %v698
        %v900 = vunpack.c.h.b16 %v698
        %v901 = vunpack.c.l.b16 %v699
        %v902 = vunpack.c.h.b16 %v699
        %v903 = vunpack.c.l.b16 %v700
        %v904 = vunpack.c.h.b16 %v700
        %v905 = vunpack.c.l.b16 %v701
        %v906 = vunpack.c.h.b16 %v701
        %v907 = vunpack.c.l.b16 %v702
        %v908 = vunpack.c.h.b16 %v702
        %v909 = vunpack.c.l.b16 %v703
        %v910 = vunpack.c.h.b16 %v703
        %v911 = vunpack.c.l.b16 %v704
        %v912 = vunpack.c.h.b16 %v704
        %v913 = vunpack.c.l.b16 %v705
        %v914 = vunpack.c.h.b16 %v705
        %v915 = vunpack.c.l.b16 %v706
        %v916 = vunpack.c.h.b16 %v706
        %v917 = vunpack.c.l.b16 %v707
        %v918 = vunpack.c.h.b16 %v707
        %v919 = vunpack.c.l.b16 %v708
        %v920 = vunpack.c.h.b16 %v708
        %v921 = vunpack.c.l.b16 %v709
        %v922 = vunpack.c.h.b16 %v709
        %v923 = vunpack.c.l.b16 %v710
        %v924 = vunpack.c.h.b16 %v710
        %v925 = vunpack.c.l.b16 %v711
        %v926 = vunpack.c.h.b16 %v711
        %v927 = vunpack.c.l.b16 %v712
        %v928 = vunpack.c.h.b16 %v712
        %v929 = vunpack.c.l.b16 %v713
        %v930 = vunpack.c.h.b16 %v713
        %v931 = vunpack.c.l.b16 %v714
        %v932 = vunpack.c.h.b16 %v714
        %v933 = vunpack.c.l.b16 %v715
        %v934 = vunpack.c.h.b16 %v715
        %v935 = vunpack.c.l.b16 %v716
        %v936 = vunpack.c.h.b16 %v716
        %v937 = vunpack.c.l.b16 %v717
        %v938 = vunpack.c.h.b16 %v717
        %v939 = vunpack.c.l.b16 %v718
        %v940 = vunpack.c.h.b16 %v718
        %v941 = vunpack.c.l.b16 %v719
        %v942 = vunpack.c.h.b16 %v719
        %v943 = vunpack.c.l.b16 %v720
        %v944 = vunpack.c.h.b16 %v720
        %v945 = vunpack.c.l.b16 %v721
        %v946 = vunpack.c.h.b16 %v721
        %v947 = vunpack.c.l.b16 %v722
        %v948 = vunpack.c.h.b16 %v722
        %v949 = vunpack.c.l.b16 %v723
        %v950 = vunpack.c.h.b16 %v723
        %v951 = vunpack.c.l.b16 %v724
        %v952 = vunpack.c.h.b16 %v724
        %v953 = vunpack.c.l.b16 %v725
        %v954 = vunpack.c.h.b16 %v725
        %v955 = vunpack.c.l.b16 %v726
        %v956 = vunpack.c.h.b16 %v726
        %v957 = vunpack.c.l.b16 %v727
        %v958 = vunpack.c.h.b16 %v727
        %v959 = vunpack.c.l.b16 %v728
        %v960 = vunpack.c.h.b16 %v728
        %v961 = vunpack.c.l.b16 %v729
        %v962 = vunpack.c.h.b16 %v729
        %v963 = vunpack.c.l.b16 %v730
        %v964 = vunpack.c.h.b16 %v730
        %v965 = vpack.c.b16 %v845, %v837
        %v966 = vpack.c.b16 %v846, %v838
        %v967 = vpack.c.b16 %v847, %v839
        %v968 = vpack.c.b16 %v848, %v840
        %v969 = vpack.c.b16 %v849, %v841
        %v970 = vpack.c.b16 %v850, %v842
        %v971 = vpack.c.b16 %v851, %v843
        %v972 = vpack.c.b16 %v852, %v844
        %v973 = vpack.c.b16 %v861, %v853
        %v974 = vpack.c.b16 %v862, %v854
        %v975 = vpack.c.b16 %v863, %v855
        %v976 = vpack.c.b16 %v864, %v856
        %v977 = vpack.c.b16 %v865, %v857
        %v978 = vpack.c.b16 %v866, %v858
        %v979 = vpack.c.b16 %v867, %v859
        %v980 = vpack.c.b16 %v868, %v860
        %v981 = vpack.c.b16 %v877, %v869
        %v982 = vpack.c.b16 %v878, %v870
        %v983 = vpack.c.b16 %v879, %v871
        %v984 = vpack.c.b16 %v880, %v872
        %v985 = vpack.c.b16 %v881, %v873
        %v986 = vpack.c.b16 %v882, %v874
        %v987 = vpack.c.b16 %v883, %v875
        %v988 = vpack.c.b16 %v884, %v876
        %v989 = vpack.c.b16 %v893, %v885
        %v990 = vpack.c.b16 %v894, %v886
        %v991 = vpack.c.b16 %v895, %v887
        %v992 = vpack.c.b16 %v896, %v888
        %v993 = vpack.c.b16 %v897, %v889
        %v994 = vpack.c.b16 %v898, %v890
        %v995 = vpack.c.b16 %v899, %v891
        %v996 = vpack.c.b16 %v900, %v892
        %v997 = vpack.c.b16 %v909, %v901
        %v998 = vpack.c.b16 %v910, %v902
        %v999 = vpack.c.b16 %v911, %v903
        %v1000 = vpack.c.b16 %v912, %v904
        %v1001 = vpack.c.b16 %v913, %v905
        %v1002 = vpack.c.b16 %v914, %v906
        %v1003 = vpack.c.b16 %v915, %v907
        %v1004 = vpack.c.b16 %v916, %v908
        %v1005 = vpack.c.b16 %v925, %v917
        %v1006 = vpack.c.b16 %v926, %v918
        %v1007 = vpack.c.b16 %v927, %v919
        %v1008 = vpack.c.b16 %v928, %v920
        %v1009 = vpack.c.b16 %v929, %v921
        %v1010 = vpack.c.b16 %v930, %v922
        %v1011 = vpack.c.b16 %v931, %v923
        %v1012 = vpack.c.b16 %v932, %v924
        %v1013 = vpack.c.b16 %v941, %v933
        %v1014 = vpack.c.b16 %v942, %v934
        %v1015 = vpack.c.b16 %v943, %v935
        %v1016 = vpack.c.b16 %v944, %v936
        %v1017 = vpack.c.b16 %v945, %v937
        %v1018 = vpack.c.b16 %v946, %v938
        %v1019 = vpack.c.b16 %v947, %v939
        %v1020 = vpack.c.b16 %v948, %v940
        %v1021 = vpack.c.b16 %v957, %v949
        %v1022 = vpack.c.b16 %v958, %v950
        %v1023 = vpack.c.b16 %v959, %v951
        %v1024 = vpack.c.b16 %v960, %v952
        %v1025 = vpack.c.b16 %v961, %v953
        %v1026 = vpack.c.b16 %v962, %v954
        %v1027 = vpack.c.b16 %v963, %v955
        %v1028 = vpack.c.b16 %v964, %v956
        %1093 = vmatprep.subr.bf16.mxu0 %v966
        %1094 = vmatpush1.bf16.msra.mxu0 %v965
        %1095 = vmatprep.subr.bf16.mxu0 %v974
        %1096 = vmatpush1.bf16.msra.mxu0 %v973
        %1097 = vmatprep.subr.bf16.mxu0 %v982
        %1098 = vmatpush1.bf16.msra.mxu0 %v981
        %1099 = vmatprep.subr.bf16.mxu0 %v990
        %1100 = vmatpush1.bf16.msra.mxu0 %v989
        %1101 = vmatprep.subr.bf16.mxu0 %v998
        %1102 = vmatpush1.bf16.msra.mxu0 %v997
        %1103 = vmatprep.subr.bf16.mxu0 %v1006
        %1104 = vmatpush1.bf16.msra.mxu0 %v1005
        %1105 = vmatprep.subr.bf16.mxu0 %v1014
        %1106 = vmatpush1.bf16.msra.mxu0 %v1013
        %1107 = vmatprep.subr.bf16.mxu0 %v1022
        %1108 = vmatpush1.bf16.msra.mxu0 %v1021
        %1109 = vmatprep.subr.bf16.mxu0 0
        %1110 = vmatpush1.bf16.msra.mxu0 0
        %1111 = vmatprep.subr.bf16.mxu0 0
        %1112 = vmatpush1.bf16.msra.mxu0 0
        %1113 = vmatprep.subr.bf16.mxu0 0
        %1114 = vmatpush1.bf16.msra.mxu0 0
        %1115 = vmatprep.subr.bf16.mxu0 0
        %1116 = vmatpush1.bf16.msra.mxu0 0
        %1117 = vmatprep.subr.bf16.mxu0 0
        %1118 = vmatpush1.bf16.msra.mxu0 0
        %1119 = vmatprep.subr.bf16.mxu0 0
        %1120 = vmatpush1.bf16.msra.mxu0 0
        %1121 = vmatprep.subr.bf16.mxu0 0
        %1122 = vmatpush1.bf16.msra.mxu0 0
        %1123 = vmatprep.subr.bf16.mxu0 0
        %1124 = vmatpush1.bf16.msra.mxu0 0
        %1125 = vmatprep.mubr.bf16.mxu0 0
        %1126 = vmatmul.mubr.bf16.gmra.mrb[0].mxu0 %v651
        %v1127 = vpop.f32.mrb[0].mxu0
        %v1128 = vadd.f32 %v736, %v1127
        %v1129 = vpop.f32.mrb[0].mxu0
        %v1130 = vadd.f32 %v740, %v1129
        %v1131 = vpop.f32.mrb[0].mxu0
        %v1132 = vadd.f32 %v736, %v1131
        %v1133 = vpop.f32.mrb[0].mxu0
        %v1134 = vadd.f32 %v740, %v1133
        %1135 = vmatprep.mubr.bf16.mxu0 0
        %1136 = vmatmul.mubr.bf16.gmra.mrb[0].mxu0 %v652
        %v1137 = vpop.f32.mrb[0].mxu0
        %v1138 = vadd.f32 %v736, %v1137
        %v1139 = vpop.f32.mrb[0].mxu0
        %v1140 = vadd.f32 %v740, %v1139
        %v1141 = vpop.f32.mrb[0].mxu0
        %v1142 = vadd.f32 %v736, %v1141
        %v1143 = vpop.f32.mrb[0].mxu0
        %v1144 = vadd.f32 %v740, %v1143
        %1145 = vmatprep.mubr.bf16.mxu0 0
        %1146 = vmatmul.mubr.bf16.gmra.mrb[0].mxu0 %v653
        %v1147 = vpop.f32.mrb[0].mxu0
        %v1148 = vadd.f32 %v736, %v1147
        %v1149 = vpop.f32.mrb[0].mxu0
        %v1150 = vadd.f32 %v740, %v1149
        %v1151 = vpop.f32.mrb[0].mxu0
        %v1152 = vadd.f32 %v736, %v1151
        %v1153 = vpop.f32.mrb[0].mxu0
        %v1154 = vadd.f32 %v740, %v1153
        %1155 = vmatprep.mubr.bf16.mxu0 0
        %1156 = vmatmul.mubr.bf16.gmra.mrb[0].mxu0 %v654
        %v1157 = vpop.f32.mrb[0].mxu0
        %v1158 = vadd.f32 %v736, %v1157
        %v1159 = vpop.f32.mrb[0].mxu0
        %v1160 = vadd.f32 %v740, %v1159
        %v1161 = vpop.f32.mrb[0].mxu0
        %v1162 = vadd.f32 %v736, %v1161
        %v1163 = vpop.f32.mrb[0].mxu0
        %v1164 = vadd.f32 %v740, %v1163
        %1165 = vmatprep.mubr.bf16.mxu0 0
        %1166 = vmatmul.mubr.bf16.gmra.mrb[0].mxu0 %v655
        %v1167 = vpop.f32.mrb[0].mxu0
        %v1168 = vadd.f32 %v736, %v1167
        %v1169 = vpop.f32.mrb[0].mxu0
        %v1170 = vadd.f32 %v740, %v1169
        %v1171 = vpop.f32.mrb[0].mxu0
        %v1172 = vadd.f32 %v736, %v1171
        %v1173 = vpop.f32.mrb[0].mxu0
        %v1174 = vadd.f32 %v740, %v1173
        %1175 = vmatprep.mubr.bf16.mxu0 0
        %1176 = vmatmul.mubr.bf16.gmra.mrb[0].mxu0 %v656
        %v1177 = vpop.f32.mrb[0].mxu0
        %v1178 = vadd.f32 %v736, %v1177
        %v1179 = vpop.f32.mrb[0].mxu0
        %v1180 = vadd.f32 %v740, %v1179
        %v1181 = vpop.f32.mrb[0].mxu0
        %v1182 = vadd.f32 %v736, %v1181
        %v1183 = vpop.f32.mrb[0].mxu0
        %v1184 = vadd.f32 %v740, %v1183
        %1185 = vmatprep.mubr.bf16.mxu0 0
        %1186 = vmatmul.mubr.bf16.gmra.mrb[0].mxu0 %v657
        %v1187 = vpop.f32.mrb[0].mxu0
        %v1188 = vadd.f32 %v736, %v1187
        %v1189 = vpop.f32.mrb[0].mxu0
        %v1190 = vadd.f32 %v740, %v1189
        %v1191 = vpop.f32.mrb[0].mxu0
        %v1192 = vadd.f32 %v736, %v1191
        %v1193 = vpop.f32.mrb[0].mxu0
        %v1194 = vadd.f32 %v740, %v1193
        %1195 = vmatprep.mubr.bf16.mxu0 0
        %1196 = vmatmul.mubr.bf16.gmra.mrb[0].mxu0 %v658
        %v1197 = vpop.f32.mrb[0].mxu0
        %v1198 = vadd.f32 %v736, %v1197
        %v1199 = vpop.f32.mrb[0].mxu0
        %v1200 = vadd.f32 %v740, %v1199
        %v1201 = vpop.f32.mrb[0].mxu0
        %v1202 = vadd.f32 %v736, %v1201
        %v1203 = vpop.f32.mrb[0].mxu0
        %v1204 = vadd.f32 %v740, %v1203
        %1205 = vmatprep.mubr.bf16.mxu0 0
        %1206 = vmatmul.mubr.bf16.gmra.mrb[0].mxu0 %v659
        %v1207 = vpop.f32.mrb[0].mxu0
        %v1208 = vadd.f32 %v736, %v1207
        %v1209 = vpop.f32.mrb[0].mxu0
        %v1210 = vadd.f32 %v740, %v1209
        %v1211 = vpop.f32.mrb[0].mxu0
        %v1212 = vadd.f32 %v736, %v1211
        %v1213 = vpop.f32.mrb[0].mxu0
        %v1214 = vadd.f32 %v740, %v1213
        %1215 = vmatprep.mubr.bf16.mxu0 0
        %1216 = vmatmul.mubr.bf16.gmra.mrb[0].mxu0 %v660
        %v1217 = vpop.f32.mrb[0].mxu0
        %v1218 = vadd.f32 %v736, %v1217
        %v1219 = vpop.f32.mrb[0].mxu0
        %v1220 = vadd.f32 %v740, %v1219
        %v1221 = vpop.f32.mrb[0].mxu0
        %v1222 = vadd.f32 %v736, %v1221
        %v1223 = vpop.f32.mrb[0].mxu0
        %v1224 = vadd.f32 %v740, %v1223
        %1225 = vmatprep.mubr.bf16.mxu0 0
        %1226 = vmatmul.mubr.bf16.gmra.mrb[0].mxu0 %v661
        %v1227 = vpop.f32.mrb[0].mxu0
        %v1228 = vadd.f32 %v736, %v1227
        %v1229 = vpop.f32.mrb[0].mxu0
        %v1230 = vadd.f32 %v740, %v1229
        %v1231 = vpop.f32.mrb[0].mxu0
        %v1232 = vadd.f32 %v736, %v1231
        %v1233 = vpop.f32.mrb[0].mxu0
        %v1234 = vadd.f32 %v740, %v1233
        %1235 = vmatprep.mubr.bf16.mxu0 0
        %1236 = vmatmul.mubr.bf16.gmra.mrb[0].mxu0 %v662
        %v1237 = vpop.f32.mrb[0].mxu0
        %v1238 = vadd.f32 %v736, %v1237
        %v1239 = vpop.f32.mrb[0].mxu0
        %v1240 = vadd.f32 %v740, %v1239
        %v1241 = vpop.f32.mrb[0].mxu0
        %v1242 = vadd.f32 %v736, %v1241
        %v1243 = vpop.f32.mrb[0].mxu0
        %v1244 = vadd.f32 %v740, %v1243
        %1245 = vmatprep.mubr.bf16.mxu0 0
        %1246 = vmatmul.mubr.bf16.gmra.mrb[0].mxu0 %v663
        %v1247 = vpop.f32.mrb[0].mxu0
        %v1248 = vadd.f32 %v736, %v1247
        %v1249 = vpop.f32.mrb[0].mxu0
        %v1250 = vadd.f32 %v740, %v1249
        %v1251 = vpop.f32.mrb[0].mxu0
        %v1252 = vadd.f32 %v736, %v1251
        %v1253 = vpop.f32.mrb[0].mxu0
        %v1254 = vadd.f32 %v740, %v1253
        %1255 = vmatprep.mubr.bf16.mxu0 0
        %1256 = vmatmul.mubr.bf16.gmra.mrb[0].mxu0 %v664
        %v1257 = vpop.f32.mrb[0].mxu0
        %v1258 = vadd.f32 %v736, %v1257
        %v1259 = vpop.f32.mrb[0].mxu0
        %v1260 = vadd.f32 %v740, %v1259
        %v1261 = vpop.f32.mrb[0].mxu0
        %v1262 = vadd.f32 %v736, %v1261
        %v1263 = vpop.f32.mrb[0].mxu0
        %v1264 = vadd.f32 %v740, %v1263
        %1265 = vmatprep.mubr.bf16.mxu0 0
        %1266 = vmatmul.mubr.bf16.gmra.mrb[0].mxu0 %v665
        %v1267 = vpop.f32.mrb[0].mxu0
        %v1268 = vadd.f32 %v736, %v1267
        %v1269 = vpop.f32.mrb[0].mxu0
        %v1270 = vadd.f32 %v740, %v1269
        %v1271 = vpop.f32.mrb[0].mxu0
        %v1272 = vadd.f32 %v736, %v1271
        %v1273 = vpop.f32.mrb[0].mxu0
        %v1274 = vadd.f32 %v740, %v1273
        %1275 = vmatprep.mubr.bf16.mxu0 0
        %1276 = vmatmul.mubr.bf16.gmra.mrb[0].mxu0 %v666
        %v1277 = vpop.f32.mrb[0].mxu0
        %v1278 = vadd.f32 %v736, %v1277
        %v1279 = vpop.f32.mrb[0].mxu0
        %v1280 = vadd.f32 %v740, %v1279
        %v1281 = vpop.f32.mrb[0].mxu0
        %v1282 = vadd.f32 %v736, %v1281
        %v1283 = vpop.f32.mrb[0].mxu0
        %v1284 = vadd.f32 %v740, %v1283
        %1285 = vdwg.mxu0
        %1286 = vmatprep.subr.bf16.mxu0 %v968
        %1287 = vmatpush1.bf16.msra.mxu0 %v967
        %1288 = vmatprep.subr.bf16.mxu0 %v976
        %1289 = vmatpush1.bf16.msra.mxu0 %v975
        %1290 = vmatprep.subr.bf16.mxu0 %v984
        %1291 = vmatpush1.bf16.msra.mxu0 %v983
        %1292 = vmatprep.subr.bf16.mxu0 %v992
        %1293 = vmatpush1.bf16.msra.mxu0 %v991
        %1294 = vmatprep.subr.bf16.mxu0 %v1000
        %1295 = vmatpush1.bf16.msra.mxu0 %v999
        %1296 = vmatprep.subr.bf16.mxu0 %v1008
        %1297 = vmatpush1.bf16.msra.mxu0 %v1007
        %1298 = vmatprep.subr.bf16.mxu0 %v1016
        %1299 = vmatpush1.bf16.msra.mxu0 %v1015
        %1300 = vmatprep.subr.bf16.mxu0 %v1024
        %1301 = vmatpush1.bf16.msra.mxu0 %v1023
        %1302 = vmatprep.subr.bf16.mxu0 0
        %1303 = vmatpush1.bf16.msra.mxu0 0
        %1304 = vmatprep.subr.bf16.mxu0 0
        %1305 = vmatpush1.bf16.msra.mxu0 0
        %1306 = vmatprep.subr.bf16.mxu0 0
        %1307 = vmatpush1.bf16.msra.mxu0 0
        %1308 = vmatprep.subr.bf16.mxu0 0
        %1309 = vmatpush1.bf16.msra.mxu0 0
        %1310 = vmatprep.subr.bf16.mxu0 0
        %1311 = vmatpush1.bf16.msra.mxu0 0
        %1312 = vmatprep.subr.bf16.mxu0 0
        %1313 = vmatpush1.bf16.msra.mxu0 0
        %1314 = vmatprep.subr.bf16.mxu0 0
        %1315 = vmatpush1.bf16.msra.mxu0 0
        %1316 = vmatprep.subr.bf16.mxu0 0
        %1317 = vmatpush1.bf16.msra.mxu0 0
        %1318 = vmatprep.mubr.bf16.mxu0 0
        %1319 = vmatmul.mubr.bf16.gmra.mrb[0].mxu0 %v651
        %v1320 = vpop.f32.mrb[0].mxu0
        %v1321 = vadd.f32 %v744, %v1320
        %v1322 = vpop.f32.mrb[0].mxu0
        %v1323 = vadd.f32 %v748, %v1322
        %v1324 = vpop.f32.mrb[0].mxu0
        %v1325 = vadd.f32 %v744, %v1324
        %v1326 = vpop.f32.mrb[0].mxu0
        %v1327 = vadd.f32 %v748, %v1326
        %1328 = vmatprep.mubr.bf16.mxu0 0
        %1329 = vmatmul.mubr.bf16.gmra.mrb[0].mxu0 %v652
        %v1330 = vpop.f32.mrb[0].mxu0
        %v1331 = vadd.f32 %v744, %v1330
        %v1332 = vpop.f32.mrb[0].mxu0
        %v1333 = vadd.f32 %v748, %v1332
        %v1334 = vpop.f32.mrb[0].mxu0
        %v1335 = vadd.f32 %v744, %v1334
        %v1336 = vpop.f32.mrb[0].mxu0
        %v1337 = vadd.f32 %v748, %v1336
        %1338 = vmatprep.mubr.bf16.mxu0 0
        %1339 = vmatmul.mubr.bf16.gmra.mrb[0].mxu0 %v653
        %v1340 = vpop.f32.mrb[0].mxu0
        %v1341 = vadd.f32 %v744, %v1340
        %v1342 = vpop.f32.mrb[0].mxu0
        %v1343 = vadd.f32 %v748, %v1342
        %v1344 = vpop.f32.mrb[0].mxu0
        %v1345 = vadd.f32 %v744, %v1344
        %v1346 = vpop.f32.mrb[0].mxu0
        %v1347 = vadd.f32 %v748, %v1346
        %1348 = vmatprep.mubr.bf16.mxu0 0
        %1349 = vmatmul.mubr.bf16.gmra.mrb[0].mxu0 %v654
        %v1350 = vpop.f32.mrb[0].mxu0
        %v1351 = vadd.f32 %v744, %v1350
        %v1352 = vpop.f32.mrb[0].mxu0
        %v1353 = vadd.f32 %v748, %v1352
        %v1354 = vpop.f32.mrb[0].mxu0
        %v1355 = vadd.f32 %v744, %v1354
        %v1356 = vpop.f32.mrb[0].mxu0
        %v1357 = vadd.f32 %v748, %v1356
        %1358 = vmatprep.mubr.bf16.mxu0 0
        %1359 = vmatmul.mubr.bf16.gmra.mrb[0].mxu0 %v655
        %v1360 = vpop.f32.mrb[0].mxu0
        %v1361 = vadd.f32 %v744, %v1360
        %v1362 = vpop.f32.mrb[0].mxu0
        %v1363 = vadd.f32 %v748, %v1362
        %v1364 = vpop.f32.mrb[0].mxu0
        %v1365 = vadd.f32 %v744, %v1364
        %v1366 = vpop.f32.mrb[0].mxu0
        %v1367 = vadd.f32 %v748, %v1366
        %1368 = vmatprep.mubr.bf16.mxu0 0
        %1369 = vmatmul.mubr.bf16.gmra.mrb[0].mxu0 %v656
        %v1370 = vpop.f32.mrb[0].mxu0
        %v1371 = vadd.f32 %v744, %v1370
        %v1372 = vpop.f32.mrb[0].mxu0
        %v1373 = vadd.f32 %v748, %v1372
        %v1374 = vpop.f32.mrb[0].mxu0
        %v1375 = vadd.f32 %v744, %v1374
        %v1376 = vpop.f32.mrb[0].mxu0
        %v1377 = vadd.f32 %v748, %v1376
        %1378 = vmatprep.mubr.bf16.mxu0 0
        %1379 = vmatmul.mubr.bf16.gmra.mrb[0].mxu0 %v657
        %v1380 = vpop.f32.mrb[0].mxu0
        %v1381 = vadd.f32 %v744, %v1380
        %v1382 = vpop.f32.mrb[0].mxu0
        %v1383 = vadd.f32 %v748, %v1382
        %v1384 = vpop.f32.mrb[0].mxu0
        %v1385 = vadd.f32 %v744, %v1384
        %v1386 = vpop.f32.mrb[0].mxu0
        %v1387 = vadd.f32 %v748, %v1386
        %1388 = vmatprep.mubr.bf16.mxu0 0
        %1389 = vmatmul.mubr.bf16.gmra.mrb[0].mxu0 %v658
        %v1390 = vpop.f32.mrb[0].mxu0
        %v1391 = vadd.f32 %v744, %v1390
        %v1392 = vpop.f32.mrb[0].mxu0
        %v1393 = vadd.f32 %v748, %v1392
        %v1394 = vpop.f32.mrb[0].mxu0
        %v1395 = vadd.f32 %v744, %v1394
        %v1396 = vpop.f32.mrb[0].mxu0
        %v1397 = vadd.f32 %v748, %v1396
        %1398 = vmatprep.mubr.bf16.mxu0 0
        %1399 = vmatmul.mubr.bf16.gmra.mrb[0].mxu0 %v659
        %v1400 = vpop.f32.mrb[0].mxu0
        %v1401 = vadd.f32 %v744, %v1400
        %v1402 = vpop.f32.mrb[0].mxu0
        %v1403 = vadd.f32 %v748, %v1402
        %v1404 = vpop.f32.mrb[0].mxu0
        %v1405 = vadd.f32 %v744, %v1404
        %v1406 = vpop.f32.mrb[0].mxu0
        %v1407 = vadd.f32 %v748, %v1406
        %1408 = vmatprep.mubr.bf16.mxu0 0
        %1409 = vmatmul.mubr.bf16.gmra.mrb[0].mxu0 %v660
        %v1410 = vpop.f32.mrb[0].mxu0
        %v1411 = vadd.f32 %v744, %v1410
        %v1412 = vpop.f32.mrb[0].mxu0
        %v1413 = vadd.f32 %v748, %v1412
        %v1414 = vpop.f32.mrb[0].mxu0
        %v1415 = vadd.f32 %v744, %v1414
        %v1416 = vpop.f32.mrb[0].mxu0
        %v1417 = vadd.f32 %v748, %v1416
        %1418 = vmatprep.mubr.bf16.mxu0 0
        %1419 = vmatmul.mubr.bf16.gmra.mrb[0].mxu0 %v661
        %v1420 = vpop.f32.mrb[0].mxu0
        %v1421 = vadd.f32 %v744, %v1420
        %v1422 = vpop.f32.mrb[0].mxu0
        %v1423 = vadd.f32 %v748, %v1422
        %v1424 = vpop.f32.mrb[0].mxu0
        %v1425 = vadd.f32 %v744, %v1424
        %v1426 = vpop.f32.mrb[0].mxu0
        %v1427 = vadd.f32 %v748, %v1426
        %1428 = vmatprep.mubr.bf16.mxu0 0
        %1429 = vmatmul.mubr.bf16.gmra.mrb[0].mxu0 %v662
        %v1430 = vpop.f32.mrb[0].mxu0
        %v1431 = vadd.f32 %v744, %v1430
        %v1432 = vpop.f32.mrb[0].mxu0
        %v1433 = vadd.f32 %v748, %v1432
        %v1434 = vpop.f32.mrb[0].mxu0
        %v1435 = vadd.f32 %v744, %v1434
        %v1436 = vpop.f32.mrb[0].mxu0
        %v1437 = vadd.f32 %v748, %v1436
        %1438 = vmatprep.mubr.bf16.mxu0 0
        %1439 = vmatmul.mubr.bf16.gmra.mrb[0].mxu0 %v663
        %v1440 = vpop.f32.mrb[0].mxu0
        %v1441 = vadd.f32 %v744, %v1440
        %v1442 = vpop.f32.mrb[0].mxu0
        %v1443 = vadd.f32 %v748, %v1442
        %v1444 = vpop.f32.mrb[0].mxu0
        %v1445 = vadd.f32 %v744, %v1444
        %v1446 = vpop.f32.mrb[0].mxu0
        %v1447 = vadd.f32 %v748, %v1446
        %1448 = vmatprep.mubr.bf16.mxu0 0
        %1449 = vmatmul.mubr.bf16.gmra.mrb[0].mxu0 %v664
        %v1450 = vpop.f32.mrb[0].mxu0
        %v1451 = vadd.f32 %v744, %v1450
        %v1452 = vpop.f32.mrb[0].mxu0
        %v1453 = vadd.f32 %v748, %v1452
        %v1454 = vpop.f32.mrb[0].mxu0
        %v1455 = vadd.f32 %v744, %v1454
        %v1456 = vpop.f32.mrb[0].mxu0
        %v1457 = vadd.f32 %v748, %v1456
        %1458 = vmatprep.mubr.bf16.mxu0 0
        %1459 = vmatmul.mubr.bf16.gmra.mrb[0].mxu0 %v665
        %v1460 = vpop.f32.mrb[0].mxu0
        %v1461 = vadd.f32 %v744, %v1460
        %v1462 = vpop.f32.mrb[0].mxu0
        %v1463 = vadd.f32 %v748, %v1462
        %v1464 = vpop.f32.mrb[0].mxu0
        %v1465 = vadd.f32 %v744, %v1464
        %v1466 = vpop.f32.mrb[0].mxu0
        %v1467 = vadd.f32 %v748, %v1466
        %1468 = vmatprep.mubr.bf16.mxu0 0
        %1469 = vmatmul.mubr.bf16.gmra.mrb[0].mxu0 %v666
        %v1470 = vpop.f32.mrb[0].mxu0
        %v1471 = vadd.f32 %v744, %v1470
        %v1472 = vpop.f32.mrb[0].mxu0
        %v1473 = vadd.f32 %v748, %v1472
        %v1474 = vpop.f32.mrb[0].mxu0
        %v1475 = vadd.f32 %v744, %v1474
        %v1476 = vpop.f32.mrb[0].mxu0
        %v1477 = vadd.f32 %v748, %v1476
        %1478 = vdwg.mxu0
        %1479 = vmatprep.subr.bf16.mxu0 %v970
        %1480 = vmatpush1.bf16.msra.mxu0 %v969
        %1481 = vmatprep.subr.bf16.mxu0 %v978
        %1482 = vmatpush1.bf16.msra.mxu0 %v977
        %1483 = vmatprep.subr.bf16.mxu0 %v986
        %1484 = vmatpush1.bf16.msra.mxu0 %v985
        %1485 = vmatprep.subr.bf16.mxu0 %v994
        %1486 = vmatpush1.bf16.msra.mxu0 %v993
        %1487 = vmatprep.subr.bf16.mxu0 %v1002
        %1488 = vmatpush1.bf16.msra.mxu0 %v1001
        %1489 = vmatprep.subr.bf16.mxu0 %v1010
        %1490 = vmatpush1.bf16.msra.mxu0 %v1009
        %1491 = vmatprep.subr.bf16.mxu0 %v1018
        %1492 = vmatpush1.bf16.msra.mxu0 %v1017
        %1493 = vmatprep.subr.bf16.mxu0 %v1026
        %1494 = vmatpush1.bf16.msra.mxu0 %v1025
        %1495 = vmatprep.subr.bf16.mxu0 0
        %1496 = vmatpush1.bf16.msra.mxu0 0
        %1497 = vmatprep.subr.bf16.mxu0 0
        %1498 = vmatpush1.bf16.msra.mxu0 0
        %1499 = vmatprep.subr.bf16.mxu0 0
        %1500 = vmatpush1.bf16.msra.mxu0 0
        %1501 = vmatprep.subr.bf16.mxu0 0
        %1502 = vmatpush1.bf16.msra.mxu0 0
        %1503 = vmatprep.subr.bf16.mxu0 0
        %1504 = vmatpush1.bf16.msra.mxu0 0
        %1505 = vmatprep.subr.bf16.mxu0 0
        %1506 = vmatpush1.bf16.msra.mxu0 0
        %1507 = vmatprep.subr.bf16.mxu0 0
        %1508 = vmatpush1.bf16.msra.mxu0 0
        %1509 = vmatprep.subr.bf16.mxu0 0
        %1510 = vmatpush1.bf16.msra.mxu0 0
        %1511 = vmatprep.mubr.bf16.mxu0 0
        %1512 = vmatmul.mubr.bf16.gmra.mrb[0].mxu0 %v651
        %v1513 = vpop.f32.mrb[0].mxu0
        %v1514 = vadd.f32 %v752, %v1513
        %v1515 = vpop.f32.mrb[0].mxu0
        %v1516 = vadd.f32 %v756, %v1515
        %v1517 = vpop.f32.mrb[0].mxu0
        %v1518 = vadd.f32 %v752, %v1517
        %v1519 = vpop.f32.mrb[0].mxu0
        %v1520 = vadd.f32 %v756, %v1519
        %1521 = vmatprep.mubr.bf16.mxu0 0
        %1522 = vmatmul.mubr.bf16.gmra.mrb[0].mxu0 %v652
        %v1523 = vpop.f32.mrb[0].mxu0
        %v1524 = vadd.f32 %v752, %v1523
        %v1525 = vpop.f32.mrb[0].mxu0
        %v1526 = vadd.f32 %v756, %v1525
        %v1527 = vpop.f32.mrb[0].mxu0
        %v1528 = vadd.f32 %v752, %v1527
        %v1529 = vpop.f32.mrb[0].mxu0
        %v1530 = vadd.f32 %v756, %v1529
        %1531 = vmatprep.mubr.bf16.mxu0 0
        %1532 = vmatmul.mubr.bf16.gmra.mrb[0].mxu0 %v653
        %v1533 = vpop.f32.mrb[0].mxu0
        %v1534 = vadd.f32 %v752, %v1533
        %v1535 = vpop.f32.mrb[0].mxu0
        %v1536 = vadd.f32 %v756, %v1535
        %v1537 = vpop.f32.mrb[0].mxu0
        %v1538 = vadd.f32 %v752, %v1537
        %v1539 = vpop.f32.mrb[0].mxu0
        %v1540 = vadd.f32 %v756, %v1539
        %1541 = vmatprep.mubr.bf16.mxu0 0
        %1542 = vmatmul.mubr.bf16.gmra.mrb[0].mxu0 %v654
        %v1543 = vpop.f32.mrb[0].mxu0
        %v1544 = vadd.f32 %v752, %v1543
        %v1545 = vpop.f32.mrb[0].mxu0
        %v1546 = vadd.f32 %v756, %v1545
        %v1547 = vpop.f32.mrb[0].mxu0
        %v1548 = vadd.f32 %v752, %v1547
        %v1549 = vpop.f32.mrb[0].mxu0
        %v1550 = vadd.f32 %v756, %v1549
        %1551 = vmatprep.mubr.bf16.mxu0 0
        %1552 = vmatmul.mubr.bf16.gmra.mrb[0].mxu0 %v655
        %v1553 = vpop.f32.mrb[0].mxu0
        %v1554 = vadd.f32 %v752, %v1553
        %v1555 = vpop.f32.mrb[0].mxu0
        %v1556 = vadd.f32 %v756, %v1555
        %v1557 = vpop.f32.mrb[0].mxu0
        %v1558 = vadd.f32 %v752, %v1557
        %v1559 = vpop.f32.mrb[0].mxu0
        %v1560 = vadd.f32 %v756, %v1559
        %1561 = vmatprep.mubr.bf16.mxu0 0
        %1562 = vmatmul.mubr.bf16.gmra.mrb[0].mxu0 %v656
        %v1563 = vpop.f32.mrb[0].mxu0
        %v1564 = vadd.f32 %v752, %v1563
        %v1565 = vpop.f32.mrb[0].mxu0
        %v1566 = vadd.f32 %v756, %v1565
        %v1567 = vpop.f32.mrb[0].mxu0
        %v1568 = vadd.f32 %v752, %v1567
        %v1569 = vpop.f32.mrb[0].mxu0
        %v1570 = vadd.f32 %v756, %v1569
        %1571 = vmatprep.mubr.bf16.mxu0 0
        %1572 = vmatmul.mubr.bf16.gmra.mrb[0].mxu0 %v657
        %v1573 = vpop.f32.mrb[0].mxu0
        %v1574 = vadd.f32 %v752, %v1573
        %v1575 = vpop.f32.mrb[0].mxu0
        %v1576 = vadd.f32 %v756, %v1575
        %v1577 = vpop.f32.mrb[0].mxu0
        %v1578 = vadd.f32 %v752, %v1577
        %v1579 = vpop.f32.mrb[0].mxu0
        %v1580 = vadd.f32 %v756, %v1579
        %1581 = vmatprep.mubr.bf16.mxu0 0
        %1582 = vmatmul.mubr.bf16.gmra.mrb[0].mxu0 %v658
        %v1583 = vpop.f32.mrb[0].mxu0
        %v1584 = vadd.f32 %v752, %v1583
        %v1585 = vpop.f32.mrb[0].mxu0
        %v1586 = vadd.f32 %v756, %v1585
        %v1587 = vpop.f32.mrb[0].mxu0
        %v1588 = vadd.f32 %v752, %v1587
        %v1589 = vpop.f32.mrb[0].mxu0
        %v1590 = vadd.f32 %v756, %v1589
        %1591 = vmatprep.mubr.bf16.mxu0 0
        %1592 = vmatmul.mubr.bf16.gmra.mrb[0].mxu0 %v659
        %v1593 = vpop.f32.mrb[0].mxu0
        %v1594 = vadd.f32 %v752, %v1593
        %v1595 = vpop.f32.mrb[0].mxu0
        %v1596 = vadd.f32 %v756, %v1595
        %v1597 = vpop.f32.mrb[0].mxu0
        %v1598 = vadd.f32 %v752, %v1597
        %v1599 = vpop.f32.mrb[0].mxu0
        %v1600 = vadd.f32 %v756, %v1599
        %1601 = vmatprep.mubr.bf16.mxu0 0
        %1602 = vmatmul.mubr.bf16.gmra.mrb[0].mxu0 %v660
        %v1603 = vpop.f32.mrb[0].mxu0
        %v1604 = vadd.f32 %v752, %v1603
        %v1605 = vpop.f32.mrb[0].mxu0
        %v1606 = vadd.f32 %v756, %v1605
        %v1607 = vpop.f32.mrb[0].mxu0
        %v1608 = vadd.f32 %v752, %v1607
        %v1609 = vpop.f32.mrb[0].mxu0
        %v1610 = vadd.f32 %v756, %v1609
        %1611 = vmatprep.mubr.bf16.mxu0 0
        %1612 = vmatmul.mubr.bf16.gmra.mrb[0].mxu0 %v661
        %v1613 = vpop.f32.mrb[0].mxu0
        %v1614 = vadd.f32 %v752, %v1613
        %v1615 = vpop.f32.mrb[0].mxu0
        %v1616 = vadd.f32 %v756, %v1615
        %v1617 = vpop.f32.mrb[0].mxu0
        %v1618 = vadd.f32 %v752, %v1617
        %v1619 = vpop.f32.mrb[0].mxu0
        %v1620 = vadd.f32 %v756, %v1619
        %1621 = vmatprep.mubr.bf16.mxu0 0
        %1622 = vmatmul.mubr.bf16.gmra.mrb[0].mxu0 %v662
        %v1623 = vpop.f32.mrb[0].mxu0
        %v1624 = vadd.f32 %v752, %v1623
        %v1625 = vpop.f32.mrb[0].mxu0
        %v1626 = vadd.f32 %v756, %v1625
        %v1627 = vpop.f32.mrb[0].mxu0
        %v1628 = vadd.f32 %v752, %v1627
        %v1629 = vpop.f32.mrb[0].mxu0
        %v1630 = vadd.f32 %v756, %v1629
        %1631 = vmatprep.mubr.bf16.mxu0 0
        %1632 = vmatmul.mubr.bf16.gmra.mrb[0].mxu0 %v663
        %v1633 = vpop.f32.mrb[0].mxu0
        %v1634 = vadd.f32 %v752, %v1633
        %v1635 = vpop.f32.mrb[0].mxu0
        %v1636 = vadd.f32 %v756, %v1635
        %v1637 = vpop.f32.mrb[0].mxu0
        %v1638 = vadd.f32 %v752, %v1637
        %v1639 = vpop.f32.mrb[0].mxu0
        %v1640 = vadd.f32 %v756, %v1639
        %1641 = vmatprep.mubr.bf16.mxu0 0
        %1642 = vmatmul.mubr.bf16.gmra.mrb[0].mxu0 %v664
        %v1643 = vpop.f32.mrb[0].mxu0
        %v1644 = vadd.f32 %v752, %v1643
        %v1645 = vpop.f32.mrb[0].mxu0
        %v1646 = vadd.f32 %v756, %v1645
        %v1647 = vpop.f32.mrb[0].mxu0
        %v1648 = vadd.f32 %v752, %v1647
        %v1649 = vpop.f32.mrb[0].mxu0
        %v1650 = vadd.f32 %v756, %v1649
        %1651 = vmatprep.mubr.bf16.mxu0 0
        %1652 = vmatmul.mubr.bf16.gmra.mrb[0].mxu0 %v665
        %v1653 = vpop.f32.mrb[0].mxu0
        %v1654 = vadd.f32 %v752, %v1653
        %v1655 = vpop.f32.mrb[0].mxu0
        %v1656 = vadd.f32 %v756, %v1655
        %v1657 = vpop.f32.mrb[0].mxu0
        %v1658 = vadd.f32 %v752, %v1657
        %v1659 = vpop.f32.mrb[0].mxu0
        %v1660 = vadd.f32 %v756, %v1659
        %1661 = vmatprep.mubr.bf16.mxu0 0
        %1662 = vmatmul.mubr.bf16.gmra.mrb[0].mxu0 %v666
        %v1663 = vpop.f32.mrb[0].mxu0
        %v1664 = vadd.f32 %v752, %v1663
        %v1665 = vpop.f32.mrb[0].mxu0
        %v1666 = vadd.f32 %v756, %v1665
        %v1667 = vpop.f32.mrb[0].mxu0
        %v1668 = vadd.f32 %v752, %v1667
        %v1669 = vpop.f32.mrb[0].mxu0
        %v1670 = vadd.f32 %v756, %v1669
        %1671 = vdwg.mxu0
        %1672 = vmatprep.subr.bf16.mxu0 %v972
        %1673 = vmatpush1.bf16.msra.mxu0 %v971
        %1674 = vmatprep.subr.bf16.mxu0 %v980
        %1675 = vmatpush1.bf16.msra.mxu0 %v979
        %1676 = vmatprep.subr.bf16.mxu0 %v988
        %1677 = vmatpush1.bf16.msra.mxu0 %v987
        %1678 = vmatprep.subr.bf16.mxu0 %v996
        %1679 = vmatpush1.bf16.msra.mxu0 %v995
        %1680 = vmatprep.subr.bf16.mxu0 %v1004
        %1681 = vmatpush1.bf16.msra.mxu0 %v1003
        %1682 = vmatprep.subr.bf16.mxu0 %v1012
        %1683 = vmatpush1.bf16.msra.mxu0 %v1011
        %1684 = vmatprep.subr.bf16.mxu0 %v1020
        %1685 = vmatpush1.bf16.msra.mxu0 %v1019
        %1686 = vmatprep.subr.bf16.mxu0 %v1028
        %1687 = vmatpush1.bf16.msra.mxu0 %v1027
        %1688 = vmatprep.subr.bf16.mxu0 0
        %1689 = vmatpush1.bf16.msra.mxu0 0
        %1690 = vmatprep.subr.bf16.mxu0 0
        %1691 = vmatpush1.bf16.msra.mxu0 0
        %1692 = vmatprep.subr.bf16.mxu0 0
        %1693 = vmatpush1.bf16.msra.mxu0 0
        %1694 = vmatprep.subr.bf16.mxu0 0
        %1695 = vmatpush1.bf16.msra.mxu0 0
        %1696 = vmatprep.subr.bf16.mxu0 0
        %1697 = vmatpush1.bf16.msra.mxu0 0
        %1698 = vmatprep.subr.bf16.mxu0 0
        %1699 = vmatpush1.bf16.msra.mxu0 0
        %1700 = vmatprep.subr.bf16.mxu0 0
        %1701 = vmatpush1.bf16.msra.mxu0 0
        %1702 = vmatprep.subr.bf16.mxu0 0
        %1703 = vmatpush1.bf16.msra.mxu0 0
        %1704 = vmatprep.mubr.bf16.mxu0 0
        %1705 = vmatmul.mubr.bf16.gmra.mrb[0].mxu0 %v651
        %v1706 = vpop.f32.mrb[0].mxu0
        %v1707 = vadd.f32 %v760, %v1706
        %v1708 = vpop.f32.mrb[0].mxu0
        %v1709 = vadd.f32 %v764, %v1708
        %v1710 = vpop.f32.mrb[0].mxu0
        %v1711 = vadd.f32 %v760, %v1710
        %v1712 = vpop.f32.mrb[0].mxu0
        %v1713 = vadd.f32 %v764, %v1712
        %1714 = vmatprep.mubr.bf16.mxu0 0
        %1715 = vmatmul.mubr.bf16.gmra.mrb[0].mxu0 %v652
        %v1716 = vpop.f32.mrb[0].mxu0
        %v1717 = vadd.f32 %v760, %v1716
        %v1718 = vpop.f32.mrb[0].mxu0
        %v1719 = vadd.f32 %v764, %v1718
        %v1720 = vpop.f32.mrb[0].mxu0
        %v1721 = vadd.f32 %v760, %v1720
        %v1722 = vpop.f32.mrb[0].mxu0
        %v1723 = vadd.f32 %v764, %v1722
        %1724 = vmatprep.mubr.bf16.mxu0 0
        %1725 = vmatmul.mubr.bf16.gmra.mrb[0].mxu0 %v653
        %v1726 = vpop.f32.mrb[0].mxu0
        %v1727 = vadd.f32 %v760, %v1726
        %v1728 = vpop.f32.mrb[0].mxu0
        %v1729 = vadd.f32 %v764, %v1728
        %v1730 = vpop.f32.mrb[0].mxu0
        %v1731 = vadd.f32 %v760, %v1730
        %v1732 = vpop.f32.mrb[0].mxu0
        %v1733 = vadd.f32 %v764, %v1732
        %1734 = vmatprep.mubr.bf16.mxu0 0
        %1735 = vmatmul.mubr.bf16.gmra.mrb[0].mxu0 %v654
        %v1736 = vpop.f32.mrb[0].mxu0
        %v1737 = vadd.f32 %v760, %v1736
        %v1738 = vpop.f32.mrb[0].mxu0
        %v1739 = vadd.f32 %v764, %v1738
        %v1740 = vpop.f32.mrb[0].mxu0
        %v1741 = vadd.f32 %v760, %v1740
        %v1742 = vpop.f32.mrb[0].mxu0
        %v1743 = vadd.f32 %v764, %v1742
        %1744 = vmatprep.mubr.bf16.mxu0 0
        %1745 = vmatmul.mubr.bf16.gmra.mrb[0].mxu0 %v655
        %v1746 = vpop.f32.mrb[0].mxu0
        %v1747 = vadd.f32 %v760, %v1746
        %v1748 = vpop.f32.mrb[0].mxu0
        %v1749 = vadd.f32 %v764, %v1748
        %v1750 = vpop.f32.mrb[0].mxu0
        %v1751 = vadd.f32 %v760, %v1750
        %v1752 = vpop.f32.mrb[0].mxu0
        %v1753 = vadd.f32 %v764, %v1752
        %1754 = vmatprep.mubr.bf16.mxu0 0
        %1755 = vmatmul.mubr.bf16.gmra.mrb[0].mxu0 %v656
        %v1756 = vpop.f32.mrb[0].mxu0
        %v1757 = vadd.f32 %v760, %v1756
        %v1758 = vpop.f32.mrb[0].mxu0
        %v1759 = vadd.f32 %v764, %v1758
        %v1760 = vpop.f32.mrb[0].mxu0
        %v1761 = vadd.f32 %v760, %v1760
        %v1762 = vpop.f32.mrb[0].mxu0
        %v1763 = vadd.f32 %v764, %v1762
        %1764 = vmatprep.mubr.bf16.mxu0 0
        %1765 = vmatmul.mubr.bf16.gmra.mrb[0].mxu0 %v657
        %v1766 = vpop.f32.mrb[0].mxu0
        %v1767 = vadd.f32 %v760, %v1766
        %v1768 = vpop.f32.mrb[0].mxu0
        %v1769 = vadd.f32 %v764, %v1768
        %v1770 = vpop.f32.mrb[0].mxu0
        %v1771 = vadd.f32 %v760, %v1770
        %v1772 = vpop.f32.mrb[0].mxu0
        %v1773 = vadd.f32 %v764, %v1772
        %1774 = vmatprep.mubr.bf16.mxu0 0
        %1775 = vmatmul.mubr.bf16.gmra.mrb[0].mxu0 %v658
        %v1776 = vpop.f32.mrb[0].mxu0
        %v1777 = vadd.f32 %v760, %v1776
        %v1778 = vpop.f32.mrb[0].mxu0
        %v1779 = vadd.f32 %v764, %v1778
        %v1780 = vpop.f32.mrb[0].mxu0
        %v1781 = vadd.f32 %v760, %v1780
        %v1782 = vpop.f32.mrb[0].mxu0
        %v1783 = vadd.f32 %v764, %v1782
        %1784 = vmatprep.mubr.bf16.mxu0 0
        %1785 = vmatmul.mubr.bf16.gmra.mrb[0].mxu0 %v659
        %v1786 = vpop.f32.mrb[0].mxu0
        %v1787 = vadd.f32 %v760, %v1786
        %v1788 = vpop.f32.mrb[0].mxu0
        %v1789 = vadd.f32 %v764, %v1788
        %v1790 = vpop.f32.mrb[0].mxu0
        %v1791 = vadd.f32 %v760, %v1790
        %v1792 = vpop.f32.mrb[0].mxu0
        %v1793 = vadd.f32 %v764, %v1792
        %1794 = vmatprep.mubr.bf16.mxu0 0
        %1795 = vmatmul.mubr.bf16.gmra.mrb[0].mxu0 %v660
        %v1796 = vpop.f32.mrb[0].mxu0
        %v1797 = vadd.f32 %v760, %v1796
        %v1798 = vpop.f32.mrb[0].mxu0
        %v1799 = vadd.f32 %v764, %v1798
        %v1800 = vpop.f32.mrb[0].mxu0
        %v1801 = vadd.f32 %v760, %v1800
        %v1802 = vpop.f32.mrb[0].mxu0
        %v1803 = vadd.f32 %v764, %v1802
        %1804 = vmatprep.mubr.bf16.mxu0 0
        %1805 = vmatmul.mubr.bf16.gmra.mrb[0].mxu0 %v661
        %v1806 = vpop.f32.mrb[0].mxu0
        %v1807 = vadd.f32 %v760, %v1806
        %v1808 = vpop.f32.mrb[0].mxu0
        %v1809 = vadd.f32 %v764, %v1808
        %v1810 = vpop.f32.mrb[0].mxu0
        %v1811 = vadd.f32 %v760, %v1810
        %v1812 = vpop.f32.mrb[0].mxu0
        %v1813 = vadd.f32 %v764, %v1812
        %1814 = vmatprep.mubr.bf16.mxu0 0
        %1815 = vmatmul.mubr.bf16.gmra.mrb[0].mxu0 %v662
        %v1816 = vpop.f32.mrb[0].mxu0
        %v1817 = vadd.f32 %v760, %v1816
        %v1818 = vpop.f32.mrb[0].mxu0
        %v1819 = vadd.f32 %v764, %v1818
        %v1820 = vpop.f32.mrb[0].mxu0
        %v1821 = vadd.f32 %v760, %v1820
        %v1822 = vpop.f32.mrb[0].mxu0
        %v1823 = vadd.f32 %v764, %v1822
        %1824 = vmatprep.mubr.bf16.mxu0 0
        %1825 = vmatmul.mubr.bf16.gmra.mrb[0].mxu0 %v663
        %v1826 = vpop.f32.mrb[0].mxu0
        %v1827 = vadd.f32 %v760, %v1826
        %v1828 = vpop.f32.mrb[0].mxu0
        %v1829 = vadd.f32 %v764, %v1828
        %v1830 = vpop.f32.mrb[0].mxu0
        %v1831 = vadd.f32 %v760, %v1830
        %v1832 = vpop.f32.mrb[0].mxu0
        %v1833 = vadd.f32 %v764, %v1832
        %1834 = vmatprep.mubr.bf16.mxu0 0
        %1835 = vmatmul.mubr.bf16.gmra.mrb[0].mxu0 %v664
        %v1836 = vpop.f32.mrb[0].mxu0
        %v1837 = vadd.f32 %v760, %v1836
        %v1838 = vpop.f32.mrb[0].mxu0
        %v1839 = vadd.f32 %v764, %v1838
        %v1840 = vpop.f32.mrb[0].mxu0
        %v1841 = vadd.f32 %v760, %v1840
        %v1842 = vpop.f32.mrb[0].mxu0
        %v1843 = vadd.f32 %v764, %v1842
        %1844 = vmatprep.mubr.bf16.mxu0 0
        %1845 = vmatmul.mubr.bf16.gmra.mrb[0].mxu0 %v665
        %v1846 = vpop.f32.mrb[0].mxu0
        %v1847 = vadd.f32 %v760, %v1846
        %v1848 = vpop.f32.mrb[0].mxu0
        %v1849 = vadd.f32 %v764, %v1848
        %v1850 = vpop.f32.mrb[0].mxu0
        %v1851 = vadd.f32 %v760, %v1850
        %v1852 = vpop.f32.mrb[0].mxu0
        %v1853 = vadd.f32 %v764, %v1852
        %1854 = vmatprep.mubr.bf16.mxu0 0
        %1855 = vmatmul.mubr.bf16.gmra.mrb[0].mxu0 %v666
        %v1856 = vpop.f32.mrb[0].mxu0
        %v1857 = vadd.f32 %v760, %v1856
        %v1858 = vpop.f32.mrb[0].mxu0
        %v1859 = vadd.f32 %v764, %v1858
        %v1860 = vpop.f32.mrb[0].mxu0
        %v1861 = vadd.f32 %v760, %v1860
        %v1862 = vpop.f32.mrb[0].mxu0
        %v1863 = vadd.f32 %v764, %v1862
        %1864 = vdwg.mxu0
        %1865 = vst [vmem:[#allocation4] sm:$0xff] %v1128
        %1866 = vst [vmem:[#allocation4 + $0x8] sm:$0xff] %v1130
        %1867 = vst [vmem:[#allocation4 + $0x10] sm:$0xff] %v1321
        %1868 = vst [vmem:[#allocation4 + $0x18] sm:$0xff] %v1323
        %1869 = vst [vmem:[#allocation4 + $0x20] sm:$0xff] %v1514
        %1870 = vst [vmem:[#allocation4 + $0x28] sm:$0xff] %v1516
        %1871 = vst [vmem:[#allocation4 + $0x30] sm:$0xff] %v1707
        %1872 = vst [vmem:[#allocation4 + $0x38] sm:$0xff] %v1709
        %1873 = vst [vmem:[#allocation4 + $0x40] sm:$0xff] %v1132
        %1874 = vst [vmem:[#allocation4 + $0x48] sm:$0xff] %v1134
        %1875 = vst [vmem:[#allocation4 + $0x50] sm:$0xff] %v1325
        %1876 = vst [vmem:[#allocation4 + $0x58] sm:$0xff] %v1327
        %1877 = vst [vmem:[#allocation4 + $0x60] sm:$0xff] %v1518
        %1878 = vst [vmem:[#allocation4 + $0x68] sm:$0xff] %v1520
        %1879 = vst [vmem:[#allocation4 + $0x70] sm:$0xff] %v1711
        %1880 = vst [vmem:[#allocation4 + $0x78] sm:$0xff] %v1713
        %1881 = vst [vmem:[#allocation4 + $0x80] sm:$0xff] %v1138
        %1882 = vst [vmem:[#allocation4 + $0x88] sm:$0xff] %v1140
        %1883 = vst [vmem:[#allocation4 + $0x90] sm:$0xff] %v1331
        %1884 = vst [vmem:[#allocation4 + $0x98] sm:$0xff] %v1333
        %1885 = vst [vmem:[#allocation4 + $0xa0] sm:$0xff] %v1524
        %1886 = vst [vmem:[#allocation4 + $0xa8] sm:$0xff] %v1526
        %1887 = vst [vmem:[#allocation4 + $0xb0] sm:$0xff] %v1717
        %1888 = vst [vmem:[#allocation4 + $0xb8] sm:$0xff] %v1719
        %1889 = vst [vmem:[#allocation4 + $0xc0] sm:$0xff] %v1142
        %1890 = vst [vmem:[#allocation4 + $0xc8] sm:$0xff] %v1144
        %1891 = vst [vmem:[#allocation4 + $0xd0] sm:$0xff] %v1335
        %1892 = vst [vmem:[#allocation4 + $0xd8] sm:$0xff] %v1337
        %1893 = vst [vmem:[#allocation4 + $0xe0] sm:$0xff] %v1528
        %1894 = vst [vmem:[#allocation4 + $0xe8] sm:$0xff] %v1530
        %1895 = vst [vmem:[#allocation4 + $0xf0] sm:$0xff] %v1721
        %1896 = vst [vmem:[#allocation4 + $0xf8] sm:$0xff] %v1723
        %1897 = vst [vmem:[#allocation4 + $0x100] sm:$0xff] %v1148
        %1898 = vst [vmem:[#allocation4 + $0x108] sm:$0xff] %v1150
        %1899 = vst [vmem:[#allocation4 + $0x110] sm:$0xff] %v1341
        %1900 = vst [vmem:[#allocation4 + $0x118] sm:$0xff] %v1343
        %1901 = vst [vmem:[#allocation4 + $0x120] sm:$0xff] %v1534
        %1902 = vst [vmem:[#allocation4 + $0x128] sm:$0xff] %v1536
        %1903 = vst [vmem:[#allocation4 + $0x130] sm:$0xff] %v1727
        %1904 = vst [vmem:[#allocation4 + $0x138] sm:$0xff] %v1729
        %1905 = vst [vmem:[#allocation4 + $0x140] sm:$0xff] %v1152
        %1906 = vst [vmem:[#allocation4 + $0x148] sm:$0xff] %v1154
        %1907 = vst [vmem:[#allocation4 + $0x150] sm:$0xff] %v1345
        %1908 = vst [vmem:[#allocation4 + $0x158] sm:$0xff] %v1347
        %1909 = vst [vmem:[#allocation4 + $0x160] sm:$0xff] %v1538
        %1910 = vst [vmem:[#allocation4 + $0x168] sm:$0xff] %v1540
        %1911 = vst [vmem:[#allocation4 + $0x170] sm:$0xff] %v1731
        %1912 = vst [vmem:[#allocation4 + $0x178] sm:$0xff] %v1733
        %1913 = vst [vmem:[#allocation4 + $0x180] sm:$0xff] %v1158
        %1914 = vst [vmem:[#allocation4 + $0x188] sm:$0xff] %v1160
        %1915 = vst [vmem:[#allocation4 + $0x190] sm:$0xff] %v1351
        %1916 = vst [vmem:[#allocation4 + $0x198] sm:$0xff] %v1353
        %1917 = vst [vmem:[#allocation4 + $0x1a0] sm:$0xff] %v1544
        %1918 = vst [vmem:[#allocation4 + $0x1a8] sm:$0xff] %v1546
        %1919 = vst [vmem:[#allocation4 + $0x1b0] sm:$0xff] %v1737
        %1920 = vst [vmem:[#allocation4 + $0x1b8] sm:$0xff] %v1739
        %1921 = vst [vmem:[#allocation4 + $0x1c0] sm:$0xff] %v1162
        %1922 = vst [vmem:[#allocation4 + $0x1c8] sm:$0xff] %v1164
        %1923 = vst [vmem:[#allocation4 + $0x1d0] sm:$0xff] %v1355
        %1924 = vst [vmem:[#allocation4 + $0x1d8] sm:$0xff] %v1357
        %1925 = vst [vmem:[#allocation4 + $0x1e0] sm:$0xff] %v1548
        %1926 = vst [vmem:[#allocation4 + $0x1e8] sm:$0xff] %v1550
        %1927 = vst [vmem:[#allocation4 + $0x1f0] sm:$0xff] %v1741
        %1928 = vst [vmem:[#allocation4 + $0x1f8] sm:$0xff] %v1743
        %1929 = vst [vmem:[#allocation4 + $0x200] sm:$0xff] %v1168
        %1930 = vst [vmem:[#allocation4 + $0x208] sm:$0xff] %v1170
        %1931 = vst [vmem:[#allocation4 + $0x210] sm:$0xff] %v1361
        %1932 = vst [vmem:[#allocation4 + $0x218] sm:$0xff] %v1363
        %1933 = vst [vmem:[#allocation4 + $0x220] sm:$0xff] %v1554
        %1934 = vst [vmem:[#allocation4 + $0x228] sm:$0xff] %v1556
        %1935 = vst [vmem:[#allocation4 + $0x230] sm:$0xff] %v1747
        %1936 = vst [vmem:[#allocation4 + $0x238] sm:$0xff] %v1749
        %1937 = vst [vmem:[#allocation4 + $0x240] sm:$0xff] %v1172
        %1938 = vst [vmem:[#allocation4 + $0x248] sm:$0xff] %v1174
        %1939 = vst [vmem:[#allocation4 + $0x250] sm:$0xff] %v1365
        %1940 = vst [vmem:[#allocation4 + $0x258] sm:$0xff] %v1367
        %1941 = vst [vmem:[#allocation4 + $0x260] sm:$0xff] %v1558
        %1942 = vst [vmem:[#allocation4 + $0x268] sm:$0xff] %v1560
        %1943 = vst [vmem:[#allocation4 + $0x270] sm:$0xff] %v1751
        %1944 = vst [vmem:[#allocation4 + $0x278] sm:$0xff] %v1753
        %1945 = vst [vmem:[#allocation4 + $0x280] sm:$0xff] %v1178
        %1946 = vst [vmem:[#allocation4 + $0x288] sm:$0xff] %v1180
        %1947 = vst [vmem:[#allocation4 + $0x290] sm:$0xff] %v1371
        %1948 = vst [vmem:[#allocation4 + $0x298] sm:$0xff] %v1373
        %1949 = vst [vmem:[#allocation4 + $0x2a0] sm:$0xff] %v1564
        %1950 = vst [vmem:[#allocation4 + $0x2a8] sm:$0xff] %v1566
        %1951 = vst [vmem:[#allocation4 + $0x2b0] sm:$0xff] %v1757
        %1952 = vst [vmem:[#allocation4 + $0x2b8] sm:$0xff] %v1759
        %1953 = vst [vmem:[#allocation4 + $0x2c0] sm:$0xff] %v1182
        %1954 = vst [vmem:[#allocation4 + $0x2c8] sm:$0xff] %v1184
        %1955 = vst [vmem:[#allocation4 + $0x2d0] sm:$0xff] %v1375
        %1956 = vst [vmem:[#allocation4 + $0x2d8] sm:$0xff] %v1377
        %1957 = vst [vmem:[#allocation4 + $0x2e0] sm:$0xff] %v1568
        %1958 = vst [vmem:[#allocation4 + $0x2e8] sm:$0xff] %v1570
        %1959 = vst [vmem:[#allocation4 + $0x2f0] sm:$0xff] %v1761
        %1960 = vst [vmem:[#allocation4 + $0x2f8] sm:$0xff] %v1763
        %1961 = vst [vmem:[#allocation4 + $0x300] sm:$0xff] %v1188
        %1962 = vst [vmem:[#allocation4 + $0x308] sm:$0xff] %v1190
        %1963 = vst [vmem:[#allocation4 + $0x310] sm:$0xff] %v1381
        %1964 = vst [vmem:[#allocation4 + $0x318] sm:$0xff] %v1383
        %1965 = vst [vmem:[#allocation4 + $0x320] sm:$0xff] %v1574
        %1966 = vst [vmem:[#allocation4 + $0x328] sm:$0xff] %v1576
        %1967 = vst [vmem:[#allocation4 + $0x330] sm:$0xff] %v1767
        %1968 = vst [vmem:[#allocation4 + $0x338] sm:$0xff] %v1769
        %1969 = vst [vmem:[#allocation4 + $0x340] sm:$0xff] %v1192
        %1970 = vst [vmem:[#allocation4 + $0x348] sm:$0xff] %v1194
        %1971 = vst [vmem:[#allocation4 + $0x350] sm:$0xff] %v1385
        %1972 = vst [vmem:[#allocation4 + $0x358] sm:$0xff] %v1387
        %1973 = vst [vmem:[#allocation4 + $0x360] sm:$0xff] %v1578
        %1974 = vst [vmem:[#allocation4 + $0x368] sm:$0xff] %v1580
        %1975 = vst [vmem:[#allocation4 + $0x370] sm:$0xff] %v1771
        %1976 = vst [vmem:[#allocation4 + $0x378] sm:$0xff] %v1773
        %1977 = vst [vmem:[#allocation4 + $0x380] sm:$0xff] %v1198
        %1978 = vst [vmem:[#allocation4 + $0x388] sm:$0xff] %v1200
        %1979 = vst [vmem:[#allocation4 + $0x390] sm:$0xff] %v1391
        %1980 = vst [vmem:[#allocation4 + $0x398] sm:$0xff] %v1393
        %1981 = vst [vmem:[#allocation4 + $0x3a0] sm:$0xff] %v1584
        %1982 = vst [vmem:[#allocation4 + $0x3a8] sm:$0xff] %v1586
        %1983 = vst [vmem:[#allocation4 + $0x3b0] sm:$0xff] %v1777
        %1984 = vst [vmem:[#allocation4 + $0x3b8] sm:$0xff] %v1779
        %1985 = vst [vmem:[#allocation4 + $0x3c0] sm:$0xff] %v1202
        %1986 = vst [vmem:[#allocation4 + $0x3c8] sm:$0xff] %v1204
        %1987 = vst [vmem:[#allocation4 + $0x3d0] sm:$0xff] %v1395
        %1988 = vst [vmem:[#allocation4 + $0x3d8] sm:$0xff] %v1397
        %1989 = vst [vmem:[#allocation4 + $0x3e0] sm:$0xff] %v1588
        %1990 = vst [vmem:[#allocation4 + $0x3e8] sm:$0xff] %v1590
        %1991 = vst [vmem:[#allocation4 + $0x3f0] sm:$0xff] %v1781
        %1992 = vst [vmem:[#allocation4 + $0x3f8] sm:$0xff] %v1783
        %1993 = vst [vmem:[#allocation4 + $0x400] sm:$0xff] %v1208
        %1994 = vst [vmem:[#allocation4 + $0x408] sm:$0xff] %v1210
        %1995 = vst [vmem:[#allocation4 + $0x410] sm:$0xff] %v1401
        %1996 = vst [vmem:[#allocation4 + $0x418] sm:$0xff] %v1403
        %1997 = vst [vmem:[#allocation4 + $0x420] sm:$0xff] %v1594
        %1998 = vst [vmem:[#allocation4 + $0x428] sm:$0xff] %v1596
        %1999 = vst [vmem:[#allocation4 + $0x430] sm:$0xff] %v1787
        %2000 = vst [vmem:[#allocation4 + $0x438] sm:$0xff] %v1789
        %2001 = vst [vmem:[#allocation4 + $0x440] sm:$0xff] %v1212
        %2002 = vst [vmem:[#allocation4 + $0x448] sm:$0xff] %v1214
        %2003 = vst [vmem:[#allocation4 + $0x450] sm:$0xff] %v1405
        %2004 = vst [vmem:[#allocation4 + $0x458] sm:$0xff] %v1407
        %2005 = vst [vmem:[#allocation4 + $0x460] sm:$0xff] %v1598
        %2006 = vst [vmem:[#allocation4 + $0x468] sm:$0xff] %v1600
        %2007 = vst [vmem:[#allocation4 + $0x470] sm:$0xff] %v1791
        %2008 = vst [vmem:[#allocation4 + $0x478] sm:$0xff] %v1793
        %2009 = vst [vmem:[#allocation4 + $0x480] sm:$0xff] %v1218
        %2010 = vst [vmem:[#allocation4 + $0x488] sm:$0xff] %v1220
        %2011 = vst [vmem:[#allocation4 + $0x490] sm:$0xff] %v1411
        %2012 = vst [vmem:[#allocation4 + $0x498] sm:$0xff] %v1413
        %2013 = vst [vmem:[#allocation4 + $0x4a0] sm:$0xff] %v1604
        %2014 = vst [vmem:[#allocation4 + $0x4a8] sm:$0xff] %v1606
        %2015 = vst [vmem:[#allocation4 + $0x4b0] sm:$0xff] %v1797
        %2016 = vst [vmem:[#allocation4 + $0x4b8] sm:$0xff] %v1799
        %2017 = vst [vmem:[#allocation4 + $0x4c0] sm:$0xff] %v1222
        %2018 = vst [vmem:[#allocation4 + $0x4c8] sm:$0xff] %v1224
        %2019 = vst [vmem:[#allocation4 + $0x4d0] sm:$0xff] %v1415
        %2020 = vst [vmem:[#allocation4 + $0x4d8] sm:$0xff] %v1417
        %2021 = vst [vmem:[#allocation4 + $0x4e0] sm:$0xff] %v1608
        %2022 = vst [vmem:[#allocation4 + $0x4e8] sm:$0xff] %v1610
        %2023 = vst [vmem:[#allocation4 + $0x4f0] sm:$0xff] %v1801
        %2024 = vst [vmem:[#allocation4 + $0x4f8] sm:$0xff] %v1803
        %2025 = vst [vmem:[#allocation4 + $0x500] sm:$0xff] %v1228
        %2026 = vst [vmem:[#allocation4 + $0x508] sm:$0xff] %v1230
        %2027 = vst [vmem:[#allocation4 + $0x510] sm:$0xff] %v1421
        %2028 = vst [vmem:[#allocation4 + $0x518] sm:$0xff] %v1423
        %2029 = vst [vmem:[#allocation4 + $0x520] sm:$0xff] %v1614
        %2030 = vst [vmem:[#allocation4 + $0x528] sm:$0xff] %v1616
        %2031 = vst [vmem:[#allocation4 + $0x530] sm:$0xff] %v1807
        %2032 = vst [vmem:[#allocation4 + $0x538] sm:$0xff] %v1809
        %2033 = vst [vmem:[#allocation4 + $0x540] sm:$0xff] %v1232
        %2034 = vst [vmem:[#allocation4 + $0x548] sm:$0xff] %v1234
        %2035 = vst [vmem:[#allocation4 + $0x550] sm:$0xff] %v1425
        %2036 = vst [vmem:[#allocation4 + $0x558] sm:$0xff] %v1427
        %2037 = vst [vmem:[#allocation4 + $0x560] sm:$0xff] %v1618
        %2038 = vst [vmem:[#allocation4 + $0x568] sm:$0xff] %v1620
        %2039 = vst [vmem:[#allocation4 + $0x570] sm:$0xff] %v1811
        %2040 = vst [vmem:[#allocation4 + $0x578] sm:$0xff] %v1813
        %2041 = vst [vmem:[#allocation4 + $0x580] sm:$0xff] %v1238
        %2042 = vst [vmem:[#allocation4 + $0x588] sm:$0xff] %v1240
        %2043 = vst [vmem:[#allocation4 + $0x590] sm:$0xff] %v1431
        %2044 = vst [vmem:[#allocation4 + $0x598] sm:$0xff] %v1433
        %2045 = vst [vmem:[#allocation4 + $0x5a0] sm:$0xff] %v1624
        %2046 = vst [vmem:[#allocation4 + $0x5a8] sm:$0xff] %v1626
        %2047 = vst [vmem:[#allocation4 + $0x5b0] sm:$0xff] %v1817
        %2048 = vst [vmem:[#allocation4 + $0x5b8] sm:$0xff] %v1819
        %2049 = vst [vmem:[#allocation4 + $0x5c0] sm:$0xff] %v1242
        %2050 = vst [vmem:[#allocation4 + $0x5c8] sm:$0xff] %v1244
        %2051 = vst [vmem:[#allocation4 + $0x5d0] sm:$0xff] %v1435
        %2052 = vst [vmem:[#allocation4 + $0x5d8] sm:$0xff] %v1437
        %2053 = vst [vmem:[#allocation4 + $0x5e0] sm:$0xff] %v1628
        %2054 = vst [vmem:[#allocation4 + $0x5e8] sm:$0xff] %v1630
        %2055 = vst [vmem:[#allocation4 + $0x5f0] sm:$0xff] %v1821
        %2056 = vst [vmem:[#allocation4 + $0x5f8] sm:$0xff] %v1823
        %2057 = vst [vmem:[#allocation4 + $0x600] sm:$0xff] %v1248
        %2058 = vst [vmem:[#allocation4 + $0x608] sm:$0xff] %v1250
        %2059 = vst [vmem:[#allocation4 + $0x610] sm:$0xff] %v1441
        %2060 = vst [vmem:[#allocation4 + $0x618] sm:$0xff] %v1443
        %2061 = vst [vmem:[#allocation4 + $0x620] sm:$0xff] %v1634
        %2062 = vst [vmem:[#allocation4 + $0x628] sm:$0xff] %v1636
        %2063 = vst [vmem:[#allocation4 + $0x630] sm:$0xff] %v1827
        %2064 = vst [vmem:[#allocation4 + $0x638] sm:$0xff] %v1829
        %2065 = vst [vmem:[#allocation4 + $0x640] sm:$0xff] %v1252
        %2066 = vst [vmem:[#allocation4 + $0x648] sm:$0xff] %v1254
        %2067 = vst [vmem:[#allocation4 + $0x650] sm:$0xff] %v1445
        %2068 = vst [vmem:[#allocation4 + $0x658] sm:$0xff] %v1447
        %2069 = vst [vmem:[#allocation4 + $0x660] sm:$0xff] %v1638
        %2070 = vst [vmem:[#allocation4 + $0x668] sm:$0xff] %v1640
        %2071 = vst [vmem:[#allocation4 + $0x670] sm:$0xff] %v1831
        %2072 = vst [vmem:[#allocation4 + $0x678] sm:$0xff] %v1833
        %2073 = vst [vmem:[#allocation4 + $0x680] sm:$0xff] %v1258
        %2074 = vst [vmem:[#allocation4 + $0x688] sm:$0xff] %v1260
        %2075 = vst [vmem:[#allocation4 + $0x690] sm:$0xff] %v1451
        %2076 = vst [vmem:[#allocation4 + $0x698] sm:$0xff] %v1453
        %2077 = vst [vmem:[#allocation4 + $0x6a0] sm:$0xff] %v1644
        %2078 = vst [vmem:[#allocation4 + $0x6a8] sm:$0xff] %v1646
        %2079 = vst [vmem:[#allocation4 + $0x6b0] sm:$0xff] %v1837
        %2080 = vst [vmem:[#allocation4 + $0x6b8] sm:$0xff] %v1839
        %2081 = vst [vmem:[#allocation4 + $0x6c0] sm:$0xff] %v1262
        %2082 = vst [vmem:[#allocation4 + $0x6c8] sm:$0xff] %v1264
        %2083 = vst [vmem:[#allocation4 + $0x6d0] sm:$0xff] %v1455
        %2084 = vst [vmem:[#allocation4 + $0x6d8] sm:$0xff] %v1457
        %2085 = vst [vmem:[#allocation4 + $0x6e0] sm:$0xff] %v1648
        %2086 = vst [vmem:[#allocation4 + $0x6e8] sm:$0xff] %v1650
        %2087 = vst [vmem:[#allocation4 + $0x6f0] sm:$0xff] %v1841
        %2088 = vst [vmem:[#allocation4 + $0x6f8] sm:$0xff] %v1843
        %2089 = vst [vmem:[#allocation4 + $0x700] sm:$0xff] %v1268
        %2090 = vst [vmem:[#allocation4 + $0x708] sm:$0xff] %v1270
        %2091 = vst [vmem:[#allocation4 + $0x710] sm:$0xff] %v1461
        %2092 = vst [vmem:[#allocation4 + $0x718] sm:$0xff] %v1463
        %2093 = vst [vmem:[#allocation4 + $0x720] sm:$0xff] %v1654
        %2094 = vst [vmem:[#allocation4 + $0x728] sm:$0xff] %v1656
        %2095 = vst [vmem:[#allocation4 + $0x730] sm:$0xff] %v1847
        %2096 = vst [vmem:[#allocation4 + $0x738] sm:$0xff] %v1849
        %2097 = vst [vmem:[#allocation4 + $0x740] sm:$0xff] %v1272
        %2098 = vst [vmem:[#allocation4 + $0x748] sm:$0xff] %v1274
        %2099 = vst [vmem:[#allocation4 + $0x750] sm:$0xff] %v1465
        %2100 = vst [vmem:[#allocation4 + $0x758] sm:$0xff] %v1467
        %2101 = vst [vmem:[#allocation4 + $0x760] sm:$0xff] %v1658
        %2102 = vst [vmem:[#allocation4 + $0x768] sm:$0xff] %v1660
        %2103 = vst [vmem:[#allocation4 + $0x770] sm:$0xff] %v1851
        %2104 = vst [vmem:[#allocation4 + $0x778] sm:$0xff] %v1853
        %2105 = vst [vmem:[#allocation4 + $0x780] sm:$0xff] %v1278
        %2106 = vst [vmem:[#allocation4 + $0x788] sm:$0xff] %v1280
        %2107 = vst [vmem:[#allocation4 + $0x790] sm:$0xff] %v1471
        %2108 = vst [vmem:[#allocation4 + $0x798] sm:$0xff] %v1473
        %2109 = vst [vmem:[#allocation4 + $0x7a0] sm:$0xff] %v1664
        %2110 = vst [vmem:[#allocation4 + $0x7a8] sm:$0xff] %v1666
        %2111 = vst [vmem:[#allocation4 + $0x7b0] sm:$0xff] %v1857
        %2112 = vst [vmem:[#allocation4 + $0x7b8] sm:$0xff] %v1859
        %2113 = vst [vmem:[#allocation4 + $0x7c0] sm:$0xff] %v1282
        %2114 = vst [vmem:[#allocation4 + $0x7c8] sm:$0xff] %v1284
        %2115 = vst [vmem:[#allocation4 + $0x7d0] sm:$0xff] %v1475
        %2116 = vst [vmem:[#allocation4 + $0x7d8] sm:$0xff] %v1477
        %2117 = vst [vmem:[#allocation4 + $0x7e0] sm:$0xff] %v1668
        %2118 = vst [vmem:[#allocation4 + $0x7e8] sm:$0xff] %v1670
        %2119 = vst [vmem:[#allocation4 + $0x7f0] sm:$0xff] %v1861
        %2120 = vst [vmem:[#allocation4 + $0x7f8] sm:$0xff] %v1863
        %v2121 = vld [vmem:[#allocation5] sm:$0xff]
        %v2122 = vld [vmem:[#allocation5 + $0x8] sm:$0xff]
        %v2123 = vld [vmem:[#allocation5 + $0x10] sm:$0xff]
        %v2124 = vld [vmem:[#allocation5 + $0x18] sm:$0xff]
        %v2125 = vld [vmem:[#allocation5 + $0x20] sm:$0xff]
        %v2126 = vld [vmem:[#allocation5 + $0x28] sm:$0xff]
        %v2127 = vld [vmem:[#allocation5 + $0x30] sm:$0xff]
        %v2128 = vld [vmem:[#allocation5 + $0x38] sm:$0xff]
        %v2129 = vld [vmem:[#allocation5 + $0x40] sm:$0xff]
        %v2130 = vld [vmem:[#allocation5 + $0x48] sm:$0xff]
        %v2131 = vld [vmem:[#allocation5 + $0x50] sm:$0xff]
        %v2132 = vld [vmem:[#allocation5 + $0x58] sm:$0xff]
        %v2133 = vld [vmem:[#allocation5 + $0x60] sm:$0xff]
        %v2134 = vld [vmem:[#allocation5 + $0x68] sm:$0xff]
        %v2135 = vld [vmem:[#allocation5 + $0x70] sm:$0xff]
        %v2136 = vld [vmem:[#allocation5 + $0x78] sm:$0xff]
        %v2137 = vld [vmem:[#allocation5 + $0x80] sm:$0xff]
        %v2138 = vld [vmem:[#allocation5 + $0x88] sm:$0xff]
        %v2139 = vld [vmem:[#allocation5 + $0x90] sm:$0xff]
        %v2140 = vld [vmem:[#allocation5 + $0x98] sm:$0xff]
        %v2141 = vld [vmem:[#allocation5 + $0xa0] sm:$0xff]
        %v2142 = vld [vmem:[#allocation5 + $0xa8] sm:$0xff]
        %v2143 = vld [vmem:[#allocation5 + $0xb0] sm:$0xff]
        %v2144 = vld [vmem:[#allocation5 + $0xb8] sm:$0xff]
        %v2145 = vld [vmem:[#allocation5 + $0xc0] sm:$0xff]
        %v2146 = vld [vmem:[#allocation5 + $0xc8] sm:$0xff]
        %v2147 = vld [vmem:[#allocation5 + $0xd0] sm:$0xff]
        %v2148 = vld [vmem:[#allocation5 + $0xd8] sm:$0xff]
        %v2149 = vld [vmem:[#allocation5 + $0xe0] sm:$0xff]
        %v2150 = vld [vmem:[#allocation5 + $0xe8] sm:$0xff]
        %v2151 = vld [vmem:[#allocation5 + $0xf0] sm:$0xff]
        %v2152 = vld [vmem:[#allocation5 + $0xf8] sm:$0xff]
        %v2153 = vld [vmem:[#allocation5 + $0x100] sm:$0xff]
        %v2154 = vld [vmem:[#allocation5 + $0x108] sm:$0xff]
        %v2155 = vld [vmem:[#allocation5 + $0x110] sm:$0xff]
        %v2156 = vld [vmem:[#allocation5 + $0x118] sm:$0xff]
        %v2157 = vld [vmem:[#allocation5 + $0x120] sm:$0xff]
        %v2158 = vld [vmem:[#allocation5 + $0x128] sm:$0xff]
        %v2159 = vld [vmem:[#allocation5 + $0x130] sm:$0xff]
        %v2160 = vld [vmem:[#allocation5 + $0x138] sm:$0xff]
        %v2161 = vld [vmem:[#allocation5 + $0x140] sm:$0xff]
        %v2162 = vld [vmem:[#allocation5 + $0x148] sm:$0xff]
        %v2163 = vld [vmem:[#allocation5 + $0x150] sm:$0xff]
        %v2164 = vld [vmem:[#allocation5 + $0x158] sm:$0xff]
        %v2165 = vld [vmem:[#allocation5 + $0x160] sm:$0xff]
        %v2166 = vld [vmem:[#allocation5 + $0x168] sm:$0xff]
        %v2167 = vld [vmem:[#allocation5 + $0x170] sm:$0xff]
        %v2168 = vld [vmem:[#allocation5 + $0x178] sm:$0xff]
        %v2169 = vld [vmem:[#allocation5 + $0x180] sm:$0xff]
        %v2170 = vld [vmem:[#allocation5 + $0x188] sm:$0xff]
        %v2171 = vld [vmem:[#allocation5 + $0x190] sm:$0xff]
        %v2172 = vld [vmem:[#allocation5 + $0x198] sm:$0xff]
        %v2173 = vld [vmem:[#allocation5 + $0x1a0] sm:$0xff]
        %v2174 = vld [vmem:[#allocation5 + $0x1a8] sm:$0xff]
        %v2175 = vld [vmem:[#allocation5 + $0x1b0] sm:$0xff]
        %v2176 = vld [vmem:[#allocation5 + $0x1b8] sm:$0xff]
        %v2177 = vld [vmem:[#allocation5 + $0x1c0] sm:$0xff]
        %v2178 = vld [vmem:[#allocation5 + $0x1c8] sm:$0xff]
        %v2179 = vld [vmem:[#allocation5 + $0x1d0] sm:$0xff]
        %v2180 = vld [vmem:[#allocation5 + $0x1d8] sm:$0xff]
        %v2181 = vld [vmem:[#allocation5 + $0x1e0] sm:$0xff]
        %v2182 = vld [vmem:[#allocation5 + $0x1e8] sm:$0xff]
        %v2183 = vld [vmem:[#allocation5 + $0x1f0] sm:$0xff]
        %v2184 = vld [vmem:[#allocation5 + $0x1f8] sm:$0xff]
        %v2185 = vld [vmem:[#allocation5 + $0x200] sm:$0xff]
        %v2186 = vld [vmem:[#allocation5 + $0x208] sm:$0xff]
        %v2187 = vld [vmem:[#allocation5 + $0x210] sm:$0xff]
        %v2188 = vld [vmem:[#allocation5 + $0x218] sm:$0xff]
        %v2189 = vld [vmem:[#allocation5 + $0x220] sm:$0xff]
        %v2190 = vld [vmem:[#allocation5 + $0x228] sm:$0xff]
        %v2191 = vld [vmem:[#allocation5 + $0x230] sm:$0xff]
        %v2192 = vld [vmem:[#allocation5 + $0x238] sm:$0xff]
        %v2193 = vld [vmem:[#allocation5 + $0x240] sm:$0xff]
        %v2194 = vld [vmem:[#allocation5 + $0x248] sm:$0xff]
        %v2195 = vld [vmem:[#allocation5 + $0x250] sm:$0xff]
        %v2196 = vld [vmem:[#allocation5 + $0x258] sm:$0xff]
        %v2197 = vld [vmem:[#allocation5 + $0x260] sm:$0xff]
        %v2198 = vld [vmem:[#allocation5 + $0x268] sm:$0xff]
        %v2199 = vld [vmem:[#allocation5 + $0x270] sm:$0xff]
        %v2200 = vld [vmem:[#allocation5 + $0x278] sm:$0xff]
        %v2201 = vld [vmem:[#allocation5 + $0x280] sm:$0xff]
        %v2202 = vld [vmem:[#allocation5 + $0x288] sm:$0xff]
        %v2203 = vld [vmem:[#allocation5 + $0x290] sm:$0xff]
        %v2204 = vld [vmem:[#allocation5 + $0x298] sm:$0xff]
        %v2205 = vld [vmem:[#allocation5 + $0x2a0] sm:$0xff]
        %v2206 = vld [vmem:[#allocation5 + $0x2a8] sm:$0xff]
        %v2207 = vld [vmem:[#allocation5 + $0x2b0] sm:$0xff]
        %v2208 = vld [vmem:[#allocation5 + $0x2b8] sm:$0xff]
        %v2209 = vld [vmem:[#allocation5 + $0x2c0] sm:$0xff]
        %v2210 = vld [vmem:[#allocation5 + $0x2c8] sm:$0xff]
        %v2211 = vld [vmem:[#allocation5 + $0x2d0] sm:$0xff]
        %v2212 = vld [vmem:[#allocation5 + $0x2d8] sm:$0xff]
        %v2213 = vld [vmem:[#allocation5 + $0x2e0] sm:$0xff]
        %v2214 = vld [vmem:[#allocation5 + $0x2e8] sm:$0xff]
        %v2215 = vld [vmem:[#allocation5 + $0x2f0] sm:$0xff]
        %v2216 = vld [vmem:[#allocation5 + $0x2f8] sm:$0xff]
        %v2217 = vld [vmem:[#allocation5 + $0x300] sm:$0xff]
        %v2218 = vld [vmem:[#allocation5 + $0x308] sm:$0xff]
        %v2219 = vld [vmem:[#allocation5 + $0x310] sm:$0xff]
        %v2220 = vld [vmem:[#allocation5 + $0x318] sm:$0xff]
        %v2221 = vld [vmem:[#allocation5 + $0x320] sm:$0xff]
        %v2222 = vld [vmem:[#allocation5 + $0x328] sm:$0xff]
        %v2223 = vld [vmem:[#allocation5 + $0x330] sm:$0xff]
        %v2224 = vld [vmem:[#allocation5 + $0x338] sm:$0xff]
        %v2225 = vld [vmem:[#allocation5 + $0x340] sm:$0xff]
        %v2226 = vld [vmem:[#allocation5 + $0x348] sm:$0xff]
        %v2227 = vld [vmem:[#allocation5 + $0x350] sm:$0xff]
        %v2228 = vld [vmem:[#allocation5 + $0x358] sm:$0xff]
        %v2229 = vld [vmem:[#allocation5 + $0x360] sm:$0xff]
        %v2230 = vld [vmem:[#allocation5 + $0x368] sm:$0xff]
        %v2231 = vld [vmem:[#allocation5 + $0x370] sm:$0xff]
        %v2232 = vld [vmem:[#allocation5 + $0x378] sm:$0xff]
        %v2233 = vld [vmem:[#allocation5 + $0x380] sm:$0xff]
        %v2234 = vld [vmem:[#allocation5 + $0x388] sm:$0xff]
        %v2235 = vld [vmem:[#allocation5 + $0x390] sm:$0xff]
        %v2236 = vld [vmem:[#allocation5 + $0x398] sm:$0xff]
        %v2237 = vld [vmem:[#allocation5 + $0x3a0] sm:$0xff]
        %v2238 = vld [vmem:[#allocation5 + $0x3a8] sm:$0xff]
        %v2239 = vld [vmem:[#allocation5 + $0x3b0] sm:$0xff]
        %v2240 = vld [vmem:[#allocation5 + $0x3b8] sm:$0xff]
        %v2241 = vld [vmem:[#allocation5 + $0x3c0] sm:$0xff]
        %v2242 = vld [vmem:[#allocation5 + $0x3c8] sm:$0xff]
        %v2243 = vld [vmem:[#allocation5 + $0x3d0] sm:$0xff]
        %v2244 = vld [vmem:[#allocation5 + $0x3d8] sm:$0xff]
        %v2245 = vld [vmem:[#allocation5 + $0x3e0] sm:$0xff]
        %v2246 = vld [vmem:[#allocation5 + $0x3e8] sm:$0xff]
        %v2247 = vld [vmem:[#allocation5 + $0x3f0] sm:$0xff]
        %v2248 = vld [vmem:[#allocation5 + $0x3f8] sm:$0xff]
        %s2249 = smul.u32 %s30, 16
        %s2250 = ssub.s32 20, %s2249
        %p2251 = scmp.lt.s32.totalorder %s2250, 16
        %s2252 = scalar_select %p2251, %s2250, 16
        // While loop
        $region81: #{tpu_custom_call.1} parent=59 // loop_pre_header
          _
        $region82: #{tpu_custom_call.1} parent=59 // loop_header
          %s2254 = sphi 0, %s2256
          %p2255 = scmp.ge.s32.totalorder %s2254, %s2252
        $region83: #{tpu_custom_call.1} parent=59 // loop_header_branch
          %2258 = sbr.rel (%p2255) target = $region87
        $region84: #{tpu_custom_call.1} parent=59 // loop_body
          %v2259 = vld [vmem:[#allocation2] sm:$0xff]
          %v2260 = vld [vmem:[#allocation2 + $0x8] sm:$0xff]
          %v2261 = vld [vmem:[#allocation2 + $0x10] sm:$0xff]
          %v2262 = vld [vmem:[#allocation2 + $0x18] sm:$0xff]
          %v2263 = vld [vmem:[#allocation3] sm:$0xff]
          %v2264 = vld [vmem:[#allocation3 + $0x8] sm:$0xff]
          %v2265 = vld [vmem:[#allocation3 + $0x10] sm:$0xff]
          %v2266 = vld [vmem:[#allocation3 + $0x18] sm:$0xff]
          %s2267 = smul.u32 %s2254, 16
          %s2268 = smul.addr %s2267, 8
          %s2269 = scalar_lea.vmem [#allocation4], %s2268
          %v2270 = vld [vmem:[%s2269] sm:$0xff]
          %v2271 = vld [vmem:[%s2269 + $0x8] sm:$0xff]
          %v2272 = vld [vmem:[%s2269 + $0x10] sm:$0xff]
          %v2273 = vld [vmem:[%s2269 + $0x18] sm:$0xff]
          %v2274 = vld [vmem:[%s2269 + $0x20] sm:$0xff]
          %v2275 = vld [vmem:[%s2269 + $0x28] sm:$0xff]
          %v2276 = vld [vmem:[%s2269 + $0x30] sm:$0xff]
          %v2277 = vld [vmem:[%s2269 + $0x38] sm:$0xff]
          %v2278 = vld [vmem:[%s2269 + $0x40] sm:$0xff]
          %v2279 = vld [vmem:[%s2269 + $0x48] sm:$0xff]
          %v2280 = vld [vmem:[%s2269 + $0x50] sm:$0xff]
          %v2281 = vld [vmem:[%s2269 + $0x58] sm:$0xff]
          %v2282 = vld [vmem:[%s2269 + $0x60] sm:$0xff]
          %v2283 = vld [vmem:[%s2269 + $0x68] sm:$0xff]
          %v2284 = vld [vmem:[%s2269 + $0x70] sm:$0xff]
          %v2285 = vld [vmem:[%s2269 + $0x78] sm:$0xff]
          %v2286 = vpack.c.bf16 %v2261, %v2259
          %v2287 = vpack.c.bf16 %v2262, %v2260
          %v2416 = vunpack.c.l.b16 %v2121
          %v2417 = vunpack.c.h.b16 %v2121
          %v2418 = vunpack.c.l.b16 %v2122
          %v2419 = vunpack.c.h.b16 %v2122
          %v2420 = vunpack.c.l.b16 %v2123
          %v2421 = vunpack.c.h.b16 %v2123
          %v2422 = vunpack.c.l.b16 %v2124
          %v2423 = vunpack.c.h.b16 %v2124
          %v2424 = vunpack.c.l.b16 %v2125
          %v2425 = vunpack.c.h.b16 %v2125
          %v2426 = vunpack.c.l.b16 %v2126
          %v2427 = vunpack.c.h.b16 %v2126
          %v2428 = vunpack.c.l.b16 %v2127
          %v2429 = vunpack.c.h.b16 %v2127
          %v2430 = vunpack.c.l.b16 %v2128
          %v2431 = vunpack.c.h.b16 %v2128
          %v2432 = vunpack.c.l.b16 %v2129
          %v2433 = vunpack.c.h.b16 %v2129
          %v2434 = vunpack.c.l.b16 %v2130
          %v2435 = vunpack.c.h.b16 %v2130
          %v2436 = vunpack.c.l.b16 %v2131
          %v2437 = vunpack.c.h.b16 %v2131
          %v2438 = vunpack.c.l.b16 %v2132
          %v2439 = vunpack.c.h.b16 %v2132
          %v2440 = vunpack.c.l.b16 %v2133
          %v2441 = vunpack.c.h.b16 %v2133
          %v2442 = vunpack.c.l.b16 %v2134
          %v2443 = vunpack.c.h.b16 %v2134
          %v2444 = vunpack.c.l.b16 %v2135
          %v2445 = vunpack.c.h.b16 %v2135
          %v2446 = vunpack.c.l.b16 %v2136
          %v2447 = vunpack.c.h.b16 %v2136
          %v2448 = vunpack.c.l.b16 %v2137
          %v2449 = vunpack.c.h.b16 %v2137
          %v2450 = vunpack.c.l.b16 %v2138
          %v2451 = vunpack.c.h.b16 %v2138
          %v2452 = vunpack.c.l.b16 %v2139
          %v2453 = vunpack.c.h.b16 %v2139
          %v2454 = vunpack.c.l.b16 %v2140
          %v2455 = vunpack.c.h.b16 %v2140
          %v2456 = vunpack.c.l.b16 %v2141
          %v2457 = vunpack.c.h.b16 %v2141
          %v2458 = vunpack.c.l.b16 %v2142
          %v2459 = vunpack.c.h.b16 %v2142
          %v2460 = vunpack.c.l.b16 %v2143
          %v2461 = vunpack.c.h.b16 %v2143
          %v2462 = vunpack.c.l.b16 %v2144
          %v2463 = vunpack.c.h.b16 %v2144
          %v2464 = vunpack.c.l.b16 %v2145
          %v2465 = vunpack.c.h.b16 %v2145
          %v2466 = vunpack.c.l.b16 %v2146
          %v2467 = vunpack.c.h.b16 %v2146
          %v2468 = vunpack.c.l.b16 %v2147
          %v2469 = vunpack.c.h.b16 %v2147
          %v2470 = vunpack.c.l.b16 %v2148
          %v2471 = vunpack.c.h.b16 %v2148
          %v2472 = vunpack.c.l.b16 %v2149
          %v2473 = vunpack.c.h.b16 %v2149
          %v2474 = vunpack.c.l.b16 %v2150
          %v2475 = vunpack.c.h.b16 %v2150
          %v2476 = vunpack.c.l.b16 %v2151
          %v2477 = vunpack.c.h.b16 %v2151
          %v2478 = vunpack.c.l.b16 %v2152
          %v2479 = vunpack.c.h.b16 %v2152
          %v2480 = vunpack.c.l.b16 %v2153
          %v2481 = vunpack.c.h.b16 %v2153
          %v2482 = vunpack.c.l.b16 %v2154
          %v2483 = vunpack.c.h.b16 %v2154
          %v2484 = vunpack.c.l.b16 %v2155
          %v2485 = vunpack.c.h.b16 %v2155
          %v2486 = vunpack.c.l.b16 %v2156
          %v2487 = vunpack.c.h.b16 %v2156
          %v2488 = vunpack.c.l.b16 %v2157
          %v2489 = vunpack.c.h.b16 %v2157
          %v2490 = vunpack.c.l.b16 %v2158
          %v2491 = vunpack.c.h.b16 %v2158
          %v2492 = vunpack.c.l.b16 %v2159
          %v2493 = vunpack.c.h.b16 %v2159
          %v2494 = vunpack.c.l.b16 %v2160
          %v2495 = vunpack.c.h.b16 %v2160
          %v2496 = vunpack.c.l.b16 %v2161
          %v2497 = vunpack.c.h.b16 %v2161
          %v2498 = vunpack.c.l.b16 %v2162
          %v2499 = vunpack.c.h.b16 %v2162
          %v2500 = vunpack.c.l.b16 %v2163
          %v2501 = vunpack.c.h.b16 %v2163
          %v2502 = vunpack.c.l.b16 %v2164
          %v2503 = vunpack.c.h.b16 %v2164
          %v2504 = vunpack.c.l.b16 %v2165
          %v2505 = vunpack.c.h.b16 %v2165
          %v2506 = vunpack.c.l.b16 %v2166
          %v2507 = vunpack.c.h.b16 %v2166
          %v2508 = vunpack.c.l.b16 %v2167
          %v2509 = vunpack.c.h.b16 %v2167
          %v2510 = vunpack.c.l.b16 %v2168
          %v2511 = vunpack.c.h.b16 %v2168
          %v2512 = vunpack.c.l.b16 %v2169
          %v2513 = vunpack.c.h.b16 %v2169
          %v2514 = vunpack.c.l.b16 %v2170
          %v2515 = vunpack.c.h.b16 %v2170
          %v2516 = vunpack.c.l.b16 %v2171
          %v2517 = vunpack.c.h.b16 %v2171
          %v2518 = vunpack.c.l.b16 %v2172
          %v2519 = vunpack.c.h.b16 %v2172
          %v2520 = vunpack.c.l.b16 %v2173
          %v2521 = vunpack.c.h.b16 %v2173
          %v2522 = vunpack.c.l.b16 %v2174
          %v2523 = vunpack.c.h.b16 %v2174
          %v2524 = vunpack.c.l.b16 %v2175
          %v2525 = vunpack.c.h.b16 %v2175
          %v2526 = vunpack.c.l.b16 %v2176
          %v2527 = vunpack.c.h.b16 %v2176
          %v2528 = vunpack.c.l.b16 %v2177
          %v2529 = vunpack.c.h.b16 %v2177
          %v2530 = vunpack.c.l.b16 %v2178
          %v2531 = vunpack.c.h.b16 %v2178
          %v2532 = vunpack.c.l.b16 %v2179
          %v2533 = vunpack.c.h.b16 %v2179
          %v2534 = vunpack.c.l.b16 %v2180
          %v2535 = vunpack.c.h.b16 %v2180
          %v2536 = vunpack.c.l.b16 %v2181
          %v2537 = vunpack.c.h.b16 %v2181
          %v2538 = vunpack.c.l.b16 %v2182
          %v2539 = vunpack.c.h.b16 %v2182
          %v2540 = vunpack.c.l.b16 %v2183
          %v2541 = vunpack.c.h.b16 %v2183
          %v2542 = vunpack.c.l.b16 %v2184
          %v2543 = vunpack.c.h.b16 %v2184
          %v2544 = vunpack.c.l.b16 %v2185
          %v2545 = vunpack.c.h.b16 %v2185
          %v2546 = vunpack.c.l.b16 %v2186
          %v2547 = vunpack.c.h.b16 %v2186
          %v2548 = vunpack.c.l.b16 %v2187
          %v2549 = vunpack.c.h.b16 %v2187
          %v2550 = vunpack.c.l.b16 %v2188
          %v2551 = vunpack.c.h.b16 %v2188
          %v2552 = vunpack.c.l.b16 %v2189
          %v2553 = vunpack.c.h.b16 %v2189
          %v2554 = vunpack.c.l.b16 %v2190
          %v2555 = vunpack.c.h.b16 %v2190
          %v2556 = vunpack.c.l.b16 %v2191
          %v2557 = vunpack.c.h.b16 %v2191
          %v2558 = vunpack.c.l.b16 %v2192
          %v2559 = vunpack.c.h.b16 %v2192
          %v2560 = vunpack.c.l.b16 %v2193
          %v2561 = vunpack.c.h.b16 %v2193
          %v2562 = vunpack.c.l.b16 %v2194
          %v2563 = vunpack.c.h.b16 %v2194
          %v2564 = vunpack.c.l.b16 %v2195
          %v2565 = vunpack.c.h.b16 %v2195
          %v2566 = vunpack.c.l.b16 %v2196
          %v2567 = vunpack.c.h.b16 %v2196
          %v2568 = vunpack.c.l.b16 %v2197
          %v2569 = vunpack.c.h.b16 %v2197
          %v2570 = vunpack.c.l.b16 %v2198
          %v2571 = vunpack.c.h.b16 %v2198
          %v2572 = vunpack.c.l.b16 %v2199
          %v2573 = vunpack.c.h.b16 %v2199
          %v2574 = vunpack.c.l.b16 %v2200
          %v2575 = vunpack.c.h.b16 %v2200
          %v2576 = vunpack.c.l.b16 %v2201
          %v2577 = vunpack.c.h.b16 %v2201
          %v2578 = vunpack.c.l.b16 %v2202
          %v2579 = vunpack.c.h.b16 %v2202
          %v2580 = vunpack.c.l.b16 %v2203
          %v2581 = vunpack.c.h.b16 %v2203
          %v2582 = vunpack.c.l.b16 %v2204
          %v2583 = vunpack.c.h.b16 %v2204
          %v2584 = vunpack.c.l.b16 %v2205
          %v2585 = vunpack.c.h.b16 %v2205
          %v2586 = vunpack.c.l.b16 %v2206
          %v2587 = vunpack.c.h.b16 %v2206
          %v2588 = vunpack.c.l.b16 %v2207
          %v2589 = vunpack.c.h.b16 %v2207
          %v2590 = vunpack.c.l.b16 %v2208
          %v2591 = vunpack.c.h.b16 %v2208
          %v2592 = vunpack.c.l.b16 %v2209
          %v2593 = vunpack.c.h.b16 %v2209
          %v2594 = vunpack.c.l.b16 %v2210
          %v2595 = vunpack.c.h.b16 %v2210
          %v2596 = vunpack.c.l.b16 %v2211
          %v2597 = vunpack.c.h.b16 %v2211
          %v2598 = vunpack.c.l.b16 %v2212
          %v2599 = vunpack.c.h.b16 %v2212
          %v2600 = vunpack.c.l.b16 %v2213
          %v2601 = vunpack.c.h.b16 %v2213
          %v2602 = vunpack.c.l.b16 %v2214
          %v2603 = vunpack.c.h.b16 %v2214
          %v2604 = vunpack.c.l.b16 %v2215
          %v2605 = vunpack.c.h.b16 %v2215
          %v2606 = vunpack.c.l.b16 %v2216
          %v2607 = vunpack.c.h.b16 %v2216
          %v2608 = vunpack.c.l.b16 %v2217
          %v2609 = vunpack.c.h.b16 %v2217
          %v2610 = vunpack.c.l.b16 %v2218
          %v2611 = vunpack.c.h.b16 %v2218
          %v2612 = vunpack.c.l.b16 %v2219
          %v2613 = vunpack.c.h.b16 %v2219
          %v2614 = vunpack.c.l.b16 %v2220
          %v2615 = vunpack.c.h.b16 %v2220
          %v2616 = vunpack.c.l.b16 %v2221
          %v2617 = vunpack.c.h.b16 %v2221
          %v2618 = vunpack.c.l.b16 %v2222
          %v2619 = vunpack.c.h.b16 %v2222
          %v2620 = vunpack.c.l.b16 %v2223
          %v2621 = vunpack.c.h.b16 %v2223
          %v2622 = vunpack.c.l.b16 %v2224
          %v2623 = vunpack.c.h.b16 %v2224
          %v2624 = vunpack.c.l.b16 %v2225
          %v2625 = vunpack.c.h.b16 %v2225
          %v2626 = vunpack.c.l.b16 %v2226
          %v2627 = vunpack.c.h.b16 %v2226
          %v2628 = vunpack.c.l.b16 %v2227
          %v2629 = vunpack.c.h.b16 %v2227
          %v2630 = vunpack.c.l.b16 %v2228
          %v2631 = vunpack.c.h.b16 %v2228
          %v2632 = vunpack.c.l.b16 %v2229
          %v2633 = vunpack.c.h.b16 %v2229
          %v2634 = vunpack.c.l.b16 %v2230
          %v2635 = vunpack.c.h.b16 %v2230
          %v2636 = vunpack.c.l.b16 %v2231
          %v2637 = vunpack.c.h.b16 %v2231
          %v2638 = vunpack.c.l.b16 %v2232
          %v2639 = vunpack.c.h.b16 %v2232
          %v2640 = vunpack.c.l.b16 %v2233
          %v2641 = vunpack.c.h.b16 %v2233
          %v2642 = vunpack.c.l.b16 %v2234
          %v2643 = vunpack.c.h.b16 %v2234
          %v2644 = vunpack.c.l.b16 %v2235
          %v2645 = vunpack.c.h.b16 %v2235
          %v2646 = vunpack.c.l.b16 %v2236
          %v2647 = vunpack.c.h.b16 %v2236
          %v2648 = vunpack.c.l.b16 %v2237
          %v2649 = vunpack.c.h.b16 %v2237
          %v2650 = vunpack.c.l.b16 %v2238
          %v2651 = vunpack.c.h.b16 %v2238
          %v2652 = vunpack.c.l.b16 %v2239
          %v2653 = vunpack.c.h.b16 %v2239
          %v2654 = vunpack.c.l.b16 %v2240
          %v2655 = vunpack.c.h.b16 %v2240
          %v2656 = vunpack.c.l.b16 %v2241
          %v2657 = vunpack.c.h.b16 %v2241
          %v2658 = vunpack.c.l.b16 %v2242
          %v2659 = vunpack.c.h.b16 %v2242
          %v2660 = vunpack.c.l.b16 %v2243
          %v2661 = vunpack.c.h.b16 %v2243
          %v2662 = vunpack.c.l.b16 %v2244
          %v2663 = vunpack.c.h.b16 %v2244
          %v2664 = vunpack.c.l.b16 %v2245
          %v2665 = vunpack.c.h.b16 %v2245
          %v2666 = vunpack.c.l.b16 %v2246
          %v2667 = vunpack.c.h.b16 %v2246
          %v2668 = vunpack.c.l.b16 %v2247
          %v2669 = vunpack.c.h.b16 %v2247
          %v2670 = vunpack.c.l.b16 %v2248
          %v2671 = vunpack.c.h.b16 %v2248
          %v2672 = vpack.c.b16 %v2424, %v2416
          %v2673 = vpack.c.b16 %v2425, %v2417
          %v2674 = vpack.c.b16 %v2426, %v2418
          %v2675 = vpack.c.b16 %v2427, %v2419
          %v2676 = vpack.c.b16 %v2428, %v2420
          %v2677 = vpack.c.b16 %v2429, %v2421
          %v2678 = vpack.c.b16 %v2430, %v2422
          %v2679 = vpack.c.b16 %v2431, %v2423
          %v2680 = vpack.c.b16 %v2440, %v2432
          %v2681 = vpack.c.b16 %v2441, %v2433
          %v2682 = vpack.c.b16 %v2442, %v2434
          %v2683 = vpack.c.b16 %v2443, %v2435
          %v2684 = vpack.c.b16 %v2444, %v2436
          %v2685 = vpack.c.b16 %v2445, %v2437
          %v2686 = vpack.c.b16 %v2446, %v2438
          %v2687 = vpack.c.b16 %v2447, %v2439
          %v2688 = vpack.c.b16 %v2456, %v2448
          %v2689 = vpack.c.b16 %v2457, %v2449
          %v2690 = vpack.c.b16 %v2458, %v2450
          %v2691 = vpack.c.b16 %v2459, %v2451
          %v2692 = vpack.c.b16 %v2460, %v2452
          %v2693 = vpack.c.b16 %v2461, %v2453
          %v2694 = vpack.c.b16 %v2462, %v2454
          %v2695 = vpack.c.b16 %v2463, %v2455
          %v2696 = vpack.c.b16 %v2472, %v2464
          %v2697 = vpack.c.b16 %v2473, %v2465
          %v2698 = vpack.c.b16 %v2474, %v2466
          %v2699 = vpack.c.b16 %v2475, %v2467
          %v2700 = vpack.c.b16 %v2476, %v2468
          %v2701 = vpack.c.b16 %v2477, %v2469
          %v2702 = vpack.c.b16 %v2478, %v2470
          %v2703 = vpack.c.b16 %v2479, %v2471
          %v2704 = vpack.c.b16 %v2488, %v2480
          %v2705 = vpack.c.b16 %v2489, %v2481
          %v2706 = vpack.c.b16 %v2490, %v2482
          %v2707 = vpack.c.b16 %v2491, %v2483
          %v2708 = vpack.c.b16 %v2492, %v2484
          %v2709 = vpack.c.b16 %v2493, %v2485
          %v2710 = vpack.c.b16 %v2494, %v2486
          %v2711 = vpack.c.b16 %v2495, %v2487
          %v2712 = vpack.c.b16 %v2504, %v2496
          %v2713 = vpack.c.b16 %v2505, %v2497
          %v2714 = vpack.c.b16 %v2506, %v2498
          %v2715 = vpack.c.b16 %v2507, %v2499
          %v2716 = vpack.c.b16 %v2508, %v2500
          %v2717 = vpack.c.b16 %v2509, %v2501
          %v2718 = vpack.c.b16 %v2510, %v2502
          %v2719 = vpack.c.b16 %v2511, %v2503
          %v2720 = vpack.c.b16 %v2520, %v2512
          %v2721 = vpack.c.b16 %v2521, %v2513
          %v2722 = vpack.c.b16 %v2522, %v2514
          %v2723 = vpack.c.b16 %v2523, %v2515
          %v2724 = vpack.c.b16 %v2524, %v2516
          %v2725 = vpack.c.b16 %v2525, %v2517
          %v2726 = vpack.c.b16 %v2526, %v2518
          %v2727 = vpack.c.b16 %v2527, %v2519
          %v2728 = vpack.c.b16 %v2536, %v2528
          %v2729 = vpack.c.b16 %v2537, %v2529
          %v2730 = vpack.c.b16 %v2538, %v2530
          %v2731 = vpack.c.b16 %v2539, %v2531
          %v2732 = vpack.c.b16 %v2540, %v2532
          %v2733 = vpack.c.b16 %v2541, %v2533
          %v2734 = vpack.c.b16 %v2542, %v2534
          %v2735 = vpack.c.b16 %v2543, %v2535
          %v2736 = vpack.c.b16 %v2552, %v2544
          %v2737 = vpack.c.b16 %v2553, %v2545
          %v2738 = vpack.c.b16 %v2554, %v2546
          %v2739 = vpack.c.b16 %v2555, %v2547
          %v2740 = vpack.c.b16 %v2556, %v2548
          %v2741 = vpack.c.b16 %v2557, %v2549
          %v2742 = vpack.c.b16 %v2558, %v2550
          %v2743 = vpack.c.b16 %v2559, %v2551
          %v2744 = vpack.c.b16 %v2568, %v2560
          %v2745 = vpack.c.b16 %v2569, %v2561
          %v2746 = vpack.c.b16 %v2570, %v2562
          %v2747 = vpack.c.b16 %v2571, %v2563
          %v2748 = vpack.c.b16 %v2572, %v2564
          %v2749 = vpack.c.b16 %v2573, %v2565
          %v2750 = vpack.c.b16 %v2574, %v2566
          %v2751 = vpack.c.b16 %v2575, %v2567
          %v2752 = vpack.c.b16 %v2584, %v2576
          %v2753 = vpack.c.b16 %v2585, %v2577
          %v2754 = vpack.c.b16 %v2586, %v2578
          %v2755 = vpack.c.b16 %v2587, %v2579
          %v2756 = vpack.c.b16 %v2588, %v2580
          %v2757 = vpack.c.b16 %v2589, %v2581
          %v2758 = vpack.c.b16 %v2590, %v2582
          %v2759 = vpack.c.b16 %v2591, %v2583
          %v2760 = vpack.c.b16 %v2600, %v2592
          %v2761 = vpack.c.b16 %v2601, %v2593
          %v2762 = vpack.c.b16 %v2602, %v2594
          %v2763 = vpack.c.b16 %v2603, %v2595
          %v2764 = vpack.c.b16 %v2604, %v2596
          %v2765 = vpack.c.b16 %v2605, %v2597
          %v2766 = vpack.c.b16 %v2606, %v2598
          %v2767 = vpack.c.b16 %v2607, %v2599
          %v2768 = vpack.c.b16 %v2616, %v2608
          %v2769 = vpack.c.b16 %v2617, %v2609
          %v2770 = vpack.c.b16 %v2618, %v2610
          %v2771 = vpack.c.b16 %v2619, %v2611
          %v2772 = vpack.c.b16 %v2620, %v2612
          %v2773 = vpack.c.b16 %v2621, %v2613
          %v2774 = vpack.c.b16 %v2622, %v2614
          %v2775 = vpack.c.b16 %v2623, %v2615
          %v2776 = vpack.c.b16 %v2632, %v2624
          %v2777 = vpack.c.b16 %v2633, %v2625
          %v2778 = vpack.c.b16 %v2634, %v2626
          %v2779 = vpack.c.b16 %v2635, %v2627
          %v2780 = vpack.c.b16 %v2636, %v2628
          %v2781 = vpack.c.b16 %v2637, %v2629
          %v2782 = vpack.c.b16 %v2638, %v2630
          %v2783 = vpack.c.b16 %v2639, %v2631
          %v2784 = vpack.c.b16 %v2648, %v2640
          %v2785 = vpack.c.b16 %v2649, %v2641
          %v2786 = vpack.c.b16 %v2650, %v2642
          %v2787 = vpack.c.b16 %v2651, %v2643
          %v2788 = vpack.c.b16 %v2652, %v2644
          %v2789 = vpack.c.b16 %v2653, %v2645
          %v2790 = vpack.c.b16 %v2654, %v2646
          %v2791 = vpack.c.b16 %v2655, %v2647
          %v2792 = vpack.c.b16 %v2664, %v2656
          %v2793 = vpack.c.b16 %v2665, %v2657
          %v2794 = vpack.c.b16 %v2666, %v2658
          %v2795 = vpack.c.b16 %v2667, %v2659
          %v2796 = vpack.c.b16 %v2668, %v2660
          %v2797 = vpack.c.b16 %v2669, %v2661
          %v2798 = vpack.c.b16 %v2670, %v2662
          %v2799 = vpack.c.b16 %v2671, %v2663
          %2928 = vmatprep.subr.bf16.mxu0 %v2673
          %2929 = vmatpush1.bf16.msra.mxu0 %v2672
          %2930 = vmatprep.subr.bf16.mxu0 %v2681
          %2931 = vmatpush1.bf16.msra.mxu0 %v2680
          %2932 = vmatprep.subr.bf16.mxu0 %v2689
          %2933 = vmatpush1.bf16.msra.mxu0 %v2688
          %2934 = vmatprep.subr.bf16.mxu0 %v2697
          %2935 = vmatpush1.bf16.msra.mxu0 %v2696
          %2936 = vmatprep.subr.bf16.mxu0 %v2705
          %2937 = vmatpush1.bf16.msra.mxu0 %v2704
          %2938 = vmatprep.subr.bf16.mxu0 %v2713
          %2939 = vmatpush1.bf16.msra.mxu0 %v2712
          %2940 = vmatprep.subr.bf16.mxu0 %v2721
          %2941 = vmatpush1.bf16.msra.mxu0 %v2720
          %2942 = vmatprep.subr.bf16.mxu0 %v2729
          %2943 = vmatpush1.bf16.msra.mxu0 %v2728
          %2944 = vmatprep.subr.bf16.mxu0 %v2737
          %2945 = vmatpush1.bf16.msra.mxu0 %v2736
          %2946 = vmatprep.subr.bf16.mxu0 %v2745
          %2947 = vmatpush1.bf16.msra.mxu0 %v2744
          %2948 = vmatprep.subr.bf16.mxu0 %v2753
          %2949 = vmatpush1.bf16.msra.mxu0 %v2752
          %2950 = vmatprep.subr.bf16.mxu0 %v2761
          %2951 = vmatpush1.bf16.msra.mxu0 %v2760
          %2952 = vmatprep.subr.bf16.mxu0 %v2769
          %2953 = vmatpush1.bf16.msra.mxu0 %v2768
          %2954 = vmatprep.subr.bf16.mxu0 %v2777
          %2955 = vmatpush1.bf16.msra.mxu0 %v2776
          %2956 = vmatprep.subr.bf16.mxu0 %v2785
          %2957 = vmatpush1.bf16.msra.mxu0 %v2784
          %2958 = vmatprep.subr.bf16.mxu0 %v2793
          %2959 = vmatpush1.bf16.msra.mxu0 %v2792
          %2960 = vmatprep.mubr.bf16.mxu0 %v2287
          %2961 = vmatmul.mubr.bf16.gmra.mrb[0].mxu0 %v2286
          %v2962 = vpop.f32.mrb[0].mxu0
          %v2963 = vadd.f32 0.0, %v2962
          %v2964 = vpop.f32.mrb[0].mxu0
          %v2965 = vadd.f32 0.0, %v2964
          %v2966 = vpop.f32.mrb[0].mxu0
          %v2967 = vadd.f32 0.0, %v2966
          %v2968 = vpop.f32.mrb[0].mxu0
          %v2969 = vadd.f32 0.0, %v2968
          %2970 = vdwg.mxu0
          %2971 = vmatprep.subr.bf16.mxu0 %v2675
          %2972 = vmatpush1.bf16.msra.mxu0 %v2674
          %2973 = vmatprep.subr.bf16.mxu0 %v2683
          %2974 = vmatpush1.bf16.msra.mxu0 %v2682
          %2975 = vmatprep.subr.bf16.mxu0 %v2691
          %2976 = vmatpush1.bf16.msra.mxu0 %v2690
          %2977 = vmatprep.subr.bf16.mxu0 %v2699
          %2978 = vmatpush1.bf16.msra.mxu0 %v2698
          %2979 = vmatprep.subr.bf16.mxu0 %v2707
          %2980 = vmatpush1.bf16.msra.mxu0 %v2706
          %2981 = vmatprep.subr.bf16.mxu0 %v2715
          %2982 = vmatpush1.bf16.msra.mxu0 %v2714
          %2983 = vmatprep.subr.bf16.mxu0 %v2723
          %2984 = vmatpush1.bf16.msra.mxu0 %v2722
          %2985 = vmatprep.subr.bf16.mxu0 %v2731
          %2986 = vmatpush1.bf16.msra.mxu0 %v2730
          %2987 = vmatprep.subr.bf16.mxu0 %v2739
          %2988 = vmatpush1.bf16.msra.mxu0 %v2738
          %2989 = vmatprep.subr.bf16.mxu0 %v2747
          %2990 = vmatpush1.bf16.msra.mxu0 %v2746
          %2991 = vmatprep.subr.bf16.mxu0 %v2755
          %2992 = vmatpush1.bf16.msra.mxu0 %v2754
          %2993 = vmatprep.subr.bf16.mxu0 %v2763
          %2994 = vmatpush1.bf16.msra.mxu0 %v2762
          %2995 = vmatprep.subr.bf16.mxu0 %v2771
          %2996 = vmatpush1.bf16.msra.mxu0 %v2770
          %2997 = vmatprep.subr.bf16.mxu0 %v2779
          %2998 = vmatpush1.bf16.msra.mxu0 %v2778
          %2999 = vmatprep.subr.bf16.mxu0 %v2787
          %3000 = vmatpush1.bf16.msra.mxu0 %v2786
          %3001 = vmatprep.subr.bf16.mxu0 %v2795
          %3002 = vmatpush1.bf16.msra.mxu0 %v2794
          %3003 = vmatprep.mubr.bf16.mxu0 %v2287
          %3004 = vmatmul.mubr.bf16.gmra.mrb[0].mxu0 %v2286
          %v3005 = vpop.f32.mrb[0].mxu0
          %v3006 = vadd.f32 0.0, %v3005
          %v3007 = vpop.f32.mrb[0].mxu0
          %v3008 = vadd.f32 0.0, %v3007
          %v3009 = vpop.f32.mrb[0].mxu0
          %v3010 = vadd.f32 0.0, %v3009
          %v3011 = vpop.f32.mrb[0].mxu0
          %v3012 = vadd.f32 0.0, %v3011
          %3013 = vdwg.mxu0
          %3014 = vmatprep.subr.bf16.mxu0 %v2677
          %3015 = vmatpush1.bf16.msra.mxu0 %v2676
          %3016 = vmatprep.subr.bf16.mxu0 %v2685
          %3017 = vmatpush1.bf16.msra.mxu0 %v2684
          %3018 = vmatprep.subr.bf16.mxu0 %v2693
          %3019 = vmatpush1.bf16.msra.mxu0 %v2692
          %3020 = vmatprep.subr.bf16.mxu0 %v2701
          %3021 = vmatpush1.bf16.msra.mxu0 %v2700
          %3022 = vmatprep.subr.bf16.mxu0 %v2709
          %3023 = vmatpush1.bf16.msra.mxu0 %v2708
          %3024 = vmatprep.subr.bf16.mxu0 %v2717
          %3025 = vmatpush1.bf16.msra.mxu0 %v2716
          %3026 = vmatprep.subr.bf16.mxu0 %v2725
          %3027 = vmatpush1.bf16.msra.mxu0 %v2724
          %3028 = vmatprep.subr.bf16.mxu0 %v2733
          %3029 = vmatpush1.bf16.msra.mxu0 %v2732
          %3030 = vmatprep.subr.bf16.mxu0 %v2741
          %3031 = vmatpush1.bf16.msra.mxu0 %v2740
          %3032 = vmatprep.subr.bf16.mxu0 %v2749
          %3033 = vmatpush1.bf16.msra.mxu0 %v2748
          %3034 = vmatprep.subr.bf16.mxu0 %v2757
          %3035 = vmatpush1.bf16.msra.mxu0 %v2756
          %3036 = vmatprep.subr.bf16.mxu0 %v2765
          %3037 = vmatpush1.bf16.msra.mxu0 %v2764
          %3038 = vmatprep.subr.bf16.mxu0 %v2773
          %3039 = vmatpush1.bf16.msra.mxu0 %v2772
          %3040 = vmatprep.subr.bf16.mxu0 %v2781
          %3041 = vmatpush1.bf16.msra.mxu0 %v2780
          %3042 = vmatprep.subr.bf16.mxu0 %v2789
          %3043 = vmatpush1.bf16.msra.mxu0 %v2788
          %3044 = vmatprep.subr.bf16.mxu0 %v2797
          %3045 = vmatpush1.bf16.msra.mxu0 %v2796
          %3046 = vmatprep.mubr.bf16.mxu0 %v2287
          %3047 = vmatmul.mubr.bf16.gmra.mrb[0].mxu0 %v2286
          %v3048 = vpop.f32.mrb[0].mxu0
          %v3049 = vadd.f32 0.0, %v3048
          %v3050 = vpop.f32.mrb[0].mxu0
          %v3051 = vadd.f32 0.0, %v3050
          %v3052 = vpop.f32.mrb[0].mxu0
          %v3053 = vadd.f32 0.0, %v3052
          %v3054 = vpop.f32.mrb[0].mxu0
          %v3055 = vadd.f32 0.0, %v3054
          %3056 = vdwg.mxu0
          %3057 = vmatprep.subr.bf16.mxu0 %v2679
          %3058 = vmatpush1.bf16.msra.mxu0 %v2678
          %3059 = vmatprep.subr.bf16.mxu0 %v2687
          %3060 = vmatpush1.bf16.msra.mxu0 %v2686
          %3061 = vmatprep.subr.bf16.mxu0 %v2695
          %3062 = vmatpush1.bf16.msra.mxu0 %v2694
          %3063 = vmatprep.subr.bf16.mxu0 %v2703
          %3064 = vmatpush1.bf16.msra.mxu0 %v2702
          %3065 = vmatprep.subr.bf16.mxu0 %v2711
          %3066 = vmatpush1.bf16.msra.mxu0 %v2710
          %3067 = vmatprep.subr.bf16.mxu0 %v2719
          %3068 = vmatpush1.bf16.msra.mxu0 %v2718
          %3069 = vmatprep.subr.bf16.mxu0 %v2727
          %3070 = vmatpush1.bf16.msra.mxu0 %v2726
          %3071 = vmatprep.subr.bf16.mxu0 %v2735
          %3072 = vmatpush1.bf16.msra.mxu0 %v2734
          %3073 = vmatprep.subr.bf16.mxu0 %v2743
          %3074 = vmatpush1.bf16.msra.mxu0 %v2742
          %3075 = vmatprep.subr.bf16.mxu0 %v2751
          %3076 = vmatpush1.bf16.msra.mxu0 %v2750
          %3077 = vmatprep.subr.bf16.mxu0 %v2759
          %3078 = vmatpush1.bf16.msra.mxu0 %v2758
          %3079 = vmatprep.subr.bf16.mxu0 %v2767
          %3080 = vmatpush1.bf16.msra.mxu0 %v2766
          %3081 = vmatprep.subr.bf16.mxu0 %v2775
          %3082 = vmatpush1.bf16.msra.mxu0 %v2774
          %3083 = vmatprep.subr.bf16.mxu0 %v2783
          %3084 = vmatpush1.bf16.msra.mxu0 %v2782
          %3085 = vmatprep.subr.bf16.mxu0 %v2791
          %3086 = vmatpush1.bf16.msra.mxu0 %v2790
          %3087 = vmatprep.subr.bf16.mxu0 %v2799
          %3088 = vmatpush1.bf16.msra.mxu0 %v2798
          %3089 = vmatprep.mubr.bf16.mxu0 %v2287
          %3090 = vmatmul.mubr.bf16.gmra.mrb[0].mxu0 %v2286
          %v3091 = vpop.f32.mrb[0].mxu0
          %v3092 = vadd.f32 0.0, %v3091
          %v3093 = vpop.f32.mrb[0].mxu0
          %v3094 = vadd.f32 0.0, %v3093
          %v3095 = vpop.f32.mrb[0].mxu0
          %v3096 = vadd.f32 0.0, %v3095
          %v3097 = vpop.f32.mrb[0].mxu0
          %v3098 = vadd.f32 0.0, %v3097
          %3099 = vdwg.mxu0
          %v3100 = vadd.f32 %v2270, %v2963
          %v3101 = vadd.f32 %v2271, %v2965
          %v3102 = vadd.f32 %v2272, %v3006
          %v3103 = vadd.f32 %v2273, %v3008
          %v3104 = vadd.f32 %v2274, %v3049
          %v3105 = vadd.f32 %v2275, %v3051
          %v3106 = vadd.f32 %v2276, %v3092
          %v3107 = vadd.f32 %v2277, %v3094
          %v3108 = vadd.f32 %v2278, %v2967
          %v3109 = vadd.f32 %v2279, %v2969
          %v3110 = vadd.f32 %v2280, %v3010
          %v3111 = vadd.f32 %v2281, %v3012
          %v3112 = vadd.f32 %v2282, %v3053
          %v3113 = vadd.f32 %v2283, %v3055
          %v3114 = vadd.f32 %v2284, %v3096
          %v3115 = vadd.f32 %v2285, %v3098
          %v3116 = vmul.f32 %v3100, 0.5
          %v3117 = vmul.f32 %v3101, 0.5
          %v3118 = vmul.f32 %v3108, 0.5
          %v3119 = vmul.f32 %v3109, 0.5
          %v3120 = vtanh.pop %v3116
          %v3121 = vtanh.pop %v3117
          %v3122 = vtanh.pop %v3118
          %v3123 = vtanh.pop %v3119
          %v3124 = vmul.f32 %v3120, 0.5
          %v3125 = vmul.f32 %v3121, 0.5
          %v3126 = vmul.f32 %v3122, 0.5
          %v3127 = vmul.f32 %v3123, 0.5
          %v3128 = vadd.f32 %v3124, 0.5
          %v3129 = vadd.f32 %v3125, 0.5
          %v3130 = vadd.f32 %v3126, 0.5
          %v3131 = vadd.f32 %v3127, 0.5
          %v3132 = vmul.f32 %v3102, 0.5
          %v3133 = vmul.f32 %v3103, 0.5
          %v3134 = vmul.f32 %v3110, 0.5
          %v3135 = vmul.f32 %v3111, 0.5
          %v3136 = vtanh.pop %v3132
          %v3137 = vtanh.pop %v3133
          %v3138 = vtanh.pop %v3134
          %v3139 = vtanh.pop %v3135
          %v3140 = vmul.f32 %v3136, 0.5
          %v3141 = vmul.f32 %v3137, 0.5
          %v3142 = vmul.f32 %v3138, 0.5
          %v3143 = vmul.f32 %v3139, 0.5
          %v3144 = vadd.f32 %v3140, 0.5
          %v3145 = vadd.f32 %v3141, 0.5
          %v3146 = vadd.f32 %v3142, 0.5
          %v3147 = vadd.f32 %v3143, 0.5
          %v3148 = vtanh.pop %v3104
          %v3149 = vtanh.pop %v3105
          %v3150 = vtanh.pop %v3112
          %v3151 = vtanh.pop %v3113
          %v3152 = vmul.f32 %v3106, 0.5
          %v3153 = vmul.f32 %v3107, 0.5
          %v3154 = vmul.f32 %v3114, 0.5
          %v3155 = vmul.f32 %v3115, 0.5
          %v3156 = vtanh.pop %v3152
          %v3157 = vtanh.pop %v3153
          %v3158 = vtanh.pop %v3154
          %v3159 = vtanh.pop %v3155
          %v3160 = vmul.f32 %v3156, 0.5
          %v3161 = vmul.f32 %v3157, 0.5
          %v3162 = vmul.f32 %v3158, 0.5
          %v3163 = vmul.f32 %v3159, 0.5
          %v3164 = vadd.f32 %v3160, 0.5
          %v3165 = vadd.f32 %v3161, 0.5
          %v3166 = vadd.f32 %v3162, 0.5
          %v3167 = vadd.f32 %v3163, 0.5
          %v3168 = vmul.f32 %v3144, %v2263
          %v3169 = vmul.f32 %v3145, %v2264
          %v3170 = vmul.f32 %v3146, %v2265
          %v3171 = vmul.f32 %v3147, %v2266
          %v3172 = vmul.f32 %v3128, %v3148
          %v3173 = vmul.f32 %v3129, %v3149
          %v3174 = vmul.f32 %v3130, %v3150
          %v3175 = vmul.f32 %v3131, %v3151
          %v3176 = vadd.f32 %v3168, %v3172
          %v3177 = vadd.f32 %v3169, %v3173
          %v3178 = vadd.f32 %v3170, %v3174
          %v3179 = vadd.f32 %v3171, %v3175
          %3180 = vst [vmem:[#allocation3] sm:$0xff] %v3176
          %3181 = vst [vmem:[#allocation3 + $0x8] sm:$0xff] %v3177
          %3182 = vst [vmem:[#allocation3 + $0x10] sm:$0xff] %v3178
          %3183 = vst [vmem:[#allocation3 + $0x18] sm:$0xff] %v3179
          %v3184 = vtanh.pop %v3176
          %v3185 = vtanh.pop %v3177
          %v3186 = vtanh.pop %v3178
          %v3187 = vtanh.pop %v3179
          %v3188 = vmul.f32 %v3164, %v3184
          %v3189 = vmul.f32 %v3165, %v3185
          %v3190 = vmul.f32 %v3166, %v3186
          %v3191 = vmul.f32 %v3167, %v3187
          %3192 = vst [vmem:[#allocation2] sm:$0xff] %v3188
          %3193 = vst [vmem:[#allocation2 + $0x8] sm:$0xff] %v3189
          %3194 = vst [vmem:[#allocation2 + $0x10] sm:$0xff] %v3190
          %3195 = vst [vmem:[#allocation2 + $0x18] sm:$0xff] %v3191
        $region85: #{tpu_custom_call.1} parent=59 // loop_footer
          %s2256 = sadd.s32 %s2254, 1
        $region86: #{tpu_custom_call.1} parent=59 // loop_footer_branch
          %2253 = sbr.rel target = $region82
        $region87: #{tpu_custom_call.1} parent=59 // loop_exit
          _
        %p3196 = scmp.eq.s32.totalorder %s30, 1
        // Predicated region
        $region88: #{tpu_custom_call.1} parent=59 // pred_check
          %p3197 = pneg %p3196
        $region89: #{tpu_custom_call.1} parent=59 // pred_check_branch
          %3199 = sbr.rel (%p3197) target = $region91
        $region90: #{tpu_custom_call.1} parent=59 // pred_region
          %v3200 = vld [vmem:[#allocation2] sm:$0xff]
          %v3201 = vld [vmem:[#allocation2 + $0x8] sm:$0xff]
          %v3202 = vld [vmem:[#allocation2 + $0x10] sm:$0xff]
          %v3203 = vld [vmem:[#allocation2 + $0x18] sm:$0xff]
          %v3204 = vpack.c.bf16 %v3202, %v3200
          %v3205 = vpack.c.bf16 %v3203, %v3201
          %v3206 = vld [vmem:[#allocation8] sm:$0xff]
          %v3207 = vld [vmem:[#allocation8 + $0x8] sm:$0xff]
          %v3208 = vld [vmem:[#allocation8 + $0x10] sm:$0xff]
          %v3209 = vld [vmem:[#allocation8 + $0x18] sm:$0xff]
          %v3210 = vld [vmem:[#allocation8 + $0x20] sm:$0xff]
          %v3211 = vld [vmem:[#allocation8 + $0x28] sm:$0xff]
          %v3212 = vld [vmem:[#allocation8 + $0x30] sm:$0xff]
          %v3213 = vld [vmem:[#allocation8 + $0x38] sm:$0xff]
          %v3214 = vld [vmem:[#allocation8 + $0x40] sm:$0xff]
          %v3215 = vld [vmem:[#allocation8 + $0x48] sm:$0xff]
          %v3216 = vld [vmem:[#allocation8 + $0x50] sm:$0xff]
          %v3217 = vld [vmem:[#allocation8 + $0x58] sm:$0xff]
          %v3218 = vld [vmem:[#allocation8 + $0x60] sm:$0xff]
          %v3219 = vld [vmem:[#allocation8 + $0x68] sm:$0xff]
          %v3220 = vld [vmem:[#allocation8 + $0x70] sm:$0xff]
          %v3221 = vld [vmem:[#allocation8 + $0x78] sm:$0xff]
          %v3222 = vld [vmem:[#allocation8 + $0x80] sm:$0xff]
          %v3223 = vld [vmem:[#allocation8 + $0x88] sm:$0xff]
          %v3224 = vld [vmem:[#allocation8 + $0x90] sm:$0xff]
          %v3225 = vld [vmem:[#allocation8 + $0x98] sm:$0xff]
          %v3226 = vld [vmem:[#allocation8 + $0xa0] sm:$0xff]
          %v3227 = vld [vmem:[#allocation8 + $0xa8] sm:$0xff]
          %v3228 = vld [vmem:[#allocation8 + $0xb0] sm:$0xff]
          %v3229 = vld [vmem:[#allocation8 + $0xb8] sm:$0xff]
          %v3230 = vld [vmem:[#allocation8 + $0xc0] sm:$0xff]
          %v3231 = vld [vmem:[#allocation8 + $0xc8] sm:$0xff]
          %v3232 = vld [vmem:[#allocation8 + $0xd0] sm:$0xff]
          %v3233 = vld [vmem:[#allocation8 + $0xd8] sm:$0xff]
          %v3234 = vld [vmem:[#allocation8 + $0xe0] sm:$0xff]
          %v3235 = vld [vmem:[#allocation8 + $0xe8] sm:$0xff]
          %v3236 = vld [vmem:[#allocation8 + $0xf0] sm:$0xff]
          %v3237 = vld [vmem:[#allocation8 + $0xf8] sm:$0xff]
          %v3238 = vld [vmem:[#allocation8 + $0x100] sm:$0xff]
          %v3239 = vld [vmem:[#allocation8 + $0x108] sm:$0xff]
          %v3240 = vld [vmem:[#allocation8 + $0x110] sm:$0xff]
          %v3241 = vld [vmem:[#allocation8 + $0x118] sm:$0xff]
          %v3242 = vld [vmem:[#allocation8 + $0x120] sm:$0xff]
          %v3243 = vld [vmem:[#allocation8 + $0x128] sm:$0xff]
          %v3244 = vld [vmem:[#allocation8 + $0x130] sm:$0xff]
          %v3245 = vld [vmem:[#allocation8 + $0x138] sm:$0xff]
          %v3246 = vld [vmem:[#allocation8 + $0x140] sm:$0xff]
          %v3247 = vld [vmem:[#allocation8 + $0x148] sm:$0xff]
          %v3248 = vld [vmem:[#allocation8 + $0x150] sm:$0xff]
          %v3249 = vld [vmem:[#allocation8 + $0x158] sm:$0xff]
          %v3250 = vld [vmem:[#allocation8 + $0x160] sm:$0xff]
          %v3251 = vld [vmem:[#allocation8 + $0x168] sm:$0xff]
          %v3252 = vld [vmem:[#allocation8 + $0x170] sm:$0xff]
          %v3253 = vld [vmem:[#allocation8 + $0x178] sm:$0xff]
          %v3254 = vld [vmem:[#allocation8 + $0x180] sm:$0xff]
          %v3255 = vld [vmem:[#allocation8 + $0x188] sm:$0xff]
          %v3256 = vld [vmem:[#allocation8 + $0x190] sm:$0xff]
          %v3257 = vld [vmem:[#allocation8 + $0x198] sm:$0xff]
          %v3258 = vld [vmem:[#allocation8 + $0x1a0] sm:$0xff]
          %v3259 = vld [vmem:[#allocation8 + $0x1a8] sm:$0xff]
          %v3260 = vld [vmem:[#allocation8 + $0x1b0] sm:$0xff]
          %v3261 = vld [vmem:[#allocation8 + $0x1b8] sm:$0xff]
          %v3262 = vld [vmem:[#allocation8 + $0x1c0] sm:$0xff]
          %v3263 = vld [vmem:[#allocation8 + $0x1c8] sm:$0xff]
          %v3264 = vld [vmem:[#allocation8 + $0x1d0] sm:$0xff]
          %v3265 = vld [vmem:[#allocation8 + $0x1d8] sm:$0xff]
          %v3266 = vld [vmem:[#allocation8 + $0x1e0] sm:$0xff]
          %v3267 = vld [vmem:[#allocation8 + $0x1e8] sm:$0xff]
          %v3268 = vld [vmem:[#allocation8 + $0x1f0] sm:$0xff]
          %v3269 = vld [vmem:[#allocation8 + $0x1f8] sm:$0xff]
          %v3270 = vld [vmem:[#allocation8 + $0x200] sm:$0xff]
          %v3271 = vld [vmem:[#allocation8 + $0x208] sm:$0xff]
          %v3272 = vld [vmem:[#allocation8 + $0x210] sm:$0xff]
          %v3273 = vld [vmem:[#allocation8 + $0x218] sm:$0xff]
          %v3274 = vld [vmem:[#allocation8 + $0x220] sm:$0xff]
          %v3275 = vld [vmem:[#allocation8 + $0x228] sm:$0xff]
          %v3276 = vld [vmem:[#allocation8 + $0x230] sm:$0xff]
          %v3277 = vld [vmem:[#allocation8 + $0x238] sm:$0xff]
          %v3278 = vld [vmem:[#allocation8 + $0x240] sm:$0xff]
          %v3279 = vld [vmem:[#allocation8 + $0x248] sm:$0xff]
          %v3280 = vld [vmem:[#allocation8 + $0x250] sm:$0xff]
          %v3281 = vld [vmem:[#allocation8 + $0x258] sm:$0xff]
          %v3282 = vld [vmem:[#allocation8 + $0x260] sm:$0xff]
          %v3283 = vld [vmem:[#allocation8 + $0x268] sm:$0xff]
          %v3284 = vld [vmem:[#allocation8 + $0x270] sm:$0xff]
          %v3285 = vld [vmem:[#allocation8 + $0x278] sm:$0xff]
          %v3286 = vld [vmem:[#allocation8 + $0x280] sm:$0xff]
          %v3287 = vld [vmem:[#allocation8 + $0x288] sm:$0xff]
          %v3288 = vld [vmem:[#allocation8 + $0x290] sm:$0xff]
          %v3289 = vld [vmem:[#allocation8 + $0x298] sm:$0xff]
          %v3290 = vld [vmem:[#allocation8 + $0x2a0] sm:$0xff]
          %v3291 = vld [vmem:[#allocation8 + $0x2a8] sm:$0xff]
          %v3292 = vld [vmem:[#allocation8 + $0x2b0] sm:$0xff]
          %v3293 = vld [vmem:[#allocation8 + $0x2b8] sm:$0xff]
          %v3294 = vld [vmem:[#allocation8 + $0x2c0] sm:$0xff]
          %v3295 = vld [vmem:[#allocation8 + $0x2c8] sm:$0xff]
          %v3296 = vld [vmem:[#allocation8 + $0x2d0] sm:$0xff]
          %v3297 = vld [vmem:[#allocation8 + $0x2d8] sm:$0xff]
          %v3298 = vld [vmem:[#allocation8 + $0x2e0] sm:$0xff]
          %v3299 = vld [vmem:[#allocation8 + $0x2e8] sm:$0xff]
          %v3300 = vld [vmem:[#allocation8 + $0x2f0] sm:$0xff]
          %v3301 = vld [vmem:[#allocation8 + $0x2f8] sm:$0xff]
          %v3302 = vld [vmem:[#allocation8 + $0x300] sm:$0xff]
          %v3303 = vld [vmem:[#allocation8 + $0x308] sm:$0xff]
          %v3304 = vld [vmem:[#allocation8 + $0x310] sm:$0xff]
          %v3305 = vld [vmem:[#allocation8 + $0x318] sm:$0xff]
          %v3306 = vld [vmem:[#allocation8 + $0x320] sm:$0xff]
          %v3307 = vld [vmem:[#allocation8 + $0x328] sm:$0xff]
          %v3308 = vld [vmem:[#allocation8 + $0x330] sm:$0xff]
          %v3309 = vld [vmem:[#allocation8 + $0x338] sm:$0xff]
          %v3310 = vld [vmem:[#allocation8 + $0x340] sm:$0xff]
          %v3311 = vld [vmem:[#allocation8 + $0x348] sm:$0xff]
          %v3312 = vld [vmem:[#allocation8 + $0x350] sm:$0xff]
          %v3313 = vld [vmem:[#allocation8 + $0x358] sm:$0xff]
          %v3314 = vld [vmem:[#allocation8 + $0x360] sm:$0xff]
          %v3315 = vld [vmem:[#allocation8 + $0x368] sm:$0xff]
          %v3316 = vld [vmem:[#allocation8 + $0x370] sm:$0xff]
          %v3317 = vld [vmem:[#allocation8 + $0x378] sm:$0xff]
          %v3318 = vld [vmem:[#allocation8 + $0x380] sm:$0xff]
          %v3319 = vld [vmem:[#allocation8 + $0x388] sm:$0xff]
          %v3320 = vld [vmem:[#allocation8 + $0x390] sm:$0xff]
          %v3321 = vld [vmem:[#allocation8 + $0x398] sm:$0xff]
          %v3322 = vld [vmem:[#allocation8 + $0x3a0] sm:$0xff]
          %v3323 = vld [vmem:[#allocation8 + $0x3a8] sm:$0xff]
          %v3324 = vld [vmem:[#allocation8 + $0x3b0] sm:$0xff]
          %v3325 = vld [vmem:[#allocation8 + $0x3b8] sm:$0xff]
          %v3326 = vld [vmem:[#allocation8 + $0x3c0] sm:$0xff]
          %v3327 = vld [vmem:[#allocation8 + $0x3c8] sm:$0xff]
          %v3328 = vld [vmem:[#allocation8 + $0x3d0] sm:$0xff]
          %v3329 = vld [vmem:[#allocation8 + $0x3d8] sm:$0xff]
          %v3330 = vld [vmem:[#allocation8 + $0x3e0] sm:$0xff]
          %v3331 = vld [vmem:[#allocation8 + $0x3e8] sm:$0xff]
          %v3332 = vld [vmem:[#allocation8 + $0x3f0] sm:$0xff]
          %v3333 = vld [vmem:[#allocation8 + $0x3f8] sm:$0xff]
          %v3334 = vld [vmem:[%s5] sm:$0xff]
          %v3336 = vlaneseq
          %v3337 = vshrl.u32 %v3336, 7
          %v3338 = vsub.s32 0, %v3337
          %v3339 = vrot.slane %v3334, %v3338
          %v3340 = vlaneseq
          %v3341 = vshrl.u32 %v3340, 7
          %v3342 = vsub.s32 1, %v3341
          %v3343 = vrot.slane %v3334, %v3342
          %v3344 = vlaneseq
          %v3345 = vshrl.u32 %v3344, 7
          %v3346 = vsub.s32 2, %v3345
          %v3347 = vrot.slane %v3334, %v3346
          %v3348 = vlaneseq
          %v3349 = vshrl.u32 %v3348, 7
          %v3350 = vsub.s32 3, %v3349
          %v3351 = vrot.slane %v3334, %v3350
          %v3352 = vlaneseq
          %v3353 = vshrl.u32 %v3352, 7
          %v3354 = vsub.s32 4, %v3353
          %v3355 = vrot.slane %v3334, %v3354
          %v3356 = vlaneseq
          %v3357 = vshrl.u32 %v3356, 7
          %v3358 = vsub.s32 5, %v3357
          %v3359 = vrot.slane %v3334, %v3358
          %v3360 = vlaneseq
          %v3361 = vshrl.u32 %v3360, 7
          %v3362 = vsub.s32 6, %v3361
          %v3363 = vrot.slane %v3334, %v3362
          %v3364 = vlaneseq
          %v3365 = vshrl.u32 %v3364, 7
          %v3366 = vsub.s32 7, %v3365
          %v3367 = vrot.slane %v3334, %v3366
          %v3504 = vunpack.c.l.b16 %v3206
          %v3505 = vunpack.c.h.b16 %v3206
          %v3506 = vunpack.c.l.b16 %v3207
          %v3507 = vunpack.c.h.b16 %v3207
          %v3508 = vunpack.c.l.b16 %v3208
          %v3509 = vunpack.c.h.b16 %v3208
          %v3510 = vunpack.c.l.b16 %v3209
          %v3511 = vunpack.c.h.b16 %v3209
          %v3512 = vunpack.c.l.b16 %v3210
          %v3513 = vunpack.c.h.b16 %v3210
          %v3514 = vunpack.c.l.b16 %v3211
          %v3515 = vunpack.c.h.b16 %v3211
          %v3516 = vunpack.c.l.b16 %v3212
          %v3517 = vunpack.c.h.b16 %v3212
          %v3518 = vunpack.c.l.b16 %v3213
          %v3519 = vunpack.c.h.b16 %v3213
          %v3520 = vunpack.c.l.b16 %v3214
          %v3521 = vunpack.c.h.b16 %v3214
          %v3522 = vunpack.c.l.b16 %v3215
          %v3523 = vunpack.c.h.b16 %v3215
          %v3524 = vunpack.c.l.b16 %v3216
          %v3525 = vunpack.c.h.b16 %v3216
          %v3526 = vunpack.c.l.b16 %v3217
          %v3527 = vunpack.c.h.b16 %v3217
          %v3528 = vunpack.c.l.b16 %v3218
          %v3529 = vunpack.c.h.b16 %v3218
          %v3530 = vunpack.c.l.b16 %v3219
          %v3531 = vunpack.c.h.b16 %v3219
          %v3532 = vunpack.c.l.b16 %v3220
          %v3533 = vunpack.c.h.b16 %v3220
          %v3534 = vunpack.c.l.b16 %v3221
          %v3535 = vunpack.c.h.b16 %v3221
          %v3536 = vunpack.c.l.b16 %v3222
          %v3537 = vunpack.c.h.b16 %v3222
          %v3538 = vunpack.c.l.b16 %v3223
          %v3539 = vunpack.c.h.b16 %v3223
          %v3540 = vunpack.c.l.b16 %v3224
          %v3541 = vunpack.c.h.b16 %v3224
          %v3542 = vunpack.c.l.b16 %v3225
          %v3543 = vunpack.c.h.b16 %v3225
          %v3544 = vunpack.c.l.b16 %v3226
          %v3545 = vunpack.c.h.b16 %v3226
          %v3546 = vunpack.c.l.b16 %v3227
          %v3547 = vunpack.c.h.b16 %v3227
          %v3548 = vunpack.c.l.b16 %v3228
          %v3549 = vunpack.c.h.b16 %v3228
          %v3550 = vunpack.c.l.b16 %v3229
          %v3551 = vunpack.c.h.b16 %v3229
          %v3552 = vunpack.c.l.b16 %v3230
          %v3553 = vunpack.c.h.b16 %v3230
          %v3554 = vunpack.c.l.b16 %v3231
          %v3555 = vunpack.c.h.b16 %v3231
          %v3556 = vunpack.c.l.b16 %v3232
          %v3557 = vunpack.c.h.b16 %v3232
          %v3558 = vunpack.c.l.b16 %v3233
          %v3559 = vunpack.c.h.b16 %v3233
          %v3560 = vunpack.c.l.b16 %v3234
          %v3561 = vunpack.c.h.b16 %v3234
          %v3562 = vunpack.c.l.b16 %v3235
          %v3563 = vunpack.c.h.b16 %v3235
          %v3564 = vunpack.c.l.b16 %v3236
          %v3565 = vunpack.c.h.b16 %v3236
          %v3566 = vunpack.c.l.b16 %v3237
          %v3567 = vunpack.c.h.b16 %v3237
          %v3568 = vunpack.c.l.b16 %v3238
          %v3569 = vunpack.c.h.b16 %v3238
          %v3570 = vunpack.c.l.b16 %v3239
          %v3571 = vunpack.c.h.b16 %v3239
          %v3572 = vunpack.c.l.b16 %v3240
          %v3573 = vunpack.c.h.b16 %v3240
          %v3574 = vunpack.c.l.b16 %v3241
          %v3575 = vunpack.c.h.b16 %v3241
          %v3576 = vunpack.c.l.b16 %v3242
          %v3577 = vunpack.c.h.b16 %v3242
          %v3578 = vunpack.c.l.b16 %v3243
          %v3579 = vunpack.c.h.b16 %v3243
          %v3580 = vunpack.c.l.b16 %v3244
          %v3581 = vunpack.c.h.b16 %v3244
          %v3582 = vunpack.c.l.b16 %v3245
          %v3583 = vunpack.c.h.b16 %v3245
          %v3584 = vunpack.c.l.b16 %v3246
          %v3585 = vunpack.c.h.b16 %v3246
          %v3586 = vunpack.c.l.b16 %v3247
          %v3587 = vunpack.c.h.b16 %v3247
          %v3588 = vunpack.c.l.b16 %v3248
          %v3589 = vunpack.c.h.b16 %v3248
          %v3590 = vunpack.c.l.b16 %v3249
          %v3591 = vunpack.c.h.b16 %v3249
          %v3592 = vunpack.c.l.b16 %v3250
          %v3593 = vunpack.c.h.b16 %v3250
          %v3594 = vunpack.c.l.b16 %v3251
          %v3595 = vunpack.c.h.b16 %v3251
          %v3596 = vunpack.c.l.b16 %v3252
          %v3597 = vunpack.c.h.b16 %v3252
          %v3598 = vunpack.c.l.b16 %v3253
          %v3599 = vunpack.c.h.b16 %v3253
          %v3600 = vunpack.c.l.b16 %v3254
          %v3601 = vunpack.c.h.b16 %v3254
          %v3602 = vunpack.c.l.b16 %v3255
          %v3603 = vunpack.c.h.b16 %v3255
          %v3604 = vunpack.c.l.b16 %v3256
          %v3605 = vunpack.c.h.b16 %v3256
          %v3606 = vunpack.c.l.b16 %v3257
          %v3607 = vunpack.c.h.b16 %v3257
          %v3608 = vunpack.c.l.b16 %v3258
          %v3609 = vunpack.c.h.b16 %v3258
          %v3610 = vunpack.c.l.b16 %v3259
          %v3611 = vunpack.c.h.b16 %v3259
          %v3612 = vunpack.c.l.b16 %v3260
          %v3613 = vunpack.c.h.b16 %v3260
          %v3614 = vunpack.c.l.b16 %v3261
          %v3615 = vunpack.c.h.b16 %v3261
          %v3616 = vunpack.c.l.b16 %v3262
          %v3617 = vunpack.c.h.b16 %v3262
          %v3618 = vunpack.c.l.b16 %v3263
          %v3619 = vunpack.c.h.b16 %v3263
          %v3620 = vunpack.c.l.b16 %v3264
          %v3621 = vunpack.c.h.b16 %v3264
          %v3622 = vunpack.c.l.b16 %v3265
          %v3623 = vunpack.c.h.b16 %v3265
          %v3624 = vunpack.c.l.b16 %v3266
          %v3625 = vunpack.c.h.b16 %v3266
          %v3626 = vunpack.c.l.b16 %v3267
          %v3627 = vunpack.c.h.b16 %v3267
          %v3628 = vunpack.c.l.b16 %v3268
          %v3629 = vunpack.c.h.b16 %v3268
          %v3630 = vunpack.c.l.b16 %v3269
          %v3631 = vunpack.c.h.b16 %v3269
          %v3632 = vunpack.c.l.b16 %v3270
          %v3633 = vunpack.c.h.b16 %v3270
          %v3634 = vunpack.c.l.b16 %v3271
          %v3635 = vunpack.c.h.b16 %v3271
          %v3636 = vunpack.c.l.b16 %v3272
          %v3637 = vunpack.c.h.b16 %v3272
          %v3638 = vunpack.c.l.b16 %v3273
          %v3639 = vunpack.c.h.b16 %v3273
          %v3640 = vunpack.c.l.b16 %v3274
          %v3641 = vunpack.c.h.b16 %v3274
          %v3642 = vunpack.c.l.b16 %v3275
          %v3643 = vunpack.c.h.b16 %v3275
          %v3644 = vunpack.c.l.b16 %v3276
          %v3645 = vunpack.c.h.b16 %v3276
          %v3646 = vunpack.c.l.b16 %v3277
          %v3647 = vunpack.c.h.b16 %v3277
          %v3648 = vunpack.c.l.b16 %v3278
          %v3649 = vunpack.c.h.b16 %v3278
          %v3650 = vunpack.c.l.b16 %v3279
          %v3651 = vunpack.c.h.b16 %v3279
          %v3652 = vunpack.c.l.b16 %v3280
          %v3653 = vunpack.c.h.b16 %v3280
          %v3654 = vunpack.c.l.b16 %v3281
          %v3655 = vunpack.c.h.b16 %v3281
          %v3656 = vunpack.c.l.b16 %v3282
          %v3657 = vunpack.c.h.b16 %v3282
          %v3658 = vunpack.c.l.b16 %v3283
          %v3659 = vunpack.c.h.b16 %v3283
          %v3660 = vunpack.c.l.b16 %v3284
          %v3661 = vunpack.c.h.b16 %v3284
          %v3662 = vunpack.c.l.b16 %v3285
          %v3663 = vunpack.c.h.b16 %v3285
          %v3664 = vunpack.c.l.b16 %v3286
          %v3665 = vunpack.c.h.b16 %v3286
          %v3666 = vunpack.c.l.b16 %v3287
          %v3667 = vunpack.c.h.b16 %v3287
          %v3668 = vunpack.c.l.b16 %v3288
          %v3669 = vunpack.c.h.b16 %v3288
          %v3670 = vunpack.c.l.b16 %v3289
          %v3671 = vunpack.c.h.b16 %v3289
          %v3672 = vunpack.c.l.b16 %v3290
          %v3673 = vunpack.c.h.b16 %v3290
          %v3674 = vunpack.c.l.b16 %v3291
          %v3675 = vunpack.c.h.b16 %v3291
          %v3676 = vunpack.c.l.b16 %v3292
          %v3677 = vunpack.c.h.b16 %v3292
          %v3678 = vunpack.c.l.b16 %v3293
          %v3679 = vunpack.c.h.b16 %v3293
          %v3680 = vunpack.c.l.b16 %v3294
          %v3681 = vunpack.c.h.b16 %v3294
          %v3682 = vunpack.c.l.b16 %v3295
          %v3683 = vunpack.c.h.b16 %v3295
          %v3684 = vunpack.c.l.b16 %v3296
          %v3685 = vunpack.c.h.b16 %v3296
          %v3686 = vunpack.c.l.b16 %v3297
          %v3687 = vunpack.c.h.b16 %v3297
          %v3688 = vunpack.c.l.b16 %v3298
          %v3689 = vunpack.c.h.b16 %v3298
          %v3690 = vunpack.c.l.b16 %v3299
          %v3691 = vunpack.c.h.b16 %v3299
          %v3692 = vunpack.c.l.b16 %v3300
          %v3693 = vunpack.c.h.b16 %v3300
          %v3694 = vunpack.c.l.b16 %v3301
          %v3695 = vunpack.c.h.b16 %v3301
          %v3696 = vunpack.c.l.b16 %v3302
          %v3697 = vunpack.c.h.b16 %v3302
          %v3698 = vunpack.c.l.b16 %v3303
          %v3699 = vunpack.c.h.b16 %v3303
          %v3700 = vunpack.c.l.b16 %v3304
          %v3701 = vunpack.c.h.b16 %v3304
          %v3702 = vunpack.c.l.b16 %v3305
          %v3703 = vunpack.c.h.b16 %v3305
          %v3704 = vunpack.c.l.b16 %v3306
          %v3705 = vunpack.c.h.b16 %v3306
          %v3706 = vunpack.c.l.b16 %v3307
          %v3707 = vunpack.c.h.b16 %v3307
          %v3708 = vunpack.c.l.b16 %v3308
          %v3709 = vunpack.c.h.b16 %v3308
          %v3710 = vunpack.c.l.b16 %v3309
          %v3711 = vunpack.c.h.b16 %v3309
          %v3712 = vunpack.c.l.b16 %v3310
          %v3713 = vunpack.c.h.b16 %v3310
          %v3714 = vunpack.c.l.b16 %v3311
          %v3715 = vunpack.c.h.b16 %v3311
          %v3716 = vunpack.c.l.b16 %v3312
          %v3717 = vunpack.c.h.b16 %v3312
          %v3718 = vunpack.c.l.b16 %v3313
          %v3719 = vunpack.c.h.b16 %v3313
          %v3720 = vunpack.c.l.b16 %v3314
          %v3721 = vunpack.c.h.b16 %v3314
          %v3722 = vunpack.c.l.b16 %v3315
          %v3723 = vunpack.c.h.b16 %v3315
          %v3724 = vunpack.c.l.b16 %v3316
          %v3725 = vunpack.c.h.b16 %v3316
          %v3726 = vunpack.c.l.b16 %v3317
          %v3727 = vunpack.c.h.b16 %v3317
          %v3728 = vunpack.c.l.b16 %v3318
          %v3729 = vunpack.c.h.b16 %v3318
          %v3730 = vunpack.c.l.b16 %v3319
          %v3731 = vunpack.c.h.b16 %v3319
          %v3732 = vunpack.c.l.b16 %v3320
          %v3733 = vunpack.c.h.b16 %v3320
          %v3734 = vunpack.c.l.b16 %v3321
          %v3735 = vunpack.c.h.b16 %v3321
          %v3736 = vunpack.c.l.b16 %v3322
          %v3737 = vunpack.c.h.b16 %v3322
          %v3738 = vunpack.c.l.b16 %v3323
          %v3739 = vunpack.c.h.b16 %v3323
          %v3740 = vunpack.c.l.b16 %v3324
          %v3741 = vunpack.c.h.b16 %v3324
          %v3742 = vunpack.c.l.b16 %v3325
          %v3743 = vunpack.c.h.b16 %v3325
          %v3744 = vunpack.c.l.b16 %v3326
          %v3745 = vunpack.c.h.b16 %v3326
          %v3746 = vunpack.c.l.b16 %v3327
          %v3747 = vunpack.c.h.b16 %v3327
          %v3748 = vunpack.c.l.b16 %v3328
          %v3749 = vunpack.c.h.b16 %v3328
          %v3750 = vunpack.c.l.b16 %v3329
          %v3751 = vunpack.c.h.b16 %v3329
          %v3752 = vunpack.c.l.b16 %v3330
          %v3753 = vunpack.c.h.b16 %v3330
          %v3754 = vunpack.c.l.b16 %v3331
          %v3755 = vunpack.c.h.b16 %v3331
          %v3756 = vunpack.c.l.b16 %v3332
          %v3757 = vunpack.c.h.b16 %v3332
          %v3758 = vunpack.c.l.b16 %v3333
          %v3759 = vunpack.c.h.b16 %v3333
          %v3760 = vpack.c.b16 %v3512, %v3504
          %v3761 = vpack.c.b16 %v3513, %v3505
          %v3762 = vpack.c.b16 %v3514, %v3506
          %v3763 = vpack.c.b16 %v3515, %v3507
          %v3764 = vpack.c.b16 %v3516, %v3508
          %v3765 = vpack.c.b16 %v3517, %v3509
          %v3766 = vpack.c.b16 %v3518, %v3510
          %v3767 = vpack.c.b16 %v3519, %v3511
          %v3768 = vpack.c.b16 %v3528, %v3520
          %v3769 = vpack.c.b16 %v3529, %v3521
          %v3770 = vpack.c.b16 %v3530, %v3522
          %v3771 = vpack.c.b16 %v3531, %v3523
          %v3772 = vpack.c.b16 %v3532, %v3524
          %v3773 = vpack.c.b16 %v3533, %v3525
          %v3774 = vpack.c.b16 %v3534, %v3526
          %v3775 = vpack.c.b16 %v3535, %v3527
          %v3776 = vpack.c.b16 %v3544, %v3536
          %v3777 = vpack.c.b16 %v3545, %v3537
          %v3778 = vpack.c.b16 %v3546, %v3538
          %v3779 = vpack.c.b16 %v3547, %v3539
          %v3780 = vpack.c.b16 %v3548, %v3540
          %v3781 = vpack.c.b16 %v3549, %v3541
          %v3782 = vpack.c.b16 %v3550, %v3542
          %v3783 = vpack.c.b16 %v3551, %v3543
          %v3784 = vpack.c.b16 %v3560, %v3552
          %v3785 = vpack.c.b16 %v3561, %v3553
          %v3786 = vpack.c.b16 %v3562, %v3554
          %v3787 = vpack.c.b16 %v3563, %v3555
          %v3788 = vpack.c.b16 %v3564, %v3556
          %v3789 = vpack.c.b16 %v3565, %v3557
          %v3790 = vpack.c.b16 %v3566, %v3558
          %v3791 = vpack.c.b16 %v3567, %v3559
          %v3792 = vpack.c.b16 %v3576, %v3568
          %v3793 = vpack.c.b16 %v3577, %v3569
          %v3794 = vpack.c.b16 %v3578, %v3570
          %v3795 = vpack.c.b16 %v3579, %v3571
          %v3796 = vpack.c.b16 %v3580, %v3572
          %v3797 = vpack.c.b16 %v3581, %v3573
          %v3798 = vpack.c.b16 %v3582, %v3574
          %v3799 = vpack.c.b16 %v3583, %v3575
          %v3800 = vpack.c.b16 %v3592, %v3584
          %v3801 = vpack.c.b16 %v3593, %v3585
          %v3802 = vpack.c.b16 %v3594, %v3586
          %v3803 = vpack.c.b16 %v3595, %v3587
          %v3804 = vpack.c.b16 %v3596, %v3588
          %v3805 = vpack.c.b16 %v3597, %v3589
          %v3806 = vpack.c.b16 %v3598, %v3590
          %v3807 = vpack.c.b16 %v3599, %v3591
          %v3808 = vpack.c.b16 %v3608, %v3600
          %v3809 = vpack.c.b16 %v3609, %v3601
          %v3810 = vpack.c.b16 %v3610, %v3602
          %v3811 = vpack.c.b16 %v3611, %v3603
          %v3812 = vpack.c.b16 %v3612, %v3604
          %v3813 = vpack.c.b16 %v3613, %v3605
          %v3814 = vpack.c.b16 %v3614, %v3606
          %v3815 = vpack.c.b16 %v3615, %v3607
          %v3816 = vpack.c.b16 %v3624, %v3616
          %v3817 = vpack.c.b16 %v3625, %v3617
          %v3818 = vpack.c.b16 %v3626, %v3618
          %v3819 = vpack.c.b16 %v3627, %v3619
          %v3820 = vpack.c.b16 %v3628, %v3620
          %v3821 = vpack.c.b16 %v3629, %v3621
          %v3822 = vpack.c.b16 %v3630, %v3622
          %v3823 = vpack.c.b16 %v3631, %v3623
          %v3824 = vpack.c.b16 %v3640, %v3632
          %v3825 = vpack.c.b16 %v3641, %v3633
          %v3826 = vpack.c.b16 %v3642, %v3634
          %v3827 = vpack.c.b16 %v3643, %v3635
          %v3828 = vpack.c.b16 %v3644, %v3636
          %v3829 = vpack.c.b16 %v3645, %v3637
          %v3830 = vpack.c.b16 %v3646, %v3638
          %v3831 = vpack.c.b16 %v3647, %v3639
          %v3832 = vpack.c.b16 %v3656, %v3648
          %v3833 = vpack.c.b16 %v3657, %v3649
          %v3834 = vpack.c.b16 %v3658, %v3650
          %v3835 = vpack.c.b16 %v3659, %v3651
          %v3836 = vpack.c.b16 %v3660, %v3652
          %v3837 = vpack.c.b16 %v3661, %v3653
          %v3838 = vpack.c.b16 %v3662, %v3654
          %v3839 = vpack.c.b16 %v3663, %v3655
          %v3840 = vpack.c.b16 %v3672, %v3664
          %v3841 = vpack.c.b16 %v3673, %v3665
          %v3842 = vpack.c.b16 %v3674, %v3666
          %v3843 = vpack.c.b16 %v3675, %v3667
          %v3844 = vpack.c.b16 %v3676, %v3668
          %v3845 = vpack.c.b16 %v3677, %v3669
          %v3846 = vpack.c.b16 %v3678, %v3670
          %v3847 = vpack.c.b16 %v3679, %v3671
          %v3848 = vpack.c.b16 %v3688, %v3680
          %v3849 = vpack.c.b16 %v3689, %v3681
          %v3850 = vpack.c.b16 %v3690, %v3682
          %v3851 = vpack.c.b16 %v3691, %v3683
          %v3852 = vpack.c.b16 %v3692, %v3684
          %v3853 = vpack.c.b16 %v3693, %v3685
          %v3854 = vpack.c.b16 %v3694, %v3686
          %v3855 = vpack.c.b16 %v3695, %v3687
          %v3856 = vpack.c.b16 %v3704, %v3696
          %v3857 = vpack.c.b16 %v3705, %v3697
          %v3858 = vpack.c.b16 %v3706, %v3698
          %v3859 = vpack.c.b16 %v3707, %v3699
          %v3860 = vpack.c.b16 %v3708, %v3700
          %v3861 = vpack.c.b16 %v3709, %v3701
          %v3862 = vpack.c.b16 %v3710, %v3702
          %v3863 = vpack.c.b16 %v3711, %v3703
          %v3864 = vpack.c.b16 %v3720, %v3712
          %v3865 = vpack.c.b16 %v3721, %v3713
          %v3866 = vpack.c.b16 %v3722, %v3714
          %v3867 = vpack.c.b16 %v3723, %v3715
          %v3868 = vpack.c.b16 %v3724, %v3716
          %v3869 = vpack.c.b16 %v3725, %v3717
          %v3870 = vpack.c.b16 %v3726, %v3718
          %v3871 = vpack.c.b16 %v3727, %v3719
          %v3872 = vpack.c.b16 %v3736, %v3728
          %v3873 = vpack.c.b16 %v3737, %v3729
          %v3874 = vpack.c.b16 %v3738, %v3730
          %v3875 = vpack.c.b16 %v3739, %v3731
          %v3876 = vpack.c.b16 %v3740, %v3732
          %v3877 = vpack.c.b16 %v3741, %v3733
          %v3878 = vpack.c.b16 %v3742, %v3734
          %v3879 = vpack.c.b16 %v3743, %v3735
          %v3880 = vpack.c.b16 %v3752, %v3744
          %v3881 = vpack.c.b16 %v3753, %v3745
          %v3882 = vpack.c.b16 %v3754, %v3746
          %v3883 = vpack.c.b16 %v3755, %v3747
          %v3884 = vpack.c.b16 %v3756, %v3748
          %v3885 = vpack.c.b16 %v3757, %v3749
          %v3886 = vpack.c.b16 %v3758, %v3750
          %v3887 = vpack.c.b16 %v3759, %v3751
          %4016 = vmatprep.subr.bf16.mxu0 %v3761
          %4017 = vmatpush1.bf16.msra.mxu0 %v3760
          %4018 = vmatprep.subr.bf16.mxu0 %v3769
          %4019 = vmatpush1.bf16.msra.mxu0 %v3768
          %4020 = vmatprep.subr.bf16.mxu0 %v3777
          %4021 = vmatpush1.bf16.msra.mxu0 %v3776
          %4022 = vmatprep.subr.bf16.mxu0 %v3785
          %4023 = vmatpush1.bf16.msra.mxu0 %v3784
          %4024 = vmatprep.subr.bf16.mxu0 %v3793
          %4025 = vmatpush1.bf16.msra.mxu0 %v3792
          %4026 = vmatprep.subr.bf16.mxu0 %v3801
          %4027 = vmatpush1.bf16.msra.mxu0 %v3800
          %4028 = vmatprep.subr.bf16.mxu0 %v3809
          %4029 = vmatpush1.bf16.msra.mxu0 %v3808
          %4030 = vmatprep.subr.bf16.mxu0 %v3817
          %4031 = vmatpush1.bf16.msra.mxu0 %v3816
          %4032 = vmatprep.subr.bf16.mxu0 %v3825
          %4033 = vmatpush1.bf16.msra.mxu0 %v3824
          %4034 = vmatprep.subr.bf16.mxu0 %v3833
          %4035 = vmatpush1.bf16.msra.mxu0 %v3832
          %4036 = vmatprep.subr.bf16.mxu0 %v3841
          %4037 = vmatpush1.bf16.msra.mxu0 %v3840
          %4038 = vmatprep.subr.bf16.mxu0 %v3849
          %4039 = vmatpush1.bf16.msra.mxu0 %v3848
          %4040 = vmatprep.subr.bf16.mxu0 %v3857
          %4041 = vmatpush1.bf16.msra.mxu0 %v3856
          %4042 = vmatprep.subr.bf16.mxu0 %v3865
          %4043 = vmatpush1.bf16.msra.mxu0 %v3864
          %4044 = vmatprep.subr.bf16.mxu0 %v3873
          %4045 = vmatpush1.bf16.msra.mxu0 %v3872
          %4046 = vmatprep.subr.bf16.mxu0 %v3881
          %4047 = vmatpush1.bf16.msra.mxu0 %v3880
          %4048 = vmatprep.mubr.bf16.mxu0 %v3205
          %4049 = vmatmul.mubr.bf16.gmra.mrb[0].mxu0 %v3204
          %v4050 = vpop.f32.mrb[0].mxu0
          %v4051 = vadd.f32 %v3339, %v4050
          %v4052 = vpop.f32.mrb[0].mxu0
          %v4053 = vadd.f32 %v3343, %v4052
          %v4054 = vpop.f32.mrb[0].mxu0
          %v4055 = vadd.f32 %v3339, %v4054
          %v4056 = vpop.f32.mrb[0].mxu0
          %v4057 = vadd.f32 %v3343, %v4056
          %4058 = vdwg.mxu0
          %4059 = vmatprep.subr.bf16.mxu0 %v3763
          %4060 = vmatpush1.bf16.msra.mxu0 %v3762
          %4061 = vmatprep.subr.bf16.mxu0 %v3771
          %4062 = vmatpush1.bf16.msra.mxu0 %v3770
          %4063 = vmatprep.subr.bf16.mxu0 %v3779
          %4064 = vmatpush1.bf16.msra.mxu0 %v3778
          %4065 = vmatprep.subr.bf16.mxu0 %v3787
          %4066 = vmatpush1.bf16.msra.mxu0 %v3786
          %4067 = vmatprep.subr.bf16.mxu0 %v3795
          %4068 = vmatpush1.bf16.msra.mxu0 %v3794
          %4069 = vmatprep.subr.bf16.mxu0 %v3803
          %4070 = vmatpush1.bf16.msra.mxu0 %v3802
          %4071 = vmatprep.subr.bf16.mxu0 %v3811
          %4072 = vmatpush1.bf16.msra.mxu0 %v3810
          %4073 = vmatprep.subr.bf16.mxu0 %v3819
          %4074 = vmatpush1.bf16.msra.mxu0 %v3818
          %4075 = vmatprep.subr.bf16.mxu0 %v3827
          %4076 = vmatpush1.bf16.msra.mxu0 %v3826
          %4077 = vmatprep.subr.bf16.mxu0 %v3835
          %4078 = vmatpush1.bf16.msra.mxu0 %v3834
          %4079 = vmatprep.subr.bf16.mxu0 %v3843
          %4080 = vmatpush1.bf16.msra.mxu0 %v3842
          %4081 = vmatprep.subr.bf16.mxu0 %v3851
          %4082 = vmatpush1.bf16.msra.mxu0 %v3850
          %4083 = vmatprep.subr.bf16.mxu0 %v3859
          %4084 = vmatpush1.bf16.msra.mxu0 %v3858
          %4085 = vmatprep.subr.bf16.mxu0 %v3867
          %4086 = vmatpush1.bf16.msra.mxu0 %v3866
          %4087 = vmatprep.subr.bf16.mxu0 %v3875
          %4088 = vmatpush1.bf16.msra.mxu0 %v3874
          %4089 = vmatprep.subr.bf16.mxu0 %v3883
          %4090 = vmatpush1.bf16.msra.mxu0 %v3882
          %4091 = vmatprep.mubr.bf16.mxu0 %v3205
          %4092 = vmatmul.mubr.bf16.gmra.mrb[0].mxu0 %v3204
          %v4093 = vpop.f32.mrb[0].mxu0
          %v4094 = vadd.f32 %v3347, %v4093
          %v4095 = vpop.f32.mrb[0].mxu0
          %v4096 = vadd.f32 %v3351, %v4095
          %v4097 = vpop.f32.mrb[0].mxu0
          %v4098 = vadd.f32 %v3347, %v4097
          %v4099 = vpop.f32.mrb[0].mxu0
          %v4100 = vadd.f32 %v3351, %v4099
          %4101 = vdwg.mxu0
          %4102 = vmatprep.subr.bf16.mxu0 %v3765
          %4103 = vmatpush1.bf16.msra.mxu0 %v3764
          %4104 = vmatprep.subr.bf16.mxu0 %v3773
          %4105 = vmatpush1.bf16.msra.mxu0 %v3772
          %4106 = vmatprep.subr.bf16.mxu0 %v3781
          %4107 = vmatpush1.bf16.msra.mxu0 %v3780
          %4108 = vmatprep.subr.bf16.mxu0 %v3789
          %4109 = vmatpush1.bf16.msra.mxu0 %v3788
          %4110 = vmatprep.subr.bf16.mxu0 %v3797
          %4111 = vmatpush1.bf16.msra.mxu0 %v3796
          %4112 = vmatprep.subr.bf16.mxu0 %v3805
          %4113 = vmatpush1.bf16.msra.mxu0 %v3804
          %4114 = vmatprep.subr.bf16.mxu0 %v3813
          %4115 = vmatpush1.bf16.msra.mxu0 %v3812
          %4116 = vmatprep.subr.bf16.mxu0 %v3821
          %4117 = vmatpush1.bf16.msra.mxu0 %v3820
          %4118 = vmatprep.subr.bf16.mxu0 %v3829
          %4119 = vmatpush1.bf16.msra.mxu0 %v3828
          %4120 = vmatprep.subr.bf16.mxu0 %v3837
          %4121 = vmatpush1.bf16.msra.mxu0 %v3836
          %4122 = vmatprep.subr.bf16.mxu0 %v3845
          %4123 = vmatpush1.bf16.msra.mxu0 %v3844
          %4124 = vmatprep.subr.bf16.mxu0 %v3853
          %4125 = vmatpush1.bf16.msra.mxu0 %v3852
          %4126 = vmatprep.subr.bf16.mxu0 %v3861
          %4127 = vmatpush1.bf16.msra.mxu0 %v3860
          %4128 = vmatprep.subr.bf16.mxu0 %v3869
          %4129 = vmatpush1.bf16.msra.mxu0 %v3868
          %4130 = vmatprep.subr.bf16.mxu0 %v3877
          %4131 = vmatpush1.bf16.msra.mxu0 %v3876
          %4132 = vmatprep.subr.bf16.mxu0 %v3885
          %4133 = vmatpush1.bf16.msra.mxu0 %v3884
          %4134 = vmatprep.mubr.bf16.mxu0 %v3205
          %4135 = vmatmul.mubr.bf16.gmra.mrb[0].mxu0 %v3204
          %v4136 = vpop.f32.mrb[0].mxu0
          %v4137 = vadd.f32 %v3355, %v4136
          %v4138 = vpop.f32.mrb[0].mxu0
          %v4139 = vadd.f32 %v3359, %v4138
          %v4140 = vpop.f32.mrb[0].mxu0
          %v4141 = vadd.f32 %v3355, %v4140
          %v4142 = vpop.f32.mrb[0].mxu0
          %v4143 = vadd.f32 %v3359, %v4142
          %4144 = vdwg.mxu0
          %4145 = vmatprep.subr.bf16.mxu0 %v3767
          %4146 = vmatpush1.bf16.msra.mxu0 %v3766
          %4147 = vmatprep.subr.bf16.mxu0 %v3775
          %4148 = vmatpush1.bf16.msra.mxu0 %v3774
          %4149 = vmatprep.subr.bf16.mxu0 %v3783
          %4150 = vmatpush1.bf16.msra.mxu0 %v3782
          %4151 = vmatprep.subr.bf16.mxu0 %v3791
          %4152 = vmatpush1.bf16.msra.mxu0 %v3790
          %4153 = vmatprep.subr.bf16.mxu0 %v3799
          %4154 = vmatpush1.bf16.msra.mxu0 %v3798
          %4155 = vmatprep.subr.bf16.mxu0 %v3807
          %4156 = vmatpush1.bf16.msra.mxu0 %v3806
          %4157 = vmatprep.subr.bf16.mxu0 %v3815
          %4158 = vmatpush1.bf16.msra.mxu0 %v3814
          %4159 = vmatprep.subr.bf16.mxu0 %v3823
          %4160 = vmatpush1.bf16.msra.mxu0 %v3822
          %4161 = vmatprep.subr.bf16.mxu0 %v3831
          %4162 = vmatpush1.bf16.msra.mxu0 %v3830
          %4163 = vmatprep.subr.bf16.mxu0 %v3839
          %4164 = vmatpush1.bf16.msra.mxu0 %v3838
          %4165 = vmatprep.subr.bf16.mxu0 %v3847
          %4166 = vmatpush1.bf16.msra.mxu0 %v3846
          %4167 = vmatprep.subr.bf16.mxu0 %v3855
          %4168 = vmatpush1.bf16.msra.mxu0 %v3854
          %4169 = vmatprep.subr.bf16.mxu0 %v3863
          %4170 = vmatpush1.bf16.msra.mxu0 %v3862
          %4171 = vmatprep.subr.bf16.mxu0 %v3871
          %4172 = vmatpush1.bf16.msra.mxu0 %v3870
          %4173 = vmatprep.subr.bf16.mxu0 %v3879
          %4174 = vmatpush1.bf16.msra.mxu0 %v3878
          %4175 = vmatprep.subr.bf16.mxu0 %v3887
          %4176 = vmatpush1.bf16.msra.mxu0 %v3886
          %4177 = vmatprep.mubr.bf16.mxu0 %v3205
          %4178 = vmatmul.mubr.bf16.gmra.mrb[0].mxu0 %v3204
          %v4179 = vpop.f32.mrb[0].mxu0
          %v4180 = vadd.f32 %v3363, %v4179
          %v4181 = vpop.f32.mrb[0].mxu0
          %v4182 = vadd.f32 %v3367, %v4181
          %v4183 = vpop.f32.mrb[0].mxu0
          %v4184 = vadd.f32 %v3363, %v4183
          %v4185 = vpop.f32.mrb[0].mxu0
          %v4186 = vadd.f32 %v3367, %v4185
          %4187 = vdwg.mxu0
          %v4188 = vmax.f32 %v4051, 0.0
          %v4189 = vmax.f32 %v4053, 0.0
          %v4190 = vmax.f32 %v4094, 0.0
          %v4191 = vmax.f32 %v4096, 0.0
          %v4192 = vmax.f32 %v4137, 0.0
          %v4193 = vmax.f32 %v4139, 0.0
          %v4194 = vmax.f32 %v4180, 0.0
          %v4195 = vmax.f32 %v4182, 0.0
          %v4196 = vmax.f32 %v4055, 0.0
          %v4197 = vmax.f32 %v4057, 0.0
          %v4198 = vmax.f32 %v4098, 0.0
          %v4199 = vmax.f32 %v4100, 0.0
          %v4200 = vmax.f32 %v4141, 0.0
          %v4201 = vmax.f32 %v4143, 0.0
          %v4202 = vmax.f32 %v4184, 0.0
          %v4203 = vmax.f32 %v4186, 0.0
          %v4204 = vpack.c.bf16 %v4196, %v4188
          %v4205 = vpack.c.bf16 %v4197, %v4189
          %v4206 = vpack.c.bf16 %v4198, %v4190
          %v4207 = vpack.c.bf16 %v4199, %v4191
          %v4208 = vpack.c.bf16 %v4200, %v4192
          %v4209 = vpack.c.bf16 %v4201, %v4193
          %v4210 = vpack.c.bf16 %v4202, %v4194
          %v4211 = vpack.c.bf16 %v4203, %v4195
          %v4212 = vld [vmem:[#allocation10] sm:$0xff]
          %v4213 = vld [vmem:[#allocation10 + $0x8] sm:$0xff]
          %v4214 = vld [vmem:[#allocation10 + $0x10] sm:$0xff]
          %v4215 = vld [vmem:[#allocation10 + $0x18] sm:$0xff]
          %v4216 = vld [vmem:[#allocation10 + $0x20] sm:$0xff]
          %v4217 = vld [vmem:[#allocation10 + $0x28] sm:$0xff]
          %v4218 = vld [vmem:[#allocation10 + $0x30] sm:$0xff]
          %v4219 = vld [vmem:[#allocation10 + $0x38] sm:$0xff]
          %v4220 = vld [vmem:[#allocation10 + $0x40] sm:$0xff]
          %v4221 = vld [vmem:[#allocation10 + $0x48] sm:$0xff]
          %v4222 = vld [vmem:[#allocation10 + $0x50] sm:$0xff]
          %v4223 = vld [vmem:[#allocation10 + $0x58] sm:$0xff]
          %v4224 = vld [vmem:[#allocation10 + $0x60] sm:$0xff]
          %v4225 = vld [vmem:[#allocation10 + $0x68] sm:$0xff]
          %v4226 = vld [vmem:[#allocation10 + $0x70] sm:$0xff]
          %v4227 = vld [vmem:[#allocation10 + $0x78] sm:$0xff]
          %v4228 = vld [vmem:[#allocation10 + $0x80] sm:$0xff]
          %v4229 = vld [vmem:[#allocation10 + $0x88] sm:$0xff]
          %v4230 = vld [vmem:[#allocation10 + $0x90] sm:$0xff]
          %v4231 = vld [vmem:[#allocation10 + $0x98] sm:$0xff]
          %v4232 = vld [vmem:[#allocation10 + $0xa0] sm:$0xff]
          %v4233 = vld [vmem:[#allocation10 + $0xa8] sm:$0xff]
          %v4234 = vld [vmem:[#allocation10 + $0xb0] sm:$0xff]
          %v4235 = vld [vmem:[#allocation10 + $0xb8] sm:$0xff]
          %v4236 = vld [vmem:[#allocation10 + $0xc0] sm:$0xff]
          %v4237 = vld [vmem:[#allocation10 + $0xc8] sm:$0xff]
          %v4238 = vld [vmem:[#allocation10 + $0xd0] sm:$0xff]
          %v4239 = vld [vmem:[#allocation10 + $0xd8] sm:$0xff]
          %v4240 = vld [vmem:[#allocation10 + $0xe0] sm:$0xff]
          %v4241 = vld [vmem:[#allocation10 + $0xe8] sm:$0xff]
          %v4242 = vld [vmem:[#allocation10 + $0xf0] sm:$0xff]
          %v4243 = vld [vmem:[#allocation10 + $0xf8] sm:$0xff]
          %v4244 = vld [vmem:[#allocation10 + $0x100] sm:$0xff]
          %v4245 = vld [vmem:[#allocation10 + $0x108] sm:$0xff]
          %v4246 = vld [vmem:[#allocation10 + $0x110] sm:$0xff]
          %v4247 = vld [vmem:[#allocation10 + $0x118] sm:$0xff]
          %v4248 = vld [vmem:[#allocation10 + $0x120] sm:$0xff]
          %v4249 = vld [vmem:[#allocation10 + $0x128] sm:$0xff]
          %v4250 = vld [vmem:[#allocation10 + $0x130] sm:$0xff]
          %v4251 = vld [vmem:[#allocation10 + $0x138] sm:$0xff]
          %v4252 = vld [vmem:[#allocation10 + $0x140] sm:$0xff]
          %v4253 = vld [vmem:[#allocation10 + $0x148] sm:$0xff]
          %v4254 = vld [vmem:[#allocation10 + $0x150] sm:$0xff]
          %v4255 = vld [vmem:[#allocation10 + $0x158] sm:$0xff]
          %v4256 = vld [vmem:[#allocation10 + $0x160] sm:$0xff]
          %v4257 = vld [vmem:[#allocation10 + $0x168] sm:$0xff]
          %v4258 = vld [vmem:[#allocation10 + $0x170] sm:$0xff]
          %v4259 = vld [vmem:[#allocation10 + $0x178] sm:$0xff]
          %v4260 = vld [vmem:[#allocation10 + $0x180] sm:$0xff]
          %v4261 = vld [vmem:[#allocation10 + $0x188] sm:$0xff]
          %v4262 = vld [vmem:[#allocation10 + $0x190] sm:$0xff]
          %v4263 = vld [vmem:[#allocation10 + $0x198] sm:$0xff]
          %v4264 = vld [vmem:[#allocation10 + $0x1a0] sm:$0xff]
          %v4265 = vld [vmem:[#allocation10 + $0x1a8] sm:$0xff]
          %v4266 = vld [vmem:[#allocation10 + $0x1b0] sm:$0xff]
          %v4267 = vld [vmem:[#allocation10 + $0x1b8] sm:$0xff]
          %v4268 = vld [vmem:[#allocation10 + $0x1c0] sm:$0xff]
          %v4269 = vld [vmem:[#allocation10 + $0x1c8] sm:$0xff]
          %v4270 = vld [vmem:[#allocation10 + $0x1d0] sm:$0xff]
          %v4271 = vld [vmem:[#allocation10 + $0x1d8] sm:$0xff]
          %v4272 = vld [vmem:[#allocation10 + $0x1e0] sm:$0xff]
          %v4273 = vld [vmem:[#allocation10 + $0x1e8] sm:$0xff]
          %v4274 = vld [vmem:[#allocation10 + $0x1f0] sm:$0xff]
          %v4275 = vld [vmem:[#allocation10 + $0x1f8] sm:$0xff]
          %v4276 = vld [vmem:[#allocation10 + $0x200] sm:$0xff]
          %v4277 = vld [vmem:[#allocation10 + $0x208] sm:$0xff]
          %v4278 = vld [vmem:[#allocation10 + $0x210] sm:$0xff]
          %v4279 = vld [vmem:[#allocation10 + $0x218] sm:$0xff]
          %v4280 = vld [vmem:[#allocation10 + $0x220] sm:$0xff]
          %v4281 = vld [vmem:[#allocation10 + $0x228] sm:$0xff]
          %v4282 = vld [vmem:[#allocation10 + $0x230] sm:$0xff]
          %v4283 = vld [vmem:[#allocation10 + $0x238] sm:$0xff]
          %v4284 = vld [vmem:[#allocation10 + $0x240] sm:$0xff]
          %v4285 = vld [vmem:[#allocation10 + $0x248] sm:$0xff]
          %v4286 = vld [vmem:[#allocation10 + $0x250] sm:$0xff]
          %v4287 = vld [vmem:[#allocation10 + $0x258] sm:$0xff]
          %v4288 = vld [vmem:[#allocation10 + $0x260] sm:$0xff]
          %v4289 = vld [vmem:[#allocation10 + $0x268] sm:$0xff]
          %v4290 = vld [vmem:[#allocation10 + $0x270] sm:$0xff]
          %v4291 = vld [vmem:[#allocation10 + $0x278] sm:$0xff]
          %v4292 = vld [vmem:[#allocation10 + $0x280] sm:$0xff]
          %v4293 = vld [vmem:[#allocation10 + $0x288] sm:$0xff]
          %v4294 = vld [vmem:[#allocation10 + $0x290] sm:$0xff]
          %v4295 = vld [vmem:[#allocation10 + $0x298] sm:$0xff]
          %v4296 = vld [vmem:[#allocation10 + $0x2a0] sm:$0xff]
          %v4297 = vld [vmem:[#allocation10 + $0x2a8] sm:$0xff]
          %v4298 = vld [vmem:[#allocation10 + $0x2b0] sm:$0xff]
          %v4299 = vld [vmem:[#allocation10 + $0x2b8] sm:$0xff]
          %v4300 = vld [vmem:[#allocation10 + $0x2c0] sm:$0xff]
          %v4301 = vld [vmem:[#allocation10 + $0x2c8] sm:$0xff]
          %v4302 = vld [vmem:[#allocation10 + $0x2d0] sm:$0xff]
          %v4303 = vld [vmem:[#allocation10 + $0x2d8] sm:$0xff]
          %v4304 = vld [vmem:[#allocation10 + $0x2e0] sm:$0xff]
          %v4305 = vld [vmem:[#allocation10 + $0x2e8] sm:$0xff]
          %v4306 = vld [vmem:[#allocation10 + $0x2f0] sm:$0xff]
          %v4307 = vld [vmem:[#allocation10 + $0x2f8] sm:$0xff]
          %v4308 = vld [vmem:[#allocation10 + $0x300] sm:$0xff]
          %v4309 = vld [vmem:[#allocation10 + $0x308] sm:$0xff]
          %v4310 = vld [vmem:[#allocation10 + $0x310] sm:$0xff]
          %v4311 = vld [vmem:[#allocation10 + $0x318] sm:$0xff]
          %v4312 = vld [vmem:[#allocation10 + $0x320] sm:$0xff]
          %v4313 = vld [vmem:[#allocation10 + $0x328] sm:$0xff]
          %v4314 = vld [vmem:[#allocation10 + $0x330] sm:$0xff]
          %v4315 = vld [vmem:[#allocation10 + $0x338] sm:$0xff]
          %v4316 = vld [vmem:[#allocation10 + $0x340] sm:$0xff]
          %v4317 = vld [vmem:[#allocation10 + $0x348] sm:$0xff]
          %v4318 = vld [vmem:[#allocation10 + $0x350] sm:$0xff]
          %v4319 = vld [vmem:[#allocation10 + $0x358] sm:$0xff]
          %v4320 = vld [vmem:[#allocation10 + $0x360] sm:$0xff]
          %v4321 = vld [vmem:[#allocation10 + $0x368] sm:$0xff]
          %v4322 = vld [vmem:[#allocation10 + $0x370] sm:$0xff]
          %v4323 = vld [vmem:[#allocation10 + $0x378] sm:$0xff]
          %v4324 = vld [vmem:[#allocation10 + $0x380] sm:$0xff]
          %v4325 = vld [vmem:[#allocation10 + $0x388] sm:$0xff]
          %v4326 = vld [vmem:[#allocation10 + $0x390] sm:$0xff]
          %v4327 = vld [vmem:[#allocation10 + $0x398] sm:$0xff]
          %v4328 = vld [vmem:[#allocation10 + $0x3a0] sm:$0xff]
          %v4329 = vld [vmem:[#allocation10 + $0x3a8] sm:$0xff]
          %v4330 = vld [vmem:[#allocation10 + $0x3b0] sm:$0xff]
          %v4331 = vld [vmem:[#allocation10 + $0x3b8] sm:$0xff]
          %v4332 = vld [vmem:[#allocation10 + $0x3c0] sm:$0xff]
          %v4333 = vld [vmem:[#allocation10 + $0x3c8] sm:$0xff]
          %v4334 = vld [vmem:[#allocation10 + $0x3d0] sm:$0xff]
          %v4335 = vld [vmem:[#allocation10 + $0x3d8] sm:$0xff]
          %v4336 = vld [vmem:[#allocation10 + $0x3e0] sm:$0xff]
          %v4337 = vld [vmem:[#allocation10 + $0x3e8] sm:$0xff]
          %v4338 = vld [vmem:[#allocation10 + $0x3f0] sm:$0xff]
          %v4339 = vld [vmem:[#allocation10 + $0x3f8] sm:$0xff]
          %v4340 = vld [vmem:[#allocation10 + $0x400] sm:$0xff]
          %v4341 = vld [vmem:[#allocation10 + $0x408] sm:$0xff]
          %v4342 = vld [vmem:[#allocation10 + $0x410] sm:$0xff]
          %v4343 = vld [vmem:[#allocation10 + $0x418] sm:$0xff]
          %v4344 = vld [vmem:[#allocation10 + $0x420] sm:$0xff]
          %v4345 = vld [vmem:[#allocation10 + $0x428] sm:$0xff]
          %v4346 = vld [vmem:[#allocation10 + $0x430] sm:$0xff]
          %v4347 = vld [vmem:[#allocation10 + $0x438] sm:$0xff]
          %v4348 = vld [vmem:[#allocation10 + $0x440] sm:$0xff]
          %v4349 = vld [vmem:[#allocation10 + $0x448] sm:$0xff]
          %v4350 = vld [vmem:[#allocation10 + $0x450] sm:$0xff]
          %v4351 = vld [vmem:[#allocation10 + $0x458] sm:$0xff]
          %v4352 = vld [vmem:[#allocation10 + $0x460] sm:$0xff]
          %v4353 = vld [vmem:[#allocation10 + $0x468] sm:$0xff]
          %v4354 = vld [vmem:[#allocation10 + $0x470] sm:$0xff]
          %v4355 = vld [vmem:[#allocation10 + $0x478] sm:$0xff]
          %v4356 = vld [vmem:[#allocation10 + $0x480] sm:$0xff]
          %v4357 = vld [vmem:[#allocation10 + $0x488] sm:$0xff]
          %v4358 = vld [vmem:[#allocation10 + $0x490] sm:$0xff]
          %v4359 = vld [vmem:[#allocation10 + $0x498] sm:$0xff]
          %v4360 = vld [vmem:[#allocation10 + $0x4a0] sm:$0xff]
          %v4361 = vld [vmem:[#allocation10 + $0x4a8] sm:$0xff]
          %v4362 = vld [vmem:[#allocation10 + $0x4b0] sm:$0xff]
          %v4363 = vld [vmem:[#allocation10 + $0x4b8] sm:$0xff]
          %v4364 = vld [vmem:[#allocation10 + $0x4c0] sm:$0xff]
          %v4365 = vld [vmem:[#allocation10 + $0x4c8] sm:$0xff]
          %v4366 = vld [vmem:[#allocation10 + $0x4d0] sm:$0xff]
          %v4367 = vld [vmem:[#allocation10 + $0x4d8] sm:$0xff]
          %v4368 = vld [vmem:[#allocation10 + $0x4e0] sm:$0xff]
          %v4369 = vld [vmem:[#allocation10 + $0x4e8] sm:$0xff]
          %v4370 = vld [vmem:[#allocation10 + $0x4f0] sm:$0xff]
          %v4371 = vld [vmem:[#allocation10 + $0x4f8] sm:$0xff]
          %v4372 = vld [vmem:[#allocation10 + $0x500] sm:$0xff]
          %v4373 = vld [vmem:[#allocation10 + $0x508] sm:$0xff]
          %v4374 = vld [vmem:[#allocation10 + $0x510] sm:$0xff]
          %v4375 = vld [vmem:[#allocation10 + $0x518] sm:$0xff]
          %v4376 = vld [vmem:[#allocation10 + $0x520] sm:$0xff]
          %v4377 = vld [vmem:[#allocation10 + $0x528] sm:$0xff]
          %v4378 = vld [vmem:[#allocation10 + $0x530] sm:$0xff]
          %v4379 = vld [vmem:[#allocation10 + $0x538] sm:$0xff]
          %v4380 = vld [vmem:[#allocation10 + $0x540] sm:$0xff]
          %v4381 = vld [vmem:[#allocation10 + $0x548] sm:$0xff]
          %v4382 = vld [vmem:[#allocation10 + $0x550] sm:$0xff]
          %v4383 = vld [vmem:[#allocation10 + $0x558] sm:$0xff]
          %v4384 = vld [vmem:[#allocation10 + $0x560] sm:$0xff]
          %v4385 = vld [vmem:[#allocation10 + $0x568] sm:$0xff]
          %v4386 = vld [vmem:[#allocation10 + $0x570] sm:$0xff]
          %v4387 = vld [vmem:[#allocation10 + $0x578] sm:$0xff]
          %v4388 = vld [vmem:[#allocation10 + $0x580] sm:$0xff]
          %v4389 = vld [vmem:[#allocation10 + $0x588] sm:$0xff]
          %v4390 = vld [vmem:[#allocation10 + $0x590] sm:$0xff]
          %v4391 = vld [vmem:[#allocation10 + $0x598] sm:$0xff]
          %v4392 = vld [vmem:[#allocation10 + $0x5a0] sm:$0xff]
          %v4393 = vld [vmem:[#allocation10 + $0x5a8] sm:$0xff]
          %v4394 = vld [vmem:[#allocation10 + $0x5b0] sm:$0xff]
          %v4395 = vld [vmem:[#allocation10 + $0x5b8] sm:$0xff]
          %v4396 = vld [vmem:[#allocation10 + $0x5c0] sm:$0xff]
          %v4397 = vld [vmem:[#allocation10 + $0x5c8] sm:$0xff]
          %v4398 = vld [vmem:[#allocation10 + $0x5d0] sm:$0xff]
          %v4399 = vld [vmem:[#allocation10 + $0x5d8] sm:$0xff]
          %v4400 = vld [vmem:[#allocation10 + $0x5e0] sm:$0xff]
          %v4401 = vld [vmem:[#allocation10 + $0x5e8] sm:$0xff]
          %v4402 = vld [vmem:[#allocation10 + $0x5f0] sm:$0xff]
          %v4403 = vld [vmem:[#allocation10 + $0x5f8] sm:$0xff]
          %v4404 = vld [vmem:[#allocation10 + $0x600] sm:$0xff]
          %v4405 = vld [vmem:[#allocation10 + $0x608] sm:$0xff]
          %v4406 = vld [vmem:[#allocation10 + $0x610] sm:$0xff]
          %v4407 = vld [vmem:[#allocation10 + $0x618] sm:$0xff]
          %v4408 = vld [vmem:[#allocation10 + $0x620] sm:$0xff]
          %v4409 = vld [vmem:[#allocation10 + $0x628] sm:$0xff]
          %v4410 = vld [vmem:[#allocation10 + $0x630] sm:$0xff]
          %v4411 = vld [vmem:[#allocation10 + $0x638] sm:$0xff]
          %v4412 = vld [vmem:[#allocation10 + $0x640] sm:$0xff]
          %v4413 = vld [vmem:[#allocation10 + $0x648] sm:$0xff]
          %v4414 = vld [vmem:[#allocation10 + $0x650] sm:$0xff]
          %v4415 = vld [vmem:[#allocation10 + $0x658] sm:$0xff]
          %v4416 = vld [vmem:[#allocation10 + $0x660] sm:$0xff]
          %v4417 = vld [vmem:[#allocation10 + $0x668] sm:$0xff]
          %v4418 = vld [vmem:[#allocation10 + $0x670] sm:$0xff]
          %v4419 = vld [vmem:[#allocation10 + $0x678] sm:$0xff]
          %v4420 = vld [vmem:[#allocation10 + $0x680] sm:$0xff]
          %v4421 = vld [vmem:[#allocation10 + $0x688] sm:$0xff]
          %v4422 = vld [vmem:[#allocation10 + $0x690] sm:$0xff]
          %v4423 = vld [vmem:[#allocation10 + $0x698] sm:$0xff]
          %v4424 = vld [vmem:[#allocation10 + $0x6a0] sm:$0xff]
          %v4425 = vld [vmem:[#allocation10 + $0x6a8] sm:$0xff]
          %v4426 = vld [vmem:[#allocation10 + $0x6b0] sm:$0xff]
          %v4427 = vld [vmem:[#allocation10 + $0x6b8] sm:$0xff]
          %v4428 = vld [vmem:[#allocation10 + $0x6c0] sm:$0xff]
          %v4429 = vld [vmem:[#allocation10 + $0x6c8] sm:$0xff]
          %v4430 = vld [vmem:[#allocation10 + $0x6d0] sm:$0xff]
          %v4431 = vld [vmem:[#allocation10 + $0x6d8] sm:$0xff]
          %v4432 = vld [vmem:[#allocation10 + $0x6e0] sm:$0xff]
          %v4433 = vld [vmem:[#allocation10 + $0x6e8] sm:$0xff]
          %v4434 = vld [vmem:[#allocation10 + $0x6f0] sm:$0xff]
          %v4435 = vld [vmem:[#allocation10 + $0x6f8] sm:$0xff]
          %v4436 = vld [vmem:[#allocation10 + $0x700] sm:$0xff]
          %v4437 = vld [vmem:[#allocation10 + $0x708] sm:$0xff]
          %v4438 = vld [vmem:[#allocation10 + $0x710] sm:$0xff]
          %v4439 = vld [vmem:[#allocation10 + $0x718] sm:$0xff]
          %v4440 = vld [vmem:[#allocation10 + $0x720] sm:$0xff]
          %v4441 = vld [vmem:[#allocation10 + $0x728] sm:$0xff]
          %v4442 = vld [vmem:[#allocation10 + $0x730] sm:$0xff]
          %v4443 = vld [vmem:[#allocation10 + $0x738] sm:$0xff]
          %v4444 = vld [vmem:[#allocation10 + $0x740] sm:$0xff]
          %v4445 = vld [vmem:[#allocation10 + $0x748] sm:$0xff]
          %v4446 = vld [vmem:[#allocation10 + $0x750] sm:$0xff]
          %v4447 = vld [vmem:[#allocation10 + $0x758] sm:$0xff]
          %v4448 = vld [vmem:[#allocation10 + $0x760] sm:$0xff]
          %v4449 = vld [vmem:[#allocation10 + $0x768] sm:$0xff]
          %v4450 = vld [vmem:[#allocation10 + $0x770] sm:$0xff]
          %v4451 = vld [vmem:[#allocation10 + $0x778] sm:$0xff]
          %v4452 = vld [vmem:[#allocation10 + $0x780] sm:$0xff]
          %v4453 = vld [vmem:[#allocation10 + $0x788] sm:$0xff]
          %v4454 = vld [vmem:[#allocation10 + $0x790] sm:$0xff]
          %v4455 = vld [vmem:[#allocation10 + $0x798] sm:$0xff]
          %v4456 = vld [vmem:[#allocation10 + $0x7a0] sm:$0xff]
          %v4457 = vld [vmem:[#allocation10 + $0x7a8] sm:$0xff]
          %v4458 = vld [vmem:[#allocation10 + $0x7b0] sm:$0xff]
          %v4459 = vld [vmem:[#allocation10 + $0x7b8] sm:$0xff]
          %v4460 = vld [vmem:[#allocation10 + $0x7c0] sm:$0xff]
          %v4461 = vld [vmem:[#allocation10 + $0x7c8] sm:$0xff]
          %v4462 = vld [vmem:[#allocation10 + $0x7d0] sm:$0xff]
          %v4463 = vld [vmem:[#allocation10 + $0x7d8] sm:$0xff]
          %v4464 = vld [vmem:[#allocation10 + $0x7e0] sm:$0xff]
          %v4465 = vld [vmem:[#allocation10 + $0x7e8] sm:$0xff]
          %v4466 = vld [vmem:[#allocation10 + $0x7f0] sm:$0xff]
          %v4467 = vld [vmem:[#allocation10 + $0x7f8] sm:$0xff]
          %v4468 = vld [vmem:[%s7] sm:$0xf]
          %v4470 = vlaneseq
          %v4471 = vshrl.u32 %v4470, 7
          %v4472 = vsub.s32 0, %v4471
          %v4473 = vrot.slane %v4468, %v4472
          %v4474 = vlaneseq
          %v4475 = vshrl.u32 %v4474, 7
          %v4476 = vsub.s32 1, %v4475
          %v4477 = vrot.slane %v4468, %v4476
          %v4478 = vlaneseq
          %v4479 = vshrl.u32 %v4478, 7
          %v4480 = vsub.s32 2, %v4479
          %v4481 = vrot.slane %v4468, %v4480
          %v4482 = vlaneseq
          %v4483 = vshrl.u32 %v4482, 7
          %v4484 = vsub.s32 3, %v4483
          %v4485 = vrot.slane %v4468, %v4484
          %v4746 = vunpack.c.l.b16 %v4212
          %v4747 = vunpack.c.h.b16 %v4212
          %v4748 = vunpack.c.l.b16 %v4213
          %v4749 = vunpack.c.h.b16 %v4213
          %v4750 = vunpack.c.l.b16 %v4214
          %v4751 = vunpack.c.h.b16 %v4214
          %v4752 = vunpack.c.l.b16 %v4215
          %v4753 = vunpack.c.h.b16 %v4215
          %v4754 = vunpack.c.l.b16 %v4216
          %v4755 = vunpack.c.h.b16 %v4216
          %v4756 = vunpack.c.l.b16 %v4217
          %v4757 = vunpack.c.h.b16 %v4217
          %v4758 = vunpack.c.l.b16 %v4218
          %v4759 = vunpack.c.h.b16 %v4218
          %v4760 = vunpack.c.l.b16 %v4219
          %v4761 = vunpack.c.h.b16 %v4219
          %v4762 = vunpack.c.l.b16 %v4220
          %v4763 = vunpack.c.h.b16 %v4220
          %v4764 = vunpack.c.l.b16 %v4221
          %v4765 = vunpack.c.h.b16 %v4221
          %v4766 = vunpack.c.l.b16 %v4222
          %v4767 = vunpack.c.h.b16 %v4222
          %v4768 = vunpack.c.l.b16 %v4223
          %v4769 = vunpack.c.h.b16 %v4223
          %v4770 = vunpack.c.l.b16 %v4224
          %v4771 = vunpack.c.h.b16 %v4224
          %v4772 = vunpack.c.l.b16 %v4225
          %v4773 = vunpack.c.h.b16 %v4225
          %v4774 = vunpack.c.l.b16 %v4226
          %v4775 = vunpack.c.h.b16 %v4226
          %v4776 = vunpack.c.l.b16 %v4227
          %v4777 = vunpack.c.h.b16 %v4227
          %v4778 = vunpack.c.l.b16 %v4228
          %v4779 = vunpack.c.h.b16 %v4228
          %v4780 = vunpack.c.l.b16 %v4229
          %v4781 = vunpack.c.h.b16 %v4229
          %v4782 = vunpack.c.l.b16 %v4230
          %v4783 = vunpack.c.h.b16 %v4230
          %v4784 = vunpack.c.l.b16 %v4231
          %v4785 = vunpack.c.h.b16 %v4231
          %v4786 = vunpack.c.l.b16 %v4232
          %v4787 = vunpack.c.h.b16 %v4232
          %v4788 = vunpack.c.l.b16 %v4233
          %v4789 = vunpack.c.h.b16 %v4233
          %v4790 = vunpack.c.l.b16 %v4234
          %v4791 = vunpack.c.h.b16 %v4234
          %v4792 = vunpack.c.l.b16 %v4235
          %v4793 = vunpack.c.h.b16 %v4235
          %v4794 = vunpack.c.l.b16 %v4236
          %v4795 = vunpack.c.h.b16 %v4236
          %v4796 = vunpack.c.l.b16 %v4237
          %v4797 = vunpack.c.h.b16 %v4237
          %v4798 = vunpack.c.l.b16 %v4238
          %v4799 = vunpack.c.h.b16 %v4238
          %v4800 = vunpack.c.l.b16 %v4239
          %v4801 = vunpack.c.h.b16 %v4239
          %v4802 = vunpack.c.l.b16 %v4240
          %v4803 = vunpack.c.h.b16 %v4240
          %v4804 = vunpack.c.l.b16 %v4241
          %v4805 = vunpack.c.h.b16 %v4241
          %v4806 = vunpack.c.l.b16 %v4242
          %v4807 = vunpack.c.h.b16 %v4242
          %v4808 = vunpack.c.l.b16 %v4243
          %v4809 = vunpack.c.h.b16 %v4243
          %v4810 = vunpack.c.l.b16 %v4244
          %v4811 = vunpack.c.h.b16 %v4244
          %v4812 = vunpack.c.l.b16 %v4245
          %v4813 = vunpack.c.h.b16 %v4245
          %v4814 = vunpack.c.l.b16 %v4246
          %v4815 = vunpack.c.h.b16 %v4246
          %v4816 = vunpack.c.l.b16 %v4247
          %v4817 = vunpack.c.h.b16 %v4247
          %v4818 = vunpack.c.l.b16 %v4248
          %v4819 = vunpack.c.h.b16 %v4248
          %v4820 = vunpack.c.l.b16 %v4249
          %v4821 = vunpack.c.h.b16 %v4249
          %v4822 = vunpack.c.l.b16 %v4250
          %v4823 = vunpack.c.h.b16 %v4250
          %v4824 = vunpack.c.l.b16 %v4251
          %v4825 = vunpack.c.h.b16 %v4251
          %v4826 = vunpack.c.l.b16 %v4252
          %v4827 = vunpack.c.h.b16 %v4252
          %v4828 = vunpack.c.l.b16 %v4253
          %v4829 = vunpack.c.h.b16 %v4253
          %v4830 = vunpack.c.l.b16 %v4254
          %v4831 = vunpack.c.h.b16 %v4254
          %v4832 = vunpack.c.l.b16 %v4255
          %v4833 = vunpack.c.h.b16 %v4255
          %v4834 = vunpack.c.l.b16 %v4256
          %v4835 = vunpack.c.h.b16 %v4256
          %v4836 = vunpack.c.l.b16 %v4257
          %v4837 = vunpack.c.h.b16 %v4257
          %v4838 = vunpack.c.l.b16 %v4258
          %v4839 = vunpack.c.h.b16 %v4258
          %v4840 = vunpack.c.l.b16 %v4259
          %v4841 = vunpack.c.h.b16 %v4259
          %v4842 = vunpack.c.l.b16 %v4260
          %v4843 = vunpack.c.h.b16 %v4260
          %v4844 = vunpack.c.l.b16 %v4261
          %v4845 = vunpack.c.h.b16 %v4261
          %v4846 = vunpack.c.l.b16 %v4262
          %v4847 = vunpack.c.h.b16 %v4262
          %v4848 = vunpack.c.l.b16 %v4263
          %v4849 = vunpack.c.h.b16 %v4263
          %v4850 = vunpack.c.l.b16 %v4264
          %v4851 = vunpack.c.h.b16 %v4264
          %v4852 = vunpack.c.l.b16 %v4265
          %v4853 = vunpack.c.h.b16 %v4265
          %v4854 = vunpack.c.l.b16 %v4266
          %v4855 = vunpack.c.h.b16 %v4266
          %v4856 = vunpack.c.l.b16 %v4267
          %v4857 = vunpack.c.h.b16 %v4267
          %v4858 = vunpack.c.l.b16 %v4268
          %v4859 = vunpack.c.h.b16 %v4268
          %v4860 = vunpack.c.l.b16 %v4269
          %v4861 = vunpack.c.h.b16 %v4269
          %v4862 = vunpack.c.l.b16 %v4270
          %v4863 = vunpack.c.h.b16 %v4270
          %v4864 = vunpack.c.l.b16 %v4271
          %v4865 = vunpack.c.h.b16 %v4271
          %v4866 = vunpack.c.l.b16 %v4272
          %v4867 = vunpack.c.h.b16 %v4272
          %v4868 = vunpack.c.l.b16 %v4273
          %v4869 = vunpack.c.h.b16 %v4273
          %v4870 = vunpack.c.l.b16 %v4274
          %v4871 = vunpack.c.h.b16 %v4274
          %v4872 = vunpack.c.l.b16 %v4275
          %v4873 = vunpack.c.h.b16 %v4275
          %v4874 = vunpack.c.l.b16 %v4276
          %v4875 = vunpack.c.h.b16 %v4276
          %v4876 = vunpack.c.l.b16 %v4277
          %v4877 = vunpack.c.h.b16 %v4277
          %v4878 = vunpack.c.l.b16 %v4278
          %v4879 = vunpack.c.h.b16 %v4278
          %v4880 = vunpack.c.l.b16 %v4279
          %v4881 = vunpack.c.h.b16 %v4279
          %v4882 = vunpack.c.l.b16 %v4280
          %v4883 = vunpack.c.h.b16 %v4280
          %v4884 = vunpack.c.l.b16 %v4281
          %v4885 = vunpack.c.h.b16 %v4281
          %v4886 = vunpack.c.l.b16 %v4282
          %v4887 = vunpack.c.h.b16 %v4282
          %v4888 = vunpack.c.l.b16 %v4283
          %v4889 = vunpack.c.h.b16 %v4283
          %v4890 = vunpack.c.l.b16 %v4284
          %v4891 = vunpack.c.h.b16 %v4284
          %v4892 = vunpack.c.l.b16 %v4285
          %v4893 = vunpack.c.h.b16 %v4285
          %v4894 = vunpack.c.l.b16 %v4286
          %v4895 = vunpack.c.h.b16 %v4286
          %v4896 = vunpack.c.l.b16 %v4287
          %v4897 = vunpack.c.h.b16 %v4287
          %v4898 = vunpack.c.l.b16 %v4288
          %v4899 = vunpack.c.h.b16 %v4288
          %v4900 = vunpack.c.l.b16 %v4289
          %v4901 = vunpack.c.h.b16 %v4289
          %v4902 = vunpack.c.l.b16 %v4290
          %v4903 = vunpack.c.h.b16 %v4290
          %v4904 = vunpack.c.l.b16 %v4291
          %v4905 = vunpack.c.h.b16 %v4291
          %v4906 = vunpack.c.l.b16 %v4292
          %v4907 = vunpack.c.h.b16 %v4292
          %v4908 = vunpack.c.l.b16 %v4293
          %v4909 = vunpack.c.h.b16 %v4293
          %v4910 = vunpack.c.l.b16 %v4294
          %v4911 = vunpack.c.h.b16 %v4294
          %v4912 = vunpack.c.l.b16 %v4295
          %v4913 = vunpack.c.h.b16 %v4295
          %v4914 = vunpack.c.l.b16 %v4296
          %v4915 = vunpack.c.h.b16 %v4296
          %v4916 = vunpack.c.l.b16 %v4297
          %v4917 = vunpack.c.h.b16 %v4297
          %v4918 = vunpack.c.l.b16 %v4298
          %v4919 = vunpack.c.h.b16 %v4298
          %v4920 = vunpack.c.l.b16 %v4299
          %v4921 = vunpack.c.h.b16 %v4299
          %v4922 = vunpack.c.l.b16 %v4300
          %v4923 = vunpack.c.h.b16 %v4300
          %v4924 = vunpack.c.l.b16 %v4301
          %v4925 = vunpack.c.h.b16 %v4301
          %v4926 = vunpack.c.l.b16 %v4302
          %v4927 = vunpack.c.h.b16 %v4302
          %v4928 = vunpack.c.l.b16 %v4303
          %v4929 = vunpack.c.h.b16 %v4303
          %v4930 = vunpack.c.l.b16 %v4304
          %v4931 = vunpack.c.h.b16 %v4304
          %v4932 = vunpack.c.l.b16 %v4305
          %v4933 = vunpack.c.h.b16 %v4305
          %v4934 = vunpack.c.l.b16 %v4306
          %v4935 = vunpack.c.h.b16 %v4306
          %v4936 = vunpack.c.l.b16 %v4307
          %v4937 = vunpack.c.h.b16 %v4307
          %v4938 = vunpack.c.l.b16 %v4308
          %v4939 = vunpack.c.h.b16 %v4308
          %v4940 = vunpack.c.l.b16 %v4309
          %v4941 = vunpack.c.h.b16 %v4309
          %v4942 = vunpack.c.l.b16 %v4310
          %v4943 = vunpack.c.h.b16 %v4310
          %v4944 = vunpack.c.l.b16 %v4311
          %v4945 = vunpack.c.h.b16 %v4311
          %v4946 = vunpack.c.l.b16 %v4312
          %v4947 = vunpack.c.h.b16 %v4312
          %v4948 = vunpack.c.l.b16 %v4313
          %v4949 = vunpack.c.h.b16 %v4313
          %v4950 = vunpack.c.l.b16 %v4314
          %v4951 = vunpack.c.h.b16 %v4314
          %v4952 = vunpack.c.l.b16 %v4315
          %v4953 = vunpack.c.h.b16 %v4315
          %v4954 = vunpack.c.l.b16 %v4316
          %v4955 = vunpack.c.h.b16 %v4316
          %v4956 = vunpack.c.l.b16 %v4317
          %v4957 = vunpack.c.h.b16 %v4317
          %v4958 = vunpack.c.l.b16 %v4318
          %v4959 = vunpack.c.h.b16 %v4318
          %v4960 = vunpack.c.l.b16 %v4319
          %v4961 = vunpack.c.h.b16 %v4319
          %v4962 = vunpack.c.l.b16 %v4320
          %v4963 = vunpack.c.h.b16 %v4320
          %v4964 = vunpack.c.l.b16 %v4321
          %v4965 = vunpack.c.h.b16 %v4321
          %v4966 = vunpack.c.l.b16 %v4322
          %v4967 = vunpack.c.h.b16 %v4322
          %v4968 = vunpack.c.l.b16 %v4323
          %v4969 = vunpack.c.h.b16 %v4323
          %v4970 = vunpack.c.l.b16 %v4324
          %v4971 = vunpack.c.h.b16 %v4324
          %v4972 = vunpack.c.l.b16 %v4325
          %v4973 = vunpack.c.h.b16 %v4325
          %v4974 = vunpack.c.l.b16 %v4326
          %v4975 = vunpack.c.h.b16 %v4326
          %v4976 = vunpack.c.l.b16 %v4327
          %v4977 = vunpack.c.h.b16 %v4327
          %v4978 = vunpack.c.l.b16 %v4328
          %v4979 = vunpack.c.h.b16 %v4328
          %v4980 = vunpack.c.l.b16 %v4329
          %v4981 = vunpack.c.h.b16 %v4329
          %v4982 = vunpack.c.l.b16 %v4330
          %v4983 = vunpack.c.h.b16 %v4330
          %v4984 = vunpack.c.l.b16 %v4331
          %v4985 = vunpack.c.h.b16 %v4331
          %v4986 = vunpack.c.l.b16 %v4332
          %v4987 = vunpack.c.h.b16 %v4332
          %v4988 = vunpack.c.l.b16 %v4333
          %v4989 = vunpack.c.h.b16 %v4333
          %v4990 = vunpack.c.l.b16 %v4334
          %v4991 = vunpack.c.h.b16 %v4334
          %v4992 = vunpack.c.l.b16 %v4335
          %v4993 = vunpack.c.h.b16 %v4335
          %v4994 = vunpack.c.l.b16 %v4336
          %v4995 = vunpack.c.h.b16 %v4336
          %v4996 = vunpack.c.l.b16 %v4337
          %v4997 = vunpack.c.h.b16 %v4337
          %v4998 = vunpack.c.l.b16 %v4338
          %v4999 = vunpack.c.h.b16 %v4338
          %v5000 = vunpack.c.l.b16 %v4339
          %v5001 = vunpack.c.h.b16 %v4339
          %v5002 = vunpack.c.l.b16 %v4340
          %v5003 = vunpack.c.h.b16 %v4340
          %v5004 = vunpack.c.l.b16 %v4341
          %v5005 = vunpack.c.h.b16 %v4341
          %v5006 = vunpack.c.l.b16 %v4342
          %v5007 = vunpack.c.h.b16 %v4342
          %v5008 = vunpack.c.l.b16 %v4343
          %v5009 = vunpack.c.h.b16 %v4343
          %v5010 = vunpack.c.l.b16 %v4344
          %v5011 = vunpack.c.h.b16 %v4344
          %v5012 = vunpack.c.l.b16 %v4345
          %v5013 = vunpack.c.h.b16 %v4345
          %v5014 = vunpack.c.l.b16 %v4346
          %v5015 = vunpack.c.h.b16 %v4346
          %v5016 = vunpack.c.l.b16 %v4347
          %v5017 = vunpack.c.h.b16 %v4347
          %v5018 = vunpack.c.l.b16 %v4348
          %v5019 = vunpack.c.h.b16 %v4348
          %v5020 = vunpack.c.l.b16 %v4349
          %v5021 = vunpack.c.h.b16 %v4349
          %v5022 = vunpack.c.l.b16 %v4350
          %v5023 = vunpack.c.h.b16 %v4350
          %v5024 = vunpack.c.l.b16 %v4351
          %v5025 = vunpack.c.h.b16 %v4351
          %v5026 = vunpack.c.l.b16 %v4352
          %v5027 = vunpack.c.h.b16 %v4352
          %v5028 = vunpack.c.l.b16 %v4353
          %v5029 = vunpack.c.h.b16 %v4353
          %v5030 = vunpack.c.l.b16 %v4354
          %v5031 = vunpack.c.h.b16 %v4354
          %v5032 = vunpack.c.l.b16 %v4355
          %v5033 = vunpack.c.h.b16 %v4355
          %v5034 = vunpack.c.l.b16 %v4356
          %v5035 = vunpack.c.h.b16 %v4356
          %v5036 = vunpack.c.l.b16 %v4357
          %v5037 = vunpack.c.h.b16 %v4357
          %v5038 = vunpack.c.l.b16 %v4358
          %v5039 = vunpack.c.h.b16 %v4358
          %v5040 = vunpack.c.l.b16 %v4359
          %v5041 = vunpack.c.h.b16 %v4359
          %v5042 = vunpack.c.l.b16 %v4360
          %v5043 = vunpack.c.h.b16 %v4360
          %v5044 = vunpack.c.l.b16 %v4361
          %v5045 = vunpack.c.h.b16 %v4361
          %v5046 = vunpack.c.l.b16 %v4362
          %v5047 = vunpack.c.h.b16 %v4362
          %v5048 = vunpack.c.l.b16 %v4363
          %v5049 = vunpack.c.h.b16 %v4363
          %v5050 = vunpack.c.l.b16 %v4364
          %v5051 = vunpack.c.h.b16 %v4364
          %v5052 = vunpack.c.l.b16 %v4365
          %v5053 = vunpack.c.h.b16 %v4365
          %v5054 = vunpack.c.l.b16 %v4366
          %v5055 = vunpack.c.h.b16 %v4366
          %v5056 = vunpack.c.l.b16 %v4367
          %v5057 = vunpack.c.h.b16 %v4367
          %v5058 = vunpack.c.l.b16 %v4368
          %v5059 = vunpack.c.h.b16 %v4368
          %v5060 = vunpack.c.l.b16 %v4369
          %v5061 = vunpack.c.h.b16 %v4369
          %v5062 = vunpack.c.l.b16 %v4370
          %v5063 = vunpack.c.h.b16 %v4370
          %v5064 = vunpack.c.l.b16 %v4371
          %v5065 = vunpack.c.h.b16 %v4371
          %v5066 = vunpack.c.l.b16 %v4372
          %v5067 = vunpack.c.h.b16 %v4372
          %v5068 = vunpack.c.l.b16 %v4373
          %v5069 = vunpack.c.h.b16 %v4373
          %v5070 = vunpack.c.l.b16 %v4374
          %v5071 = vunpack.c.h.b16 %v4374
          %v5072 = vunpack.c.l.b16 %v4375
          %v5073 = vunpack.c.h.b16 %v4375
          %v5074 = vunpack.c.l.b16 %v4376
          %v5075 = vunpack.c.h.b16 %v4376
          %v5076 = vunpack.c.l.b16 %v4377
          %v5077 = vunpack.c.h.b16 %v4377
          %v5078 = vunpack.c.l.b16 %v4378
          %v5079 = vunpack.c.h.b16 %v4378
          %v5080 = vunpack.c.l.b16 %v4379
          %v5081 = vunpack.c.h.b16 %v4379
          %v5082 = vunpack.c.l.b16 %v4380
          %v5083 = vunpack.c.h.b16 %v4380
          %v5084 = vunpack.c.l.b16 %v4381
          %v5085 = vunpack.c.h.b16 %v4381
          %v5086 = vunpack.c.l.b16 %v4382
          %v5087 = vunpack.c.h.b16 %v4382
          %v5088 = vunpack.c.l.b16 %v4383
          %v5089 = vunpack.c.h.b16 %v4383
          %v5090 = vunpack.c.l.b16 %v4384
          %v5091 = vunpack.c.h.b16 %v4384
          %v5092 = vunpack.c.l.b16 %v4385
          %v5093 = vunpack.c.h.b16 %v4385
          %v5094 = vunpack.c.l.b16 %v4386
          %v5095 = vunpack.c.h.b16 %v4386
          %v5096 = vunpack.c.l.b16 %v4387
          %v5097 = vunpack.c.h.b16 %v4387
          %v5098 = vunpack.c.l.b16 %v4388
          %v5099 = vunpack.c.h.b16 %v4388
          %v5100 = vunpack.c.l.b16 %v4389
          %v5101 = vunpack.c.h.b16 %v4389
          %v5102 = vunpack.c.l.b16 %v4390
          %v5103 = vunpack.c.h.b16 %v4390
          %v5104 = vunpack.c.l.b16 %v4391
          %v5105 = vunpack.c.h.b16 %v4391
          %v5106 = vunpack.c.l.b16 %v4392
          %v5107 = vunpack.c.h.b16 %v4392
          %v5108 = vunpack.c.l.b16 %v4393
          %v5109 = vunpack.c.h.b16 %v4393
          %v5110 = vunpack.c.l.b16 %v4394
          %v5111 = vunpack.c.h.b16 %v4394
          %v5112 = vunpack.c.l.b16 %v4395
          %v5113 = vunpack.c.h.b16 %v4395
          %v5114 = vunpack.c.l.b16 %v4396
          %v5115 = vunpack.c.h.b16 %v4396
          %v5116 = vunpack.c.l.b16 %v4397
          %v5117 = vunpack.c.h.b16 %v4397
          %v5118 = vunpack.c.l.b16 %v4398
          %v5119 = vunpack.c.h.b16 %v4398
          %v5120 = vunpack.c.l.b16 %v4399
          %v5121 = vunpack.c.h.b16 %v4399
          %v5122 = vunpack.c.l.b16 %v4400
          %v5123 = vunpack.c.h.b16 %v4400
          %v5124 = vunpack.c.l.b16 %v4401
          %v5125 = vunpack.c.h.b16 %v4401
          %v5126 = vunpack.c.l.b16 %v4402
          %v5127 = vunpack.c.h.b16 %v4402
          %v5128 = vunpack.c.l.b16 %v4403
          %v5129 = vunpack.c.h.b16 %v4403
          %v5130 = vunpack.c.l.b16 %v4404
          %v5131 = vunpack.c.h.b16 %v4404
          %v5132 = vunpack.c.l.b16 %v4405
          %v5133 = vunpack.c.h.b16 %v4405
          %v5134 = vunpack.c.l.b16 %v4406
          %v5135 = vunpack.c.h.b16 %v4406
          %v5136 = vunpack.c.l.b16 %v4407
          %v5137 = vunpack.c.h.b16 %v4407
          %v5138 = vunpack.c.l.b16 %v4408
          %v5139 = vunpack.c.h.b16 %v4408
          %v5140 = vunpack.c.l.b16 %v4409
          %v5141 = vunpack.c.h.b16 %v4409
          %v5142 = vunpack.c.l.b16 %v4410
          %v5143 = vunpack.c.h.b16 %v4410
          %v5144 = vunpack.c.l.b16 %v4411
          %v5145 = vunpack.c.h.b16 %v4411
          %v5146 = vunpack.c.l.b16 %v4412
          %v5147 = vunpack.c.h.b16 %v4412
          %v5148 = vunpack.c.l.b16 %v4413
          %v5149 = vunpack.c.h.b16 %v4413
          %v5150 = vunpack.c.l.b16 %v4414
          %v5151 = vunpack.c.h.b16 %v4414
          %v5152 = vunpack.c.l.b16 %v4415
          %v5153 = vunpack.c.h.b16 %v4415
          %v5154 = vunpack.c.l.b16 %v4416
          %v5155 = vunpack.c.h.b16 %v4416
          %v5156 = vunpack.c.l.b16 %v4417
          %v5157 = vunpack.c.h.b16 %v4417
          %v5158 = vunpack.c.l.b16 %v4418
          %v5159 = vunpack.c.h.b16 %v4418
          %v5160 = vunpack.c.l.b16 %v4419
          %v5161 = vunpack.c.h.b16 %v4419
          %v5162 = vunpack.c.l.b16 %v4420
          %v5163 = vunpack.c.h.b16 %v4420
          %v5164 = vunpack.c.l.b16 %v4421
          %v5165 = vunpack.c.h.b16 %v4421
          %v5166 = vunpack.c.l.b16 %v4422
          %v5167 = vunpack.c.h.b16 %v4422
          %v5168 = vunpack.c.l.b16 %v4423
          %v5169 = vunpack.c.h.b16 %v4423
          %v5170 = vunpack.c.l.b16 %v4424
          %v5171 = vunpack.c.h.b16 %v4424
          %v5172 = vunpack.c.l.b16 %v4425
          %v5173 = vunpack.c.h.b16 %v4425
          %v5174 = vunpack.c.l.b16 %v4426
          %v5175 = vunpack.c.h.b16 %v4426
          %v5176 = vunpack.c.l.b16 %v4427
          %v5177 = vunpack.c.h.b16 %v4427
          %v5178 = vunpack.c.l.b16 %v4428
          %v5179 = vunpack.c.h.b16 %v4428
          %v5180 = vunpack.c.l.b16 %v4429
          %v5181 = vunpack.c.h.b16 %v4429
          %v5182 = vunpack.c.l.b16 %v4430
          %v5183 = vunpack.c.h.b16 %v4430
          %v5184 = vunpack.c.l.b16 %v4431
          %v5185 = vunpack.c.h.b16 %v4431
          %v5186 = vunpack.c.l.b16 %v4432
          %v5187 = vunpack.c.h.b16 %v4432
          %v5188 = vunpack.c.l.b16 %v4433
          %v5189 = vunpack.c.h.b16 %v4433
          %v5190 = vunpack.c.l.b16 %v4434
          %v5191 = vunpack.c.h.b16 %v4434
          %v5192 = vunpack.c.l.b16 %v4435
          %v5193 = vunpack.c.h.b16 %v4435
          %v5194 = vunpack.c.l.b16 %v4436
          %v5195 = vunpack.c.h.b16 %v4436
          %v5196 = vunpack.c.l.b16 %v4437
          %v5197 = vunpack.c.h.b16 %v4437
          %v5198 = vunpack.c.l.b16 %v4438
          %v5199 = vunpack.c.h.b16 %v4438
          %v5200 = vunpack.c.l.b16 %v4439
          %v5201 = vunpack.c.h.b16 %v4439
          %v5202 = vunpack.c.l.b16 %v4440
          %v5203 = vunpack.c.h.b16 %v4440
          %v5204 = vunpack.c.l.b16 %v4441
          %v5205 = vunpack.c.h.b16 %v4441
          %v5206 = vunpack.c.l.b16 %v4442
          %v5207 = vunpack.c.h.b16 %v4442
          %v5208 = vunpack.c.l.b16 %v4443
          %v5209 = vunpack.c.h.b16 %v4443
          %v5210 = vunpack.c.l.b16 %v4444
          %v5211 = vunpack.c.h.b16 %v4444
          %v5212 = vunpack.c.l.b16 %v4445
          %v5213 = vunpack.c.h.b16 %v4445
          %v5214 = vunpack.c.l.b16 %v4446
          %v5215 = vunpack.c.h.b16 %v4446
          %v5216 = vunpack.c.l.b16 %v4447
          %v5217 = vunpack.c.h.b16 %v4447
          %v5218 = vunpack.c.l.b16 %v4448
          %v5219 = vunpack.c.h.b16 %v4448
          %v5220 = vunpack.c.l.b16 %v4449
          %v5221 = vunpack.c.h.b16 %v4449
          %v5222 = vunpack.c.l.b16 %v4450
          %v5223 = vunpack.c.h.b16 %v4450
          %v5224 = vunpack.c.l.b16 %v4451
          %v5225 = vunpack.c.h.b16 %v4451
          %v5226 = vunpack.c.l.b16 %v4452
          %v5227 = vunpack.c.h.b16 %v4452
          %v5228 = vunpack.c.l.b16 %v4453
          %v5229 = vunpack.c.h.b16 %v4453
          %v5230 = vunpack.c.l.b16 %v4454
          %v5231 = vunpack.c.h.b16 %v4454
          %v5232 = vunpack.c.l.b16 %v4455
          %v5233 = vunpack.c.h.b16 %v4455
          %v5234 = vunpack.c.l.b16 %v4456
          %v5235 = vunpack.c.h.b16 %v4456
          %v5236 = vunpack.c.l.b16 %v4457
          %v5237 = vunpack.c.h.b16 %v4457
          %v5238 = vunpack.c.l.b16 %v4458
          %v5239 = vunpack.c.h.b16 %v4458
          %v5240 = vunpack.c.l.b16 %v4459
          %v5241 = vunpack.c.h.b16 %v4459
          %v5242 = vunpack.c.l.b16 %v4460
          %v5243 = vunpack.c.h.b16 %v4460
          %v5244 = vunpack.c.l.b16 %v4461
          %v5245 = vunpack.c.h.b16 %v4461
          %v5246 = vunpack.c.l.b16 %v4462
          %v5247 = vunpack.c.h.b16 %v4462
          %v5248 = vunpack.c.l.b16 %v4463
          %v5249 = vunpack.c.h.b16 %v4463
          %v5250 = vunpack.c.l.b16 %v4464
          %v5251 = vunpack.c.h.b16 %v4464
          %v5252 = vunpack.c.l.b16 %v4465
          %v5253 = vunpack.c.h.b16 %v4465
          %v5254 = vunpack.c.l.b16 %v4466
          %v5255 = vunpack.c.h.b16 %v4466
          %v5256 = vunpack.c.l.b16 %v4467
          %v5257 = vunpack.c.h.b16 %v4467
          %v5258 = vpack.c.b16 %v4750, %v4746
          %v5259 = vpack.c.b16 %v4751, %v4747
          %v5260 = vpack.c.b16 %v4752, %v4748
          %v5261 = vpack.c.b16 %v4753, %v4749
          %v5262 = vpack.c.b16 %v4758, %v4754
          %v5263 = vpack.c.b16 %v4759, %v4755
          %v5264 = vpack.c.b16 %v4760, %v4756
          %v5265 = vpack.c.b16 %v4761, %v4757
          %v5266 = vpack.c.b16 %v4766, %v4762
          %v5267 = vpack.c.b16 %v4767, %v4763
          %v5268 = vpack.c.b16 %v4768, %v4764
          %v5269 = vpack.c.b16 %v4769, %v4765
          %v5270 = vpack.c.b16 %v4774, %v4770
          %v5271 = vpack.c.b16 %v4775, %v4771
          %v5272 = vpack.c.b16 %v4776, %v4772
          %v5273 = vpack.c.b16 %v4777, %v4773
          %v5274 = vpack.c.b16 %v4782, %v4778
          %v5275 = vpack.c.b16 %v4783, %v4779
          %v5276 = vpack.c.b16 %v4784, %v4780
          %v5277 = vpack.c.b16 %v4785, %v4781
          %v5278 = vpack.c.b16 %v4790, %v4786
          %v5279 = vpack.c.b16 %v4791, %v4787
          %v5280 = vpack.c.b16 %v4792, %v4788
          %v5281 = vpack.c.b16 %v4793, %v4789
          %v5282 = vpack.c.b16 %v4798, %v4794
          %v5283 = vpack.c.b16 %v4799, %v4795
          %v5284 = vpack.c.b16 %v4800, %v4796
          %v5285 = vpack.c.b16 %v4801, %v4797
          %v5286 = vpack.c.b16 %v4806, %v4802
          %v5287 = vpack.c.b16 %v4807, %v4803
          %v5288 = vpack.c.b16 %v4808, %v4804
          %v5289 = vpack.c.b16 %v4809, %v4805
          %v5290 = vpack.c.b16 %v4814, %v4810
          %v5291 = vpack.c.b16 %v4815, %v4811
          %v5292 = vpack.c.b16 %v4816, %v4812
          %v5293 = vpack.c.b16 %v4817, %v4813
          %v5294 = vpack.c.b16 %v4822, %v4818
          %v5295 = vpack.c.b16 %v4823, %v4819
          %v5296 = vpack.c.b16 %v4824, %v4820
          %v5297 = vpack.c.b16 %v4825, %v4821
          %v5298 = vpack.c.b16 %v4830, %v4826
          %v5299 = vpack.c.b16 %v4831, %v4827
          %v5300 = vpack.c.b16 %v4832, %v4828
          %v5301 = vpack.c.b16 %v4833, %v4829
          %v5302 = vpack.c.b16 %v4838, %v4834
          %v5303 = vpack.c.b16 %v4839, %v4835
          %v5304 = vpack.c.b16 %v4840, %v4836
          %v5305 = vpack.c.b16 %v4841, %v4837
          %v5306 = vpack.c.b16 %v4846, %v4842
          %v5307 = vpack.c.b16 %v4847, %v4843
          %v5308 = vpack.c.b16 %v4848, %v4844
          %v5309 = vpack.c.b16 %v4849, %v4845
          %v5310 = vpack.c.b16 %v4854, %v4850
          %v5311 = vpack.c.b16 %v4855, %v4851
          %v5312 = vpack.c.b16 %v4856, %v4852
          %v5313 = vpack.c.b16 %v4857, %v4853
          %v5314 = vpack.c.b16 %v4862, %v4858
          %v5315 = vpack.c.b16 %v4863, %v4859
          %v5316 = vpack.c.b16 %v4864, %v4860
          %v5317 = vpack.c.b16 %v4865, %v4861
          %v5318 = vpack.c.b16 %v4870, %v4866
          %v5319 = vpack.c.b16 %v4871, %v4867
          %v5320 = vpack.c.b16 %v4872, %v4868
          %v5321 = vpack.c.b16 %v4873, %v4869
          %v5322 = vpack.c.b16 %v4878, %v4874
          %v5323 = vpack.c.b16 %v4879, %v4875
          %v5324 = vpack.c.b16 %v4880, %v4876
          %v5325 = vpack.c.b16 %v4881, %v4877
          %v5326 = vpack.c.b16 %v4886, %v4882
          %v5327 = vpack.c.b16 %v4887, %v4883
          %v5328 = vpack.c.b16 %v4888, %v4884
          %v5329 = vpack.c.b16 %v4889, %v4885
          %v5330 = vpack.c.b16 %v4894, %v4890
          %v5331 = vpack.c.b16 %v4895, %v4891
          %v5332 = vpack.c.b16 %v4896, %v4892
          %v5333 = vpack.c.b16 %v4897, %v4893
          %v5334 = vpack.c.b16 %v4902, %v4898
          %v5335 = vpack.c.b16 %v4903, %v4899
          %v5336 = vpack.c.b16 %v4904, %v4900
          %v5337 = vpack.c.b16 %v4905, %v4901
          %v5338 = vpack.c.b16 %v4910, %v4906
          %v5339 = vpack.c.b16 %v4911, %v4907
          %v5340 = vpack.c.b16 %v4912, %v4908
          %v5341 = vpack.c.b16 %v4913, %v4909
          %v5342 = vpack.c.b16 %v4918, %v4914
          %v5343 = vpack.c.b16 %v4919, %v4915
          %v5344 = vpack.c.b16 %v4920, %v4916
          %v5345 = vpack.c.b16 %v4921, %v4917
          %v5346 = vpack.c.b16 %v4926, %v4922
          %v5347 = vpack.c.b16 %v4927, %v4923
          %v5348 = vpack.c.b16 %v4928, %v4924
          %v5349 = vpack.c.b16 %v4929, %v4925
          %v5350 = vpack.c.b16 %v4934, %v4930
          %v5351 = vpack.c.b16 %v4935, %v4931
          %v5352 = vpack.c.b16 %v4936, %v4932
          %v5353 = vpack.c.b16 %v4937, %v4933
          %v5354 = vpack.c.b16 %v4942, %v4938
          %v5355 = vpack.c.b16 %v4943, %v4939
          %v5356 = vpack.c.b16 %v4944, %v4940
          %v5357 = vpack.c.b16 %v4945, %v4941
          %v5358 = vpack.c.b16 %v4950, %v4946
          %v5359 = vpack.c.b16 %v4951, %v4947
          %v5360 = vpack.c.b16 %v4952, %v4948
          %v5361 = vpack.c.b16 %v4953, %v4949
          %v5362 = vpack.c.b16 %v4958, %v4954
          %v5363 = vpack.c.b16 %v4959, %v4955
          %v5364 = vpack.c.b16 %v4960, %v4956
          %v5365 = vpack.c.b16 %v4961, %v4957
          %v5366 = vpack.c.b16 %v4966, %v4962
          %v5367 = vpack.c.b16 %v4967, %v4963
          %v5368 = vpack.c.b16 %v4968, %v4964
          %v5369 = vpack.c.b16 %v4969, %v4965
          %v5370 = vpack.c.b16 %v4974, %v4970
          %v5371 = vpack.c.b16 %v4975, %v4971
          %v5372 = vpack.c.b16 %v4976, %v4972
          %v5373 = vpack.c.b16 %v4977, %v4973
          %v5374 = vpack.c.b16 %v4982, %v4978
          %v5375 = vpack.c.b16 %v4983, %v4979
          %v5376 = vpack.c.b16 %v4984, %v4980
          %v5377 = vpack.c.b16 %v4985, %v4981
          %v5378 = vpack.c.b16 %v4990, %v4986
          %v5379 = vpack.c.b16 %v4991, %v4987
          %v5380 = vpack.c.b16 %v4992, %v4988
          %v5381 = vpack.c.b16 %v4993, %v4989
          %v5382 = vpack.c.b16 %v4998, %v4994
          %v5383 = vpack.c.b16 %v4999, %v4995
          %v5384 = vpack.c.b16 %v5000, %v4996
          %v5385 = vpack.c.b16 %v5001, %v4997
          %v5386 = vpack.c.b16 %v5006, %v5002
          %v5387 = vpack.c.b16 %v5007, %v5003
          %v5388 = vpack.c.b16 %v5008, %v5004
          %v5389 = vpack.c.b16 %v5009, %v5005
          %v5390 = vpack.c.b16 %v5014, %v5010
          %v5391 = vpack.c.b16 %v5015, %v5011
          %v5392 = vpack.c.b16 %v5016, %v5012
          %v5393 = vpack.c.b16 %v5017, %v5013
          %v5394 = vpack.c.b16 %v5022, %v5018
          %v5395 = vpack.c.b16 %v5023, %v5019
          %v5396 = vpack.c.b16 %v5024, %v5020
          %v5397 = vpack.c.b16 %v5025, %v5021
          %v5398 = vpack.c.b16 %v5030, %v5026
          %v5399 = vpack.c.b16 %v5031, %v5027
          %v5400 = vpack.c.b16 %v5032, %v5028
          %v5401 = vpack.c.b16 %v5033, %v5029
          %v5402 = vpack.c.b16 %v5038, %v5034
          %v5403 = vpack.c.b16 %v5039, %v5035
          %v5404 = vpack.c.b16 %v5040, %v5036
          %v5405 = vpack.c.b16 %v5041, %v5037
          %v5406 = vpack.c.b16 %v5046, %v5042
          %v5407 = vpack.c.b16 %v5047, %v5043
          %v5408 = vpack.c.b16 %v5048, %v5044
          %v5409 = vpack.c.b16 %v5049, %v5045
          %v5410 = vpack.c.b16 %v5054, %v5050
          %v5411 = vpack.c.b16 %v5055, %v5051
          %v5412 = vpack.c.b16 %v5056, %v5052
          %v5413 = vpack.c.b16 %v5057, %v5053
          %v5414 = vpack.c.b16 %v5062, %v5058
          %v5415 = vpack.c.b16 %v5063, %v5059
          %v5416 = vpack.c.b16 %v5064, %v5060
          %v5417 = vpack.c.b16 %v5065, %v5061
          %v5418 = vpack.c.b16 %v5070, %v5066
          %v5419 = vpack.c.b16 %v5071, %v5067
          %v5420 = vpack.c.b16 %v5072, %v5068
          %v5421 = vpack.c.b16 %v5073, %v5069
          %v5422 = vpack.c.b16 %v5078, %v5074
          %v5423 = vpack.c.b16 %v5079, %v5075
          %v5424 = vpack.c.b16 %v5080, %v5076
          %v5425 = vpack.c.b16 %v5081, %v5077
          %v5426 = vpack.c.b16 %v5086, %v5082
          %v5427 = vpack.c.b16 %v5087, %v5083
          %v5428 = vpack.c.b16 %v5088, %v5084
          %v5429 = vpack.c.b16 %v5089, %v5085
          %v5430 = vpack.c.b16 %v5094, %v5090
          %v5431 = vpack.c.b16 %v5095, %v5091
          %v5432 = vpack.c.b16 %v5096, %v5092
          %v5433 = vpack.c.b16 %v5097, %v5093
          %v5434 = vpack.c.b16 %v5102, %v5098
          %v5435 = vpack.c.b16 %v5103, %v5099
          %v5436 = vpack.c.b16 %v5104, %v5100
          %v5437 = vpack.c.b16 %v5105, %v5101
          %v5438 = vpack.c.b16 %v5110, %v5106
          %v5439 = vpack.c.b16 %v5111, %v5107
          %v5440 = vpack.c.b16 %v5112, %v5108
          %v5441 = vpack.c.b16 %v5113, %v5109
          %v5442 = vpack.c.b16 %v5118, %v5114
          %v5443 = vpack.c.b16 %v5119, %v5115
          %v5444 = vpack.c.b16 %v5120, %v5116
          %v5445 = vpack.c.b16 %v5121, %v5117
          %v5446 = vpack.c.b16 %v5126, %v5122
          %v5447 = vpack.c.b16 %v5127, %v5123
          %v5448 = vpack.c.b16 %v5128, %v5124
          %v5449 = vpack.c.b16 %v5129, %v5125
          %v5450 = vpack.c.b16 %v5134, %v5130
          %v5451 = vpack.c.b16 %v5135, %v5131
          %v5452 = vpack.c.b16 %v5136, %v5132
          %v5453 = vpack.c.b16 %v5137, %v5133
          %v5454 = vpack.c.b16 %v5142, %v5138
          %v5455 = vpack.c.b16 %v5143, %v5139
          %v5456 = vpack.c.b16 %v5144, %v5140
          %v5457 = vpack.c.b16 %v5145, %v5141
          %v5458 = vpack.c.b16 %v5150, %v5146
          %v5459 = vpack.c.b16 %v5151, %v5147
          %v5460 = vpack.c.b16 %v5152, %v5148
          %v5461 = vpack.c.b16 %v5153, %v5149
          %v5462 = vpack.c.b16 %v5158, %v5154
          %v5463 = vpack.c.b16 %v5159, %v5155
          %v5464 = vpack.c.b16 %v5160, %v5156
          %v5465 = vpack.c.b16 %v5161, %v5157
          %v5466 = vpack.c.b16 %v5166, %v5162
          %v5467 = vpack.c.b16 %v5167, %v5163
          %v5468 = vpack.c.b16 %v5168, %v5164
          %v5469 = vpack.c.b16 %v5169, %v5165
          %v5470 = vpack.c.b16 %v5174, %v5170
          %v5471 = vpack.c.b16 %v5175, %v5171
          %v5472 = vpack.c.b16 %v5176, %v5172
          %v5473 = vpack.c.b16 %v5177, %v5173
          %v5474 = vpack.c.b16 %v5182, %v5178
          %v5475 = vpack.c.b16 %v5183, %v5179
          %v5476 = vpack.c.b16 %v5184, %v5180
          %v5477 = vpack.c.b16 %v5185, %v5181
          %v5478 = vpack.c.b16 %v5190, %v5186
          %v5479 = vpack.c.b16 %v5191, %v5187
          %v5480 = vpack.c.b16 %v5192, %v5188
          %v5481 = vpack.c.b16 %v5193, %v5189
          %v5482 = vpack.c.b16 %v5198, %v5194
          %v5483 = vpack.c.b16 %v5199, %v5195
          %v5484 = vpack.c.b16 %v5200, %v5196
          %v5485 = vpack.c.b16 %v5201, %v5197
          %v5486 = vpack.c.b16 %v5206, %v5202
          %v5487 = vpack.c.b16 %v5207, %v5203
          %v5488 = vpack.c.b16 %v5208, %v5204
          %v5489 = vpack.c.b16 %v5209, %v5205
          %v5490 = vpack.c.b16 %v5214, %v5210
          %v5491 = vpack.c.b16 %v5215, %v5211
          %v5492 = vpack.c.b16 %v5216, %v5212
          %v5493 = vpack.c.b16 %v5217, %v5213
          %v5494 = vpack.c.b16 %v5222, %v5218
          %v5495 = vpack.c.b16 %v5223, %v5219
          %v5496 = vpack.c.b16 %v5224, %v5220
          %v5497 = vpack.c.b16 %v5225, %v5221
          %v5498 = vpack.c.b16 %v5230, %v5226
          %v5499 = vpack.c.b16 %v5231, %v5227
          %v5500 = vpack.c.b16 %v5232, %v5228
          %v5501 = vpack.c.b16 %v5233, %v5229
          %v5502 = vpack.c.b16 %v5238, %v5234
          %v5503 = vpack.c.b16 %v5239, %v5235
          %v5504 = vpack.c.b16 %v5240, %v5236
          %v5505 = vpack.c.b16 %v5241, %v5237
          %v5506 = vpack.c.b16 %v5246, %v5242
          %v5507 = vpack.c.b16 %v5247, %v5243
          %v5508 = vpack.c.b16 %v5248, %v5244
          %v5509 = vpack.c.b16 %v5249, %v5245
          %v5510 = vpack.c.b16 %v5254, %v5250
          %v5511 = vpack.c.b16 %v5255, %v5251
          %v5512 = vpack.c.b16 %v5256, %v5252
          %v5513 = vpack.c.b16 %v5257, %v5253
          %5770 = vmatprep.subr.bf16.mxu0 %v5259
          %5771 = vmatpush1.bf16.msra.mxu0 %v5258
          %5772 = vmatprep.subr.bf16.mxu0 %v5263
          %5773 = vmatpush1.bf16.msra.mxu0 %v5262
          %5774 = vmatprep.subr.bf16.mxu0 %v5267
          %5775 = vmatpush1.bf16.msra.mxu0 %v5266
          %5776 = vmatprep.subr.bf16.mxu0 %v5271
          %5777 = vmatpush1.bf16.msra.mxu0 %v5270
          %5778 = vmatprep.subr.bf16.mxu0 %v5275
          %5779 = vmatpush1.bf16.msra.mxu0 %v5274
          %5780 = vmatprep.subr.bf16.mxu0 %v5279
          %5781 = vmatpush1.bf16.msra.mxu0 %v5278
          %5782 = vmatprep.subr.bf16.mxu0 %v5283
          %5783 = vmatpush1.bf16.msra.mxu0 %v5282
          %5784 = vmatprep.subr.bf16.mxu0 %v5287
          %5785 = vmatpush1.bf16.msra.mxu0 %v5286
          %5786 = vmatprep.subr.bf16.mxu0 %v5291
          %5787 = vmatpush1.bf16.msra.mxu0 %v5290
          %5788 = vmatprep.subr.bf16.mxu0 %v5295
          %5789 = vmatpush1.bf16.msra.mxu0 %v5294
          %5790 = vmatprep.subr.bf16.mxu0 %v5299
          %5791 = vmatpush1.bf16.msra.mxu0 %v5298
          %5792 = vmatprep.subr.bf16.mxu0 %v5303
          %5793 = vmatpush1.bf16.msra.mxu0 %v5302
          %5794 = vmatprep.subr.bf16.mxu0 %v5307
          %5795 = vmatpush1.bf16.msra.mxu0 %v5306
          %5796 = vmatprep.subr.bf16.mxu0 %v5311
          %5797 = vmatpush1.bf16.msra.mxu0 %v5310
          %5798 = vmatprep.subr.bf16.mxu0 %v5315
          %5799 = vmatpush1.bf16.msra.mxu0 %v5314
          %5800 = vmatprep.subr.bf16.mxu0 %v5319
          %5801 = vmatpush1.bf16.msra.mxu0 %v5318
          %5802 = vmatprep.mubr.bf16.mxu0 %v4205
          %5803 = vmatmul.mubr.bf16.gmra.mrb[0].mxu0 %v4204
          %v5804 = vpop.f32.mrb[0].mxu0
          %v5805 = vadd.f32 %v4473, %v5804
          %v5806 = vpop.f32.mrb[0].mxu0
          %v5807 = vadd.f32 %v4477, %v5806
          %v5808 = vpop.f32.mrb[0].mxu0
          %v5809 = vadd.f32 %v4473, %v5808
          %v5810 = vpop.f32.mrb[0].mxu0
          %v5811 = vadd.f32 %v4477, %v5810
          %5812 = vdwg.mxu0
          %5813 = vmatprep.subr.bf16.mxu0 %v5323
          %5814 = vmatpush1.bf16.msra.mxu0 %v5322
          %5815 = vmatprep.subr.bf16.mxu0 %v5327
          %5816 = vmatpush1.bf16.msra.mxu0 %v5326
          %5817 = vmatprep.subr.bf16.mxu0 %v5331
          %5818 = vmatpush1.bf16.msra.mxu0 %v5330
          %5819 = vmatprep.subr.bf16.mxu0 %v5335
          %5820 = vmatpush1.bf16.msra.mxu0 %v5334
          %5821 = vmatprep.subr.bf16.mxu0 %v5339
          %5822 = vmatpush1.bf16.msra.mxu0 %v5338
          %5823 = vmatprep.subr.bf16.mxu0 %v5343
          %5824 = vmatpush1.bf16.msra.mxu0 %v5342
          %5825 = vmatprep.subr.bf16.mxu0 %v5347
          %5826 = vmatpush1.bf16.msra.mxu0 %v5346
          %5827 = vmatprep.subr.bf16.mxu0 %v5351
          %5828 = vmatpush1.bf16.msra.mxu0 %v5350
          %5829 = vmatprep.subr.bf16.mxu0 %v5355
          %5830 = vmatpush1.bf16.msra.mxu0 %v5354
          %5831 = vmatprep.subr.bf16.mxu0 %v5359
          %5832 = vmatpush1.bf16.msra.mxu0 %v5358
          %5833 = vmatprep.subr.bf16.mxu0 %v5363
          %5834 = vmatpush1.bf16.msra.mxu0 %v5362
          %5835 = vmatprep.subr.bf16.mxu0 %v5367
          %5836 = vmatpush1.bf16.msra.mxu0 %v5366
          %5837 = vmatprep.subr.bf16.mxu0 %v5371
          %5838 = vmatpush1.bf16.msra.mxu0 %v5370
          %5839 = vmatprep.subr.bf16.mxu0 %v5375
          %5840 = vmatpush1.bf16.msra.mxu0 %v5374
          %5841 = vmatprep.subr.bf16.mxu0 %v5379
          %5842 = vmatpush1.bf16.msra.mxu0 %v5378
          %5843 = vmatprep.subr.bf16.mxu0 %v5383
          %5844 = vmatpush1.bf16.msra.mxu0 %v5382
          %5845 = vmatprep.mubr.bf16.mxu0 %v4207
          %5846 = vmatmul.mubr.bf16.gmra.mrb[0].mxu0 %v4206
          %v5847 = vpop.f32.mrb[0].mxu0
          %v5848 = vadd.f32 %v5805, %v5847
          %v5849 = vpop.f32.mrb[0].mxu0
          %v5850 = vadd.f32 %v5807, %v5849
          %v5851 = vpop.f32.mrb[0].mxu0
          %v5852 = vadd.f32 %v5809, %v5851
          %v5853 = vpop.f32.mrb[0].mxu0
          %v5854 = vadd.f32 %v5811, %v5853
          %5855 = vdwg.mxu0
          %5856 = vmatprep.subr.bf16.mxu0 %v5387
          %5857 = vmatpush1.bf16.msra.mxu0 %v5386
          %5858 = vmatprep.subr.bf16.mxu0 %v5391
          %5859 = vmatpush1.bf16.msra.mxu0 %v5390
          %5860 = vmatprep.subr.bf16.mxu0 %v5395
          %5861 = vmatpush1.bf16.msra.mxu0 %v5394
          %5862 = vmatprep.subr.bf16.mxu0 %v5399
          %5863 = vmatpush1.bf16.msra.mxu0 %v5398
          %5864 = vmatprep.subr.bf16.mxu0 %v5403
          %5865 = vmatpush1.bf16.msra.mxu0 %v5402
          %5866 = vmatprep.subr.bf16.mxu0 %v5407
          %5867 = vmatpush1.bf16.msra.mxu0 %v5406
          %5868 = vmatprep.subr.bf16.mxu0 %v5411
          %5869 = vmatpush1.bf16.msra.mxu0 %v5410
          %5870 = vmatprep.subr.bf16.mxu0 %v5415
          %5871 = vmatpush1.bf16.msra.mxu0 %v5414
          %5872 = vmatprep.subr.bf16.mxu0 %v5419
          %5873 = vmatpush1.bf16.msra.mxu0 %v5418
          %5874 = vmatprep.subr.bf16.mxu0 %v5423
          %5875 = vmatpush1.bf16.msra.mxu0 %v5422
          %5876 = vmatprep.subr.bf16.mxu0 %v5427
          %5877 = vmatpush1.bf16.msra.mxu0 %v5426
          %5878 = vmatprep.subr.bf16.mxu0 %v5431
          %5879 = vmatpush1.bf16.msra.mxu0 %v5430
          %5880 = vmatprep.subr.bf16.mxu0 %v5435
          %5881 = vmatpush1.bf16.msra.mxu0 %v5434
          %5882 = vmatprep.subr.bf16.mxu0 %v5439
          %5883 = vmatpush1.bf16.msra.mxu0 %v5438
          %5884 = vmatprep.subr.bf16.mxu0 %v5443
          %5885 = vmatpush1.bf16.msra.mxu0 %v5442
          %5886 = vmatprep.subr.bf16.mxu0 %v5447
          %5887 = vmatpush1.bf16.msra.mxu0 %v5446
          %5888 = vmatprep.mubr.bf16.mxu0 %v4209
          %5889 = vmatmul.mubr.bf16.gmra.mrb[0].mxu0 %v4208
          %v5890 = vpop.f32.mrb[0].mxu0
          %v5891 = vadd.f32 %v5848, %v5890
          %v5892 = vpop.f32.mrb[0].mxu0
          %v5893 = vadd.f32 %v5850, %v5892
          %v5894 = vpop.f32.mrb[0].mxu0
          %v5895 = vadd.f32 %v5852, %v5894
          %v5896 = vpop.f32.mrb[0].mxu0
          %v5897 = vadd.f32 %v5854, %v5896
          %5898 = vdwg.mxu0
          %5899 = vmatprep.subr.bf16.mxu0 %v5451
          %5900 = vmatpush1.bf16.msra.mxu0 %v5450
          %5901 = vmatprep.subr.bf16.mxu0 %v5455
          %5902 = vmatpush1.bf16.msra.mxu0 %v5454
          %5903 = vmatprep.subr.bf16.mxu0 %v5459
          %5904 = vmatpush1.bf16.msra.mxu0 %v5458
          %5905 = vmatprep.subr.bf16.mxu0 %v5463
          %5906 = vmatpush1.bf16.msra.mxu0 %v5462
          %5907 = vmatprep.subr.bf16.mxu0 %v5467
          %5908 = vmatpush1.bf16.msra.mxu0 %v5466
          %5909 = vmatprep.subr.bf16.mxu0 %v5471
          %5910 = vmatpush1.bf16.msra.mxu0 %v5470
          %5911 = vmatprep.subr.bf16.mxu0 %v5475
          %5912 = vmatpush1.bf16.msra.mxu0 %v5474
          %5913 = vmatprep.subr.bf16.mxu0 %v5479
          %5914 = vmatpush1.bf16.msra.mxu0 %v5478
          %5915 = vmatprep.subr.bf16.mxu0 %v5483
          %5916 = vmatpush1.bf16.msra.mxu0 %v5482
          %5917 = vmatprep.subr.bf16.mxu0 %v5487
          %5918 = vmatpush1.bf16.msra.mxu0 %v5486
          %5919 = vmatprep.subr.bf16.mxu0 %v5491
          %5920 = vmatpush1.bf16.msra.mxu0 %v5490
          %5921 = vmatprep.subr.bf16.mxu0 %v5495
          %5922 = vmatpush1.bf16.msra.mxu0 %v5494
          %5923 = vmatprep.subr.bf16.mxu0 %v5499
          %5924 = vmatpush1.bf16.msra.mxu0 %v5498
          %5925 = vmatprep.subr.bf16.mxu0 %v5503
          %5926 = vmatpush1.bf16.msra.mxu0 %v5502
          %5927 = vmatprep.subr.bf16.mxu0 %v5507
          %5928 = vmatpush1.bf16.msra.mxu0 %v5506
          %5929 = vmatprep.subr.bf16.mxu0 %v5511
          %5930 = vmatpush1.bf16.msra.mxu0 %v5510
          %5931 = vmatprep.mubr.bf16.mxu0 %v4211
          %5932 = vmatmul.mubr.bf16.gmra.mrb[0].mxu0 %v4210
          %v5933 = vpop.f32.mrb[0].mxu0
          %v5934 = vadd.f32 %v5891, %v5933
          %v5935 = vpop.f32.mrb[0].mxu0
          %v5936 = vadd.f32 %v5893, %v5935
          %v5937 = vpop.f32.mrb[0].mxu0
          %v5938 = vadd.f32 %v5895, %v5937
          %v5939 = vpop.f32.mrb[0].mxu0
          %v5940 = vadd.f32 %v5897, %v5939
          %5941 = vdwg.mxu0
          %5942 = vmatprep.subr.bf16.mxu0 %v5261
          %5943 = vmatpush1.bf16.msra.mxu0 %v5260
          %5944 = vmatprep.subr.bf16.mxu0 %v5265
          %5945 = vmatpush1.bf16.msra.mxu0 %v5264
          %5946 = vmatprep.subr.bf16.mxu0 %v5269
          %5947 = vmatpush1.bf16.msra.mxu0 %v5268
          %5948 = vmatprep.subr.bf16.mxu0 %v5273
          %5949 = vmatpush1.bf16.msra.mxu0 %v5272
          %5950 = vmatprep.subr.bf16.mxu0 %v5277
          %5951 = vmatpush1.bf16.msra.mxu0 %v5276
          %5952 = vmatprep.subr.bf16.mxu0 %v5281
          %5953 = vmatpush1.bf16.msra.mxu0 %v5280
          %5954 = vmatprep.subr.bf16.mxu0 %v5285
          %5955 = vmatpush1.bf16.msra.mxu0 %v5284
          %5956 = vmatprep.subr.bf16.mxu0 %v5289
          %5957 = vmatpush1.bf16.msra.mxu0 %v5288
          %5958 = vmatprep.subr.bf16.mxu0 %v5293
          %5959 = vmatpush1.bf16.msra.mxu0 %v5292
          %5960 = vmatprep.subr.bf16.mxu0 %v5297
          %5961 = vmatpush1.bf16.msra.mxu0 %v5296
          %5962 = vmatprep.subr.bf16.mxu0 %v5301
          %5963 = vmatpush1.bf16.msra.mxu0 %v5300
          %5964 = vmatprep.subr.bf16.mxu0 %v5305
          %5965 = vmatpush1.bf16.msra.mxu0 %v5304
          %5966 = vmatprep.subr.bf16.mxu0 %v5309
          %5967 = vmatpush1.bf16.msra.mxu0 %v5308
          %5968 = vmatprep.subr.bf16.mxu0 %v5313
          %5969 = vmatpush1.bf16.msra.mxu0 %v5312
          %5970 = vmatprep.subr.bf16.mxu0 %v5317
          %5971 = vmatpush1.bf16.msra.mxu0 %v5316
          %5972 = vmatprep.subr.bf16.mxu0 %v5321
          %5973 = vmatpush1.bf16.msra.mxu0 %v5320
          %5974 = vmatprep.mubr.bf16.mxu0 %v4205
          %5975 = vmatmul.mubr.bf16.gmra.mrb[0].mxu0 %v4204
          %v5976 = vpop.f32.mrb[0].mxu0
          %v5977 = vadd.f32 %v4481, %v5976
          %v5978 = vpop.f32.mrb[0].mxu0
          %v5979 = vadd.f32 %v4485, %v5978
          %v5980 = vpop.f32.mrb[0].mxu0
          %v5981 = vadd.f32 %v4481, %v5980
          %v5982 = vpop.f32.mrb[0].mxu0
          %v5983 = vadd.f32 %v4485, %v5982
          %5984 = vdwg.mxu0
          %5985 = vmatprep.subr.bf16.mxu0 %v5325
          %5986 = vmatpush1.bf16.msra.mxu0 %v5324
          %5987 = vmatprep.subr.bf16.mxu0 %v5329
          %5988 = vmatpush1.bf16.msra.mxu0 %v5328
          %5989 = vmatprep.subr.bf16.mxu0 %v5333
          %5990 = vmatpush1.bf16.msra.mxu0 %v5332
          %5991 = vmatprep.subr.bf16.mxu0 %v5337
          %5992 = vmatpush1.bf16.msra.mxu0 %v5336
          %5993 = vmatprep.subr.bf16.mxu0 %v5341
          %5994 = vmatpush1.bf16.msra.mxu0 %v5340
          %5995 = vmatprep.subr.bf16.mxu0 %v5345
          %5996 = vmatpush1.bf16.msra.mxu0 %v5344
          %5997 = vmatprep.subr.bf16.mxu0 %v5349
          %5998 = vmatpush1.bf16.msra.mxu0 %v5348
          %5999 = vmatprep.subr.bf16.mxu0 %v5353
          %6000 = vmatpush1.bf16.msra.mxu0 %v5352
          %6001 = vmatprep.subr.bf16.mxu0 %v5357
          %6002 = vmatpush1.bf16.msra.mxu0 %v5356
          %6003 = vmatprep.subr.bf16.mxu0 %v5361
          %6004 = vmatpush1.bf16.msra.mxu0 %v5360
          %6005 = vmatprep.subr.bf16.mxu0 %v5365
          %6006 = vmatpush1.bf16.msra.mxu0 %v5364
          %6007 = vmatprep.subr.bf16.mxu0 %v5369
          %6008 = vmatpush1.bf16.msra.mxu0 %v5368
          %6009 = vmatprep.subr.bf16.mxu0 %v5373
          %6010 = vmatpush1.bf16.msra.mxu0 %v5372
          %6011 = vmatprep.subr.bf16.mxu0 %v5377
          %6012 = vmatpush1.bf16.msra.mxu0 %v5376
          %6013 = vmatprep.subr.bf16.mxu0 %v5381
          %6014 = vmatpush1.bf16.msra.mxu0 %v5380
          %6015 = vmatprep.subr.bf16.mxu0 %v5385
          %6016 = vmatpush1.bf16.msra.mxu0 %v5384
          %6017 = vmatprep.mubr.bf16.mxu0 %v4207
          %6018 = vmatmul.mubr.bf16.gmra.mrb[0].mxu0 %v4206
          %v6019 = vpop.f32.mrb[0].mxu0
          %v6020 = vadd.f32 %v5977, %v6019
          %v6021 = vpop.f32.mrb[0].mxu0
          %v6022 = vadd.f32 %v5979, %v6021
          %v6023 = vpop.f32.mrb[0].mxu0
          %v6024 = vadd.f32 %v5981, %v6023
          %v6025 = vpop.f32.mrb[0].mxu0
          %v6026 = vadd.f32 %v5983, %v6025
          %6027 = vdwg.mxu0
          %6028 = vmatprep.subr.bf16.mxu0 %v5389
          %6029 = vmatpush1.bf16.msra.mxu0 %v5388
          %6030 = vmatprep.subr.bf16.mxu0 %v5393
          %6031 = vmatpush1.bf16.msra.mxu0 %v5392
          %6032 = vmatprep.subr.bf16.mxu0 %v5397
          %6033 = vmatpush1.bf16.msra.mxu0 %v5396
          %6034 = vmatprep.subr.bf16.mxu0 %v5401
          %6035 = vmatpush1.bf16.msra.mxu0 %v5400
          %6036 = vmatprep.subr.bf16.mxu0 %v5405
          %6037 = vmatpush1.bf16.msra.mxu0 %v5404
          %6038 = vmatprep.subr.bf16.mxu0 %v5409
          %6039 = vmatpush1.bf16.msra.mxu0 %v5408
          %6040 = vmatprep.subr.bf16.mxu0 %v5413
          %6041 = vmatpush1.bf16.msra.mxu0 %v5412
          %6042 = vmatprep.subr.bf16.mxu0 %v5417
          %6043 = vmatpush1.bf16.msra.mxu0 %v5416
          %6044 = vmatprep.subr.bf16.mxu0 %v5421
          %6045 = vmatpush1.bf16.msra.mxu0 %v5420
          %6046 = vmatprep.subr.bf16.mxu0 %v5425
          %6047 = vmatpush1.bf16.msra.mxu0 %v5424
          %6048 = vmatprep.subr.bf16.mxu0 %v5429
          %6049 = vmatpush1.bf16.msra.mxu0 %v5428
          %6050 = vmatprep.subr.bf16.mxu0 %v5433
          %6051 = vmatpush1.bf16.msra.mxu0 %v5432
          %6052 = vmatprep.subr.bf16.mxu0 %v5437
          %6053 = vmatpush1.bf16.msra.mxu0 %v5436
          %6054 = vmatprep.subr.bf16.mxu0 %v5441
          %6055 = vmatpush1.bf16.msra.mxu0 %v5440
          %6056 = vmatprep.subr.bf16.mxu0 %v5445
          %6057 = vmatpush1.bf16.msra.mxu0 %v5444
          %6058 = vmatprep.subr.bf16.mxu0 %v5449
          %6059 = vmatpush1.bf16.msra.mxu0 %v5448
          %6060 = vmatprep.mubr.bf16.mxu0 %v4209
          %6061 = vmatmul.mubr.bf16.gmra.mrb[0].mxu0 %v4208
          %v6062 = vpop.f32.mrb[0].mxu0
          %v6063 = vadd.f32 %v6020, %v6062
          %v6064 = vpop.f32.mrb[0].mxu0
          %v6065 = vadd.f32 %v6022, %v6064
          %v6066 = vpop.f32.mrb[0].mxu0
          %v6067 = vadd.f32 %v6024, %v6066
          %v6068 = vpop.f32.mrb[0].mxu0
          %v6069 = vadd.f32 %v6026, %v6068
          %6070 = vdwg.mxu0
          %6071 = vmatprep.subr.bf16.mxu0 %v5453
          %6072 = vmatpush1.bf16.msra.mxu0 %v5452
          %6073 = vmatprep.subr.bf16.mxu0 %v5457
          %6074 = vmatpush1.bf16.msra.mxu0 %v5456
          %6075 = vmatprep.subr.bf16.mxu0 %v5461
          %6076 = vmatpush1.bf16.msra.mxu0 %v5460
          %6077 = vmatprep.subr.bf16.mxu0 %v5465
          %6078 = vmatpush1.bf16.msra.mxu0 %v5464
          %6079 = vmatprep.subr.bf16.mxu0 %v5469
          %6080 = vmatpush1.bf16.msra.mxu0 %v5468
          %6081 = vmatprep.subr.bf16.mxu0 %v5473
          %6082 = vmatpush1.bf16.msra.mxu0 %v5472
          %6083 = vmatprep.subr.bf16.mxu0 %v5477
          %6084 = vmatpush1.bf16.msra.mxu0 %v5476
          %6085 = vmatprep.subr.bf16.mxu0 %v5481
          %6086 = vmatpush1.bf16.msra.mxu0 %v5480
          %6087 = vmatprep.subr.bf16.mxu0 %v5485
          %6088 = vmatpush1.bf16.msra.mxu0 %v5484
          %6089 = vmatprep.subr.bf16.mxu0 %v5489
          %6090 = vmatpush1.bf16.msra.mxu0 %v5488
          %6091 = vmatprep.subr.bf16.mxu0 %v5493
          %6092 = vmatpush1.bf16.msra.mxu0 %v5492
          %6093 = vmatprep.subr.bf16.mxu0 %v5497
          %6094 = vmatpush1.bf16.msra.mxu0 %v5496
          %6095 = vmatprep.subr.bf16.mxu0 %v5501
          %6096 = vmatpush1.bf16.msra.mxu0 %v5500
          %6097 = vmatprep.subr.bf16.mxu0 %v5505
          %6098 = vmatpush1.bf16.msra.mxu0 %v5504
          %6099 = vmatprep.subr.bf16.mxu0 %v5509
          %6100 = vmatpush1.bf16.msra.mxu0 %v5508
          %6101 = vmatprep.subr.bf16.mxu0 %v5513
          %6102 = vmatpush1.bf16.msra.mxu0 %v5512
          %6103 = vmatprep.mubr.bf16.mxu0 %v4211
          %6104 = vmatmul.mubr.bf16.gmra.mrb[0].mxu0 %v4210
          %v6105 = vpop.f32.mrb[0].mxu0
          %v6106 = vadd.f32 %v6063, %v6105
          %v6107 = vpop.f32.mrb[0].mxu0
          %v6108 = vadd.f32 %v6065, %v6107
          %v6109 = vpop.f32.mrb[0].mxu0
          %v6110 = vadd.f32 %v6067, %v6109
          %v6111 = vpop.f32.mrb[0].mxu0
          %v6112 = vadd.f32 %v6069, %v6111
          %6113 = vdwg.mxu0
          %v6114 = vmax.f32 %v5934, 0.0
          %v6115 = vmax.f32 %v5936, 0.0
          %v6116 = vmax.f32 %v6106, 0.0
          %v6117 = vmax.f32 %v6108, 0.0
          %v6118 = vmax.f32 %v5938, 0.0
          %v6119 = vmax.f32 %v5940, 0.0
          %v6120 = vmax.f32 %v6110, 0.0
          %v6121 = vmax.f32 %v6112, 0.0
          %v6122 = vpack.c.bf16 %v6118, %v6114
          %v6123 = vpack.c.bf16 %v6119, %v6115
          %v6124 = vpack.c.bf16 %v6120, %v6116
          %v6125 = vpack.c.bf16 %v6121, %v6117
          %v6126 = vld [vmem:[#allocation11] sm:$0xf]
          %v6127 = vld [vmem:[#allocation11 + $0x4] sm:$0xf]
          %v6128 = vld [vmem:[#allocation11 + $0x8] sm:$0xf]
          %v6129 = vld [vmem:[#allocation11 + $0xc] sm:$0xf]
          %v6130 = vld [vmem:[#allocation11 + $0x10] sm:$0xf]
          %v6131 = vld [vmem:[#allocation11 + $0x14] sm:$0xf]
          %v6132 = vld [vmem:[#allocation11 + $0x18] sm:$0xf]
          %v6133 = vld [vmem:[#allocation11 + $0x1c] sm:$0xf]
          %v6134 = vld [vmem:[#allocation11 + $0x20] sm:$0xf]
          %v6135 = vld [vmem:[#allocation11 + $0x24] sm:$0xf]
          %v6136 = vld [vmem:[#allocation11 + $0x28] sm:$0xf]
          %v6137 = vld [vmem:[#allocation11 + $0x2c] sm:$0xf]
          %v6138 = vld [vmem:[#allocation11 + $0x30] sm:$0xf]
          %v6139 = vld [vmem:[#allocation11 + $0x34] sm:$0xf]
          %v6140 = vld [vmem:[#allocation11 + $0x38] sm:$0xf]
          %v6141 = vld [vmem:[#allocation11 + $0x3c] sm:$0xf]
          %v6142 = vld [vmem:[#allocation11 + $0x40] sm:$0xf]
          %v6143 = vld [vmem:[#allocation11 + $0x44] sm:$0xf]
          %v6144 = vld [vmem:[#allocation11 + $0x48] sm:$0xf]
          %v6145 = vld [vmem:[#allocation11 + $0x4c] sm:$0xf]
          %v6146 = vld [vmem:[#allocation11 + $0x50] sm:$0xf]
          %v6147 = vld [vmem:[#allocation11 + $0x54] sm:$0xf]
          %v6148 = vld [vmem:[#allocation11 + $0x58] sm:$0xf]
          %v6149 = vld [vmem:[#allocation11 + $0x5c] sm:$0xf]
          %v6150 = vld [vmem:[#allocation11 + $0x60] sm:$0xf]
          %v6151 = vld [vmem:[#allocation11 + $0x64] sm:$0xf]
          %v6152 = vld [vmem:[#allocation11 + $0x68] sm:$0xf]
          %v6153 = vld [vmem:[#allocation11 + $0x6c] sm:$0xf]
          %v6154 = vld [vmem:[#allocation11 + $0x70] sm:$0xf]
          %v6155 = vld [vmem:[#allocation11 + $0x74] sm:$0xf]
          %v6156 = vld [vmem:[#allocation11 + $0x78] sm:$0xf]
          %v6157 = vld [vmem:[#allocation11 + $0x7c] sm:$0xf]
          %v6158 = vld [vmem:[#allocation11 + $0x80] sm:$0xf]
          %v6159 = vld [vmem:[#allocation11 + $0x84] sm:$0xf]
          %v6160 = vld [vmem:[#allocation11 + $0x88] sm:$0xf]
          %v6161 = vld [vmem:[#allocation11 + $0x8c] sm:$0xf]
          %v6162 = vld [vmem:[#allocation11 + $0x90] sm:$0xf]
          %v6163 = vld [vmem:[#allocation11 + $0x94] sm:$0xf]
          %v6164 = vld [vmem:[#allocation11 + $0x98] sm:$0xf]
          %v6165 = vld [vmem:[#allocation11 + $0x9c] sm:$0xf]
          %v6166 = vld [vmem:[#allocation11 + $0xa0] sm:$0xf]
          %v6167 = vld [vmem:[#allocation11 + $0xa4] sm:$0xf]
          %v6168 = vld [vmem:[#allocation11 + $0xa8] sm:$0xf]
          %v6169 = vld [vmem:[#allocation11 + $0xac] sm:$0xf]
          %v6170 = vld [vmem:[#allocation11 + $0xb0] sm:$0xf]
          %v6171 = vld [vmem:[#allocation11 + $0xb4] sm:$0xf]
          %v6172 = vld [vmem:[#allocation11 + $0xb8] sm:$0xf]
          %v6173 = vld [vmem:[#allocation11 + $0xbc] sm:$0xf]
          %v6174 = vld [vmem:[#allocation11 + $0xc0] sm:$0xf]
          %v6175 = vld [vmem:[#allocation11 + $0xc4] sm:$0xf]
          %v6176 = vld [vmem:[#allocation11 + $0xc8] sm:$0xf]
          %v6177 = vld [vmem:[#allocation11 + $0xcc] sm:$0xf]
          %v6178 = vld [vmem:[#allocation11 + $0xd0] sm:$0xf]
          %v6179 = vld [vmem:[#allocation11 + $0xd4] sm:$0xf]
          %v6180 = vld [vmem:[#allocation11 + $0xd8] sm:$0xf]
          %v6181 = vld [vmem:[#allocation11 + $0xdc] sm:$0xf]
          %v6182 = vld [vmem:[#allocation11 + $0xe0] sm:$0xf]
          %v6183 = vld [vmem:[#allocation11 + $0xe4] sm:$0xf]
          %v6184 = vld [vmem:[#allocation11 + $0xe8] sm:$0xf]
          %v6185 = vld [vmem:[#allocation11 + $0xec] sm:$0xf]
          %v6186 = vld [vmem:[#allocation11 + $0xf0] sm:$0xf]
          %v6187 = vld [vmem:[#allocation11 + $0xf4] sm:$0xf]
          %v6188 = vld [vmem:[#allocation11 + $0xf8] sm:$0xf]
          %v6189 = vld [vmem:[#allocation11 + $0xfc] sm:$0xf]
          %v6190 = vld [vmem:[%s9] sm:$0x1]
          %v6192 = vlaneseq
          %v6193 = vshrl.u32 %v6192, 7
          %v6194 = vsub.s32 0, %v6193
          %v6195 = vrot.slane %v6190, %v6194
          %v6261 = vunpack.c.l.b16 %v6126
          %v6262 = vunpack.c.l.b16 %v6127
          %v6263 = vunpack.c.l.b16 %v6128
          %v6264 = vunpack.c.l.b16 %v6129
          %v6265 = vunpack.c.l.b16 %v6130
          %v6266 = vunpack.c.l.b16 %v6131
          %v6267 = vunpack.c.l.b16 %v6132
          %v6268 = vunpack.c.l.b16 %v6133
          %v6269 = vunpack.c.l.b16 %v6134
          %v6270 = vunpack.c.l.b16 %v6135
          %v6271 = vunpack.c.l.b16 %v6136
          %v6272 = vunpack.c.l.b16 %v6137
          %v6273 = vunpack.c.l.b16 %v6138
          %v6274 = vunpack.c.l.b16 %v6139
          %v6275 = vunpack.c.l.b16 %v6140
          %v6276 = vunpack.c.l.b16 %v6141
          %v6277 = vunpack.c.l.b16 %v6142
          %v6278 = vunpack.c.l.b16 %v6143
          %v6279 = vunpack.c.l.b16 %v6144
          %v6280 = vunpack.c.l.b16 %v6145
          %v6281 = vunpack.c.l.b16 %v6146
          %v6282 = vunpack.c.l.b16 %v6147
          %v6283 = vunpack.c.l.b16 %v6148
          %v6284 = vunpack.c.l.b16 %v6149
          %v6285 = vunpack.c.l.b16 %v6150
          %v6286 = vunpack.c.l.b16 %v6151
          %v6287 = vunpack.c.l.b16 %v6152
          %v6288 = vunpack.c.l.b16 %v6153
          %v6289 = vunpack.c.l.b16 %v6154
          %v6290 = vunpack.c.l.b16 %v6155
          %v6291 = vunpack.c.l.b16 %v6156
          %v6292 = vunpack.c.l.b16 %v6157
          %v6293 = vunpack.c.l.b16 %v6158
          %v6294 = vunpack.c.l.b16 %v6159
          %v6295 = vunpack.c.l.b16 %v6160
          %v6296 = vunpack.c.l.b16 %v6161
          %v6297 = vunpack.c.l.b16 %v6162
          %v6298 = vunpack.c.l.b16 %v6163
          %v6299 = vunpack.c.l.b16 %v6164
          %v6300 = vunpack.c.l.b16 %v6165
          %v6301 = vunpack.c.l.b16 %v6166
          %v6302 = vunpack.c.l.b16 %v6167
          %v6303 = vunpack.c.l.b16 %v6168
          %v6304 = vunpack.c.l.b16 %v6169
          %v6305 = vunpack.c.l.b16 %v6170
          %v6306 = vunpack.c.l.b16 %v6171
          %v6307 = vunpack.c.l.b16 %v6172
          %v6308 = vunpack.c.l.b16 %v6173
          %v6309 = vunpack.c.l.b16 %v6174
          %v6310 = vunpack.c.l.b16 %v6175
          %v6311 = vunpack.c.l.b16 %v6176
          %v6312 = vunpack.c.l.b16 %v6177
          %v6313 = vunpack.c.l.b16 %v6178
          %v6314 = vunpack.c.l.b16 %v6179
          %v6315 = vunpack.c.l.b16 %v6180
          %v6316 = vunpack.c.l.b16 %v6181
          %v6317 = vunpack.c.l.b16 %v6182
          %v6318 = vunpack.c.l.b16 %v6183
          %v6319 = vunpack.c.l.b16 %v6184
          %v6320 = vunpack.c.l.b16 %v6185
          %v6321 = vunpack.c.l.b16 %v6186
          %v6322 = vunpack.c.l.b16 %v6187
          %v6323 = vunpack.c.l.b16 %v6188
          %v6324 = vunpack.c.l.b16 %v6189
          %v6325 = vpack.c.b16 %v6262, %v6261
          %v6326 = vpack.c.b16 %v6264, %v6263
          %v6327 = vpack.c.b16 %v6266, %v6265
          %v6328 = vpack.c.b16 %v6268, %v6267
          %v6329 = vpack.c.b16 %v6270, %v6269
          %v6330 = vpack.c.b16 %v6272, %v6271
          %v6331 = vpack.c.b16 %v6274, %v6273
          %v6332 = vpack.c.b16 %v6276, %v6275
          %v6333 = vpack.c.b16 %v6278, %v6277
          %v6334 = vpack.c.b16 %v6280, %v6279
          %v6335 = vpack.c.b16 %v6282, %v6281
          %v6336 = vpack.c.b16 %v6284, %v6283
          %v6337 = vpack.c.b16 %v6286, %v6285
          %v6338 = vpack.c.b16 %v6288, %v6287
          %v6339 = vpack.c.b16 %v6290, %v6289
          %v6340 = vpack.c.b16 %v6292, %v6291
          %v6341 = vpack.c.b16 %v6294, %v6293
          %v6342 = vpack.c.b16 %v6296, %v6295
          %v6343 = vpack.c.b16 %v6298, %v6297
          %v6344 = vpack.c.b16 %v6300, %v6299
          %v6345 = vpack.c.b16 %v6302, %v6301
          %v6346 = vpack.c.b16 %v6304, %v6303
          %v6347 = vpack.c.b16 %v6306, %v6305
          %v6348 = vpack.c.b16 %v6308, %v6307
          %v6349 = vpack.c.b16 %v6310, %v6309
          %v6350 = vpack.c.b16 %v6312, %v6311
          %v6351 = vpack.c.b16 %v6314, %v6313
          %v6352 = vpack.c.b16 %v6316, %v6315
          %v6353 = vpack.c.b16 %v6318, %v6317
          %v6354 = vpack.c.b16 %v6320, %v6319
          %v6355 = vpack.c.b16 %v6322, %v6321
          %v6356 = vpack.c.b16 %v6324, %v6323
          %6389 = vmatprep.subr.bf16.mxu0 0
          %6390 = vmatpush1.bf16.msra.mxu0 %v6325
          %6391 = vmatprep.subr.bf16.mxu0 0
          %6392 = vmatpush1.bf16.msra.mxu0 %v6326
          %6393 = vmatprep.subr.bf16.mxu0 0
          %6394 = vmatpush1.bf16.msra.mxu0 %v6327
          %6395 = vmatprep.subr.bf16.mxu0 0
          %6396 = vmatpush1.bf16.msra.mxu0 %v6328
          %6397 = vmatprep.subr.bf16.mxu0 0
          %6398 = vmatpush1.bf16.msra.mxu0 %v6329
          %6399 = vmatprep.subr.bf16.mxu0 0
          %6400 = vmatpush1.bf16.msra.mxu0 %v6330
          %6401 = vmatprep.subr.bf16.mxu0 0
          %6402 = vmatpush1.bf16.msra.mxu0 %v6331
          %6403 = vmatprep.subr.bf16.mxu0 0
          %6404 = vmatpush1.bf16.msra.mxu0 %v6332
          %6405 = vmatprep.subr.bf16.mxu0 0
          %6406 = vmatpush1.bf16.msra.mxu0 %v6333
          %6407 = vmatprep.subr.bf16.mxu0 0
          %6408 = vmatpush1.bf16.msra.mxu0 %v6334
          %6409 = vmatprep.subr.bf16.mxu0 0
          %6410 = vmatpush1.bf16.msra.mxu0 %v6335
          %6411 = vmatprep.subr.bf16.mxu0 0
          %6412 = vmatpush1.bf16.msra.mxu0 %v6336
          %6413 = vmatprep.subr.bf16.mxu0 0
          %6414 = vmatpush1.bf16.msra.mxu0 %v6337
          %6415 = vmatprep.subr.bf16.mxu0 0
          %6416 = vmatpush1.bf16.msra.mxu0 %v6338
          %6417 = vmatprep.subr.bf16.mxu0 0
          %6418 = vmatpush1.bf16.msra.mxu0 %v6339
          %6419 = vmatprep.subr.bf16.mxu0 0
          %6420 = vmatpush1.bf16.msra.mxu0 %v6340
          %6421 = vmatprep.mubr.bf16.mxu0 %v6123
          %6422 = vmatmul.mubr.bf16.gmra.mrb[0].mxu0 %v6122
          %v6423 = vpop.f32.mrb[0].mxu0
          %v6424 = vadd.f32 %v6195, %v6423
          %v6425 = vpop.f32.mrb[0].mxu0
          %v6426 = vpop.f32.mrb[0].mxu0
          %v6427 = vadd.f32 %v6195, %v6426
          %v6428 = vpop.f32.mrb[0].mxu0
          %6429 = vdwg.mxu0
          %6430 = vmatprep.subr.bf16.mxu0 0
          %6431 = vmatpush1.bf16.msra.mxu0 %v6341
          %6432 = vmatprep.subr.bf16.mxu0 0
          %6433 = vmatpush1.bf16.msra.mxu0 %v6342
          %6434 = vmatprep.subr.bf16.mxu0 0
          %6435 = vmatpush1.bf16.msra.mxu0 %v6343
          %6436 = vmatprep.subr.bf16.mxu0 0
          %6437 = vmatpush1.bf16.msra.mxu0 %v6344
          %6438 = vmatprep.subr.bf16.mxu0 0
          %6439 = vmatpush1.bf16.msra.mxu0 %v6345
          %6440 = vmatprep.subr.bf16.mxu0 0
          %6441 = vmatpush1.bf16.msra.mxu0 %v6346
          %6442 = vmatprep.subr.bf16.mxu0 0
          %6443 = vmatpush1.bf16.msra.mxu0 %v6347
          %6444 = vmatprep.subr.bf16.mxu0 0
          %6445 = vmatpush1.bf16.msra.mxu0 %v6348
          %6446 = vmatprep.subr.bf16.mxu0 0
          %6447 = vmatpush1.bf16.msra.mxu0 %v6349
          %6448 = vmatprep.subr.bf16.mxu0 0
          %6449 = vmatpush1.bf16.msra.mxu0 %v6350
          %6450 = vmatprep.subr.bf16.mxu0 0
          %6451 = vmatpush1.bf16.msra.mxu0 %v6351
          %6452 = vmatprep.subr.bf16.mxu0 0
          %6453 = vmatpush1.bf16.msra.mxu0 %v6352
          %6454 = vmatprep.subr.bf16.mxu0 0
          %6455 = vmatpush1.bf16.msra.mxu0 %v6353
          %6456 = vmatprep.subr.bf16.mxu0 0
          %6457 = vmatpush1.bf16.msra.mxu0 %v6354
          %6458 = vmatprep.subr.bf16.mxu0 0
          %6459 = vmatpush1.bf16.msra.mxu0 %v6355
          %6460 = vmatprep.subr.bf16.mxu0 0
          %6461 = vmatpush1.bf16.msra.mxu0 %v6356
          %6462 = vmatprep.mubr.bf16.mxu0 %v6125
          %6463 = vmatmul.mubr.bf16.gmra.mrb[0].mxu0 %v6124
          %v6464 = vpop.f32.mrb[0].mxu0
          %v6465 = vadd.f32 %v6424, %v6464
          %v6466 = vpop.f32.mrb[0].mxu0
          %v6467 = vpop.f32.mrb[0].mxu0
          %v6468 = vadd.f32 %v6427, %v6467
          %v6469 = vpop.f32.mrb[0].mxu0
          %6470 = vdwg.mxu0
          %6471 = vst [vmem:[#allocation13] sm:$0xff] %v6465
          %6472 = vst [vmem:[#allocation13 + $0x8] sm:$0xff] %v6468
        $region91: #{tpu_custom_call.1} parent=59 // pred_fallthru
          _
        // Predicated region
        $region92: #{tpu_custom_call.1} parent=59 // pred_check
          %p6473 = pneg %p272
        $region93: #{tpu_custom_call.1} parent=59 // pred_check_branch
          %6475 = sbr.rel (%p6473) target = $region95
        $region94: #{tpu_custom_call.1} parent=59 // pred_region
          %s6476 = smul.u32 2, %s29
          %s6478 = ssub.s32 256, 256
          %6479 = vsyncadd [#allocation7], %s6478
          %s6480 = smul.addr %s6476, 128
          %s6481 = scalar_lea.hbm %s10, %s6480
          %s6482 = sshll.u32 [#allocation13], 4
          %s6483 = int_to_ptr.vmem [resolvable:$true] %s6482
          %6488 = dma.vmem_to_hbm [thread:$0]  %s6483, 256, %s6481, [#allocation7], 128, 128, 8
        $region95: #{tpu_custom_call.1} parent=59 // pred_fallthru
          _
        // Predicated region
        $region96: #{tpu_custom_call.1} parent=59 // pred_check
          %p6489 = pneg %p272
        $region97: #{tpu_custom_call.1} parent=59 // pred_check_branch
          %6491 = sbr.rel (%p6489) target = $region99
        $region98: #{tpu_custom_call.1} parent=59 // pred_region
          %6492 = dma.done [#allocation7], 256
        $region99: #{tpu_custom_call.1} parent=59 // pred_fallthru
          _
      $region60: #{tpu_custom_call.1} parent=5 // pred_fallthru
        _
      %p6493 = scmp.le.s32.totalorder 2, %s20
      // Predicated region
      $region100: #{tpu_custom_call.1} parent=5 // pred_check
        %p6494 = pneg %p6493
      $region101: #{tpu_custom_call.1} parent=5 // pred_check_branch
        %6496 = sbr.rel (%p6494) target = $region103
      $region102: #{tpu_custom_call.1} parent=5 // pred_region
        %s6497 = ssub.s32 %s20, 2
      $region103: #{tpu_custom_call.1} parent=5 // pred_fallthru
        _
    $region6: #{tpu_custom_call.1} parent=1 // loop_footer
      %s24 = sadd.s32 1, %s20
    $region7: #{tpu_custom_call.1} parent=1 // loop_footer_branch
      %19 = sbr.rel target = $region3
    $region8: #{tpu_custom_call.1} parent=1 // loop_exit
      _
    %6498 = vsyncpa [#allocation6], 1
    %s6499 = scalar_lea.sflag [#allocation6], 1
    %6500 = vsyncpa %s6499, 1
    %6501 = vsyncpa [#allocation9], 1
    %6502 = vsyncpa [#allocation12], 1
    %6503 = vsyncpa [#allocation7], 1
    %s6504 = scalar_lea.sflag [#allocation7], 1
    %6505 = vsyncpa %s6504, 1

</llo_original>
